<compile_context>
chip_gen: v6e
topology: v6e:2x2x1
jax: 0.10.0
libtpu: 0.0.40
codegen_flags: <defaults>
</compile_context>

<pallas_src>
import functools

import jax
import jax.numpy as jnp
from jax.experimental import pallas as pl
from jax.experimental.pallas import tpu as pltpu


def _make_lstm_kernel(T: int, F: int, H: int):
    """Builds the kernel for a fixed (static) seq length T, future_preds F, hidden H."""

    def kernel(y_ref,        # (B, T)      observed inputs, batch-major
               w_ih1_ref,    # (1, 4H)     layer-1 input weight^T, i/f/o cols pre-scaled 0.5
               w_hh1_ref,    # (H, 4H)     layer-1 recurrent weight^T, i/f/o cols pre-scaled
               b1_ref,       # (1, 4H)     b_ih1 + b_hh1, i/f/o entries pre-scaled 0.5
               w_ih2_ref,    # (H, 4H)     layer-2 input weight^T, pre-scaled
               w_hh2_ref,    # (H, 4H)     layer-2 recurrent weight^T, pre-scaled
               b2_ref,       # (1, 4H)     b_ih2 + b_hh2, pre-scaled
               w_lin_ref,    # (1, H)      linear head weight
               b_lin_ref,    # (1, 1)      linear head bias
               out_ref):     # (B, T + F)
        B = y_ref.shape[0]
        f32 = jnp.float32

        # ---- Hoisted once (outside the unrolled time loops) -------------------------
        b1_b = jnp.broadcast_to(b1_ref[...], (B, 4 * H))
        b2_b = jnp.broadcast_to(b2_ref[...], (B, 4 * H))
        w_ih1_b = jnp.broadcast_to(w_ih1_ref[...], (B, 4 * H))
        w_lin_b = jnp.broadcast_to(w_lin_ref[...], (B, H))
        b_lin_b = jnp.broadcast_to(b_lin_ref[...], (B, 1))

        # Per-lane affine applied AFTER the full-width tanh:
        #   i/f/o lanes: act = 0.5*tanh(0.5*pre) + 0.5  (exact sigmoid; 0.5 folded in weights)
        #   g lanes    : act = tanh(pre)
        lane = jax.lax.broadcasted_iota(jnp.int32, (B, 4 * H), 1)
        is_g = (lane >= 2 * H) & (lane < 3 * H)
        alpha = jnp.where(is_g, 1.0, 0.5).astype(f32)
        beta = jnp.where(is_g, 0.0, 0.5).astype(f32)

        def cell(gates, c):
            # gates: (B, 4H), torch gate order [i | f | g | o]; i/f/o lanes pre-scaled by 0.5.
            # One full-width tanh (EUP) + one hoisted-constant affine (VPU).
            act = alpha * jnp.tanh(gates) + beta
            i = act[:, 0 * H:1 * H]
            f = act[:, 1 * H:2 * H]
            g = act[:, 2 * H:3 * H]
            o = act[:, 3 * H:4 * H]
            c_new = f * c + i * g
            h_new = o * jnp.tanh(c_new)
            return h_new, c_new

        def step(x_t, h1, c1, h2, c2):
            # Layer-2 recurrent half: depends only on the PREVIOUS step's h2, not on this
            # step's h1, so it overlaps with layer 1 (off the dependent chain).
            pre2 = jnp.dot(h2, w_hh2_ref[...], preferred_element_type=f32) + b2_b

            # Layer 1. Input dim is 1, so x @ W_ih1^T is a broadcasted VPU multiply.
            gates1 = (x_t * w_ih1_b
                      + jnp.dot(h1, w_hh1_ref[...], preferred_element_type=f32)
                      + b1_b)
            h1, c1 = cell(gates1, c1)

            # Only the h1-dependent K=64 dot sits on the critical path.
            gates2 = jnp.dot(h1, w_ih2_ref[...], preferred_element_type=f32) + pre2
            h2, c2 = cell(gates2, c2)

            # Linear head (H -> 1) as a lane reduction (XLU); during the observed phase it
            # does not feed the recurrence, so it is hidden off the dependent chain.
            out = jnp.sum(h2 * w_lin_b, axis=1, keepdims=True) + b_lin_b  # (B, 1)
            return out, h1, c1, h2, c2

        z = jnp.zeros((B, H), f32)
        h1, c1, h2, c2 = z, z, z, z
        out = jnp.zeros((B, 1), f32)
        cols = []

        # Observed phase (fully unrolled, static lane slices of y).
        for t in range(T):
            out, h1, c1, h2, c2 = step(y_ref[:, t:t + 1], h1, c1, h2, c2)
            cols.append(out)

        # Autoregressive phase: feed the previous scalar prediction back as the input.
        for _ in range(F):
            out, h1, c1, h2, c2 = step(out, h1, c1, h2, c2)
            cols.append(out)

        # Single assembly + dense store of the whole output slab (no per-step selects).
        out_ref[...] = jnp.concatenate(cols, axis=1)

    return kernel


@functools.partial(jax.jit, static_argnames=("future_preds",))
def lstm_forward(y, params, future_preds=0):
    """y: (B, T) float32.  Returns (B, T + future_preds) float32 (batch-major, like torch)."""
    B, T = y.shape
    H = params["w_hh1"].shape[1]

    # Column scale folding the sigmoid-as-tanh 0.5 pre-scale into the i/f/o gate columns
    # (g columns, indices [2H, 3H), stay unscaled).  Zero runtime cost inside the kernel.
    idx = jnp.arange(4 * H)
    colscale = jnp.where((idx >= 2 * H) & (idx < 3 * H), 1.0, 0.5).astype(jnp.float32)

    w_ih1_t = params["w_ih1"].reshape(1, 4 * H).astype(jnp.float32) * colscale[None, :]
    w_hh1_t = params["w_hh1"].T.astype(jnp.float32) * colscale[None, :]   # (H, 4H)
    w_ih2_t = params["w_ih2"].T.astype(jnp.float32) * colscale[None, :]   # (H, 4H)
    w_hh2_t = params["w_hh2"].T.astype(jnp.float32) * colscale[None, :]   # (H, 4H)
    b1 = params["b1"].reshape(1, 4 * H).astype(jnp.float32) * colscale[None, :]
    b2 = params["b2"].reshape(1, 4 * H).astype(jnp.float32) * colscale[None, :]
    w_lin = params["w_lin"].reshape(1, H).astype(jnp.float32)
    b_lin = params["b_lin"].reshape(1, 1).astype(jnp.float32)

    vmem = pl.BlockSpec(memory_space=pltpu.MemorySpace.VMEM)
    out = pl.pallas_call(
        _make_lstm_kernel(T, future_preds, H),
        out_shape=jax.ShapeDtypeStruct((B, T + future_preds), jnp.float32),
        in_specs=[vmem] * 9,
        out_specs=vmem,
    )(y.astype(jnp.float32), w_ih1_t, w_hh1_t, b1, w_ih2_t, w_hh2_t, b2, w_lin, b_lin)
    return out


def init_params(key, hidden=64):
    """Deterministic params matching torch's LSTMCell/Linear shapes (uniform +-1/sqrt(H))."""
    H = hidden
    k = jax.random.split(key, 10)
    s = 1.0 / jnp.sqrt(H)
    u = lambda kk, shape: jax.random.uniform(kk, shape, jnp.float32, -s, s)
    return {
        "w_ih1": u(k[0], (4 * H, 1)),
        "w_hh1": u(k[1], (4 * H, H)),
        "b1":    u(k[2], (4 * H,)) + u(k[3], (4 * H,)),   # b_ih + b_hh folded together
        "w_ih2": u(k[4], (4 * H, H)),
        "w_hh2": u(k[5], (4 * H, H)),
        "b2":    u(k[6], (4 * H,)) + u(k[7], (4 * H,)),
        "w_lin": u(k[8], (1, H)),
        "b_lin": u(k[9], (1,)),
    }


def ref_forward(y, p, future_preds=0):
    """Pure-JAX reference mirroring the PyTorch module (batch-major)."""
    B, _T = y.shape
    H = p["w_hh1"].shape[1]
    h1 = c1 = h2 = c2 = jnp.zeros((B, H), jnp.float32)

    def cell(x, h, c, w_ih, w_hh, b):
        g = x @ w_ih.T + h @ w_hh.T + b
        i, f, gg, o = jnp.split(g, 4, axis=1)
        c = jax.nn.sigmoid(f) * c + jax.nn.sigmoid(i) * jnp.tanh(gg)
        h = jax.nn.sigmoid(o) * jnp.tanh(c)
        return h, c

    outs = []
    out = None
    for t in range(_T):
        x = y[:, t:t + 1]
        h1, c1 = cell(x, h1, c1, p["w_ih1"], p["w_hh1"], p["b1"])
        h2, c2 = cell(h1, h2, c2, p["w_ih2"], p["w_hh2"], p["b2"])
        out = h2 @ p["w_lin"].T + p["b_lin"]
        outs.append(out)
    for _ in range(future_preds):
        h1, c1 = cell(out, h1, c1, p["w_ih1"], p["w_hh1"], p["b1"])
        h2, c2 = cell(h1, h2, c2, p["w_ih2"], p["w_hh2"], p["b2"])
        out = h2 @ p["w_lin"].T + p["b_lin"]
        outs.append(out)
    return jnp.concatenate(outs, axis=1)


if __name__ == "__main__":
    key = jax.random.PRNGKey(0)
    k_param, k_data = jax.random.split(key)

    B, T, H = 8, 16, 64
    params = init_params(k_param, hidden=H)
    y = jax.random.normal(k_data, (B, T), dtype=jnp.float32)

    # Tolerance 1e-4: the split layer-2 dots, weight-folded 0.5 pre-scale and tanh-form
    # sigmoid reassociate f32 ops relative to the reference at the ~1e-6/step level.
    # (Note: preferred_element_type only pins the accumulator; MXU operand precision is
    # left at the same default that already met this tolerance.)
    ATOL = RTOL = 1e-4

    # Observed-sequence path.
    out = jax.block_until_ready(lstm_forward(y, params, future_preds=0))
    ref = ref_forward(y, params, future_preds=0)
    assert out.shape == (B, T)
    assert jnp.allclose(out, ref, atol=ATOL, rtol=RTOL), "mismatch (future_preds=0)"

    # Autoregressive future-prediction path.
    F = 3
    out_f = jax.block_until_ready(lstm_forward(y, params, future_preds=F))
    ref_f = ref_forward(y, params, future_preds=F)
    assert out_f.shape == (B, T + F)
    assert jnp.allclose(out_f, ref_f, atol=ATOL, rtol=RTOL), "mismatch (future_preds=3)"

    print("KERNEL_OK")
</pallas_src>

<mosaic_0001>
module attributes {stable_mosaic.version = 11 : i64} {
  func.func @kernel(%arg0: memref<8x16xf32, #tpu.memory_space<vmem>>, %arg1: memref<1x256xf32, #tpu.memory_space<vmem>>, %arg2: memref<64x256xf32, #tpu.memory_space<vmem>>, %arg3: memref<1x256xf32, #tpu.memory_space<vmem>>, %arg4: memref<64x256xf32, #tpu.memory_space<vmem>>, %arg5: memref<64x256xf32, #tpu.memory_space<vmem>>, %arg6: memref<1x256xf32, #tpu.memory_space<vmem>>, %arg7: memref<1x64xf32, #tpu.memory_space<vmem>>, %arg8: memref<1x1xf32, #tpu.memory_space<vmem>>, %arg9: memref<8x16xf32, #tpu.memory_space<vmem>>) attributes {dimension_semantics = [], scalar_prefetch = 0 : i64, scratch_operands = 0 : i64, tpu.core_type = #tpu.core_type<tc>} {
    %c0 = arith.constant 0 : index
    %c0_0 = arith.constant 0 : index
    %0 = vector.load %arg3[%c0, %c0_0] : memref<1x256xf32, #tpu.memory_space<vmem>>, vector<1x256xf32>
    %1 = vector.shape_cast %0 : vector<1x256xf32> to vector<1x256xf32>
    %2 = vector.broadcast %1 : vector<1x256xf32> to vector<8x256xf32>
    %c0_1 = arith.constant 0 : index
    %c0_2 = arith.constant 0 : index
    %3 = vector.load %arg6[%c0_1, %c0_2] : memref<1x256xf32, #tpu.memory_space<vmem>>, vector<1x256xf32>
    %4 = vector.shape_cast %3 : vector<1x256xf32> to vector<1x256xf32>
    %5 = vector.broadcast %4 : vector<1x256xf32> to vector<8x256xf32>
    %c0_3 = arith.constant 0 : index
    %c0_4 = arith.constant 0 : index
    %6 = vector.load %arg1[%c0_3, %c0_4] : memref<1x256xf32, #tpu.memory_space<vmem>>, vector<1x256xf32>
    %7 = vector.shape_cast %6 : vector<1x256xf32> to vector<1x256xf32>
    %8 = vector.broadcast %7 : vector<1x256xf32> to vector<8x256xf32>
    %c0_5 = arith.constant 0 : index
    %c0_6 = arith.constant 0 : index
    %9 = vector.load %arg7[%c0_5, %c0_6] : memref<1x64xf32, #tpu.memory_space<vmem>>, vector<1x64xf32>
    %10 = vector.shape_cast %9 : vector<1x64xf32> to vector<1x64xf32>
    %11 = vector.broadcast %10 : vector<1x64xf32> to vector<8x64xf32>
    %c0_7 = arith.constant 0 : index
    %c0_8 = arith.constant 0 : index
    %12 = vector.load %arg8[%c0_7, %c0_8] : memref<1x1xf32, #tpu.memory_space<vmem>>, vector<1x1xf32>
    %13 = vector.shape_cast %12 : vector<1x1xf32> to vector<1x1xf32>
    %14 = vector.broadcast %13 : vector<1x1xf32> to vector<8x1xf32>
    %15 = tpu.iota {dimensions = array<i32: 1>} : vector<8x256xi32>
    %c128_i32 = arith.constant 128 : i32
    %16 = vector.broadcast %c128_i32 : i32 to vector<8x256xi32>
    %17 = arith.cmpi sge, %15, %16 : vector<8x256xi32>
    %c192_i32 = arith.constant 192 : i32
    %18 = vector.broadcast %c192_i32 : i32 to vector<8x256xi32>
    %19 = arith.cmpi slt, %15, %18 : vector<8x256xi32>
    %20 = arith.andi %17, %19 : vector<8x256xi1>
    %cst = arith.constant 1.000000e+00 : f32
    %cst_9 = arith.constant 5.000000e-01 : f32
    %21 = vector.broadcast %cst : f32 to vector<8x256xf32>
    %22 = vector.broadcast %cst_9 : f32 to vector<8x256xf32>
    %23 = arith.select %20, %21, %22 : vector<8x256xi1>, vector<8x256xf32>
    %cst_10 = arith.constant 0.000000e+00 : f32
    %cst_11 = arith.constant 5.000000e-01 : f32
    %24 = vector.broadcast %cst_10 : f32 to vector<8x256xf32>
    %25 = vector.broadcast %cst_11 : f32 to vector<8x256xf32>
    %26 = arith.select %20, %24, %25 : vector<8x256xi1>, vector<8x256xf32>
    %cst_12 = arith.constant 0.000000e+00 : f32
    %27 = vector.broadcast %cst_12 : f32 to vector<8x64xf32>
    %c0_13 = arith.constant 0 : index
    %c0_14 = arith.constant 0 : index
    %28 = vector.load %arg0[%c0_13, %c0_14] : memref<8x16xf32, #tpu.memory_space<vmem>>, vector<8x1xf32>
    %c0_15 = arith.constant 0 : index
    %c0_16 = arith.constant 0 : index
    %29 = vector.load %arg5[%c0_15, %c0_16] : memref<64x256xf32, #tpu.memory_space<vmem>>, vector<64x256xf32>
    %cst_17 = arith.constant dense<0.000000e+00> : vector<8x256xf32>
    %30 = tpu.matmul %27, %29, %cst_17 {dimension_numbers = #tpu.dot_dimension_numbers<[1], [0], [0], [1], [0, 0, 1, 1], [], []>} : vector<8x64xf32>, vector<64x256xf32>, vector<8x256xf32> -> vector<8x256xf32>
    %31 = arith.addf %30, %5 : vector<8x256xf32>
    %32 = vector.broadcast %28 : vector<8x1xf32> to vector<8x256xf32>
    %33 = arith.mulf %32, %8 : vector<8x256xf32>
    %c0_18 = arith.constant 0 : index
    %c0_19 = arith.constant 0 : index
    %34 = vector.load %arg2[%c0_18, %c0_19] : memref<64x256xf32, #tpu.memory_space<vmem>>, vector<64x256xf32>
    %cst_20 = arith.constant dense<0.000000e+00> : vector<8x256xf32>
    %35 = tpu.matmul %27, %34, %cst_20 {dimension_numbers = #tpu.dot_dimension_numbers<[1], [0], [0], [1], [0, 0, 1, 1], [], []>} : vector<8x64xf32>, vector<64x256xf32>, vector<8x256xf32> -> vector<8x256xf32>
    %36 = arith.addf %33, %35 : vector<8x256xf32>
    %37 = arith.addf %36, %2 : vector<8x256xf32>
    %38 = math.tanh %37 : vector<8x256xf32>
    %39 = arith.mulf %23, %38 : vector<8x256xf32>
    %40 = arith.addf %39, %26 : vector<8x256xf32>
    %41 = vector.extract_strided_slice %40 {offsets = [0, 0], sizes = [8, 64], strides = [1, 1]} : vector<8x256xf32> to vector<8x64xf32>
    %42 = vector.extract_strided_slice %40 {offsets = [0, 64], sizes = [8, 64], strides = [1, 1]} : vector<8x256xf32> to vector<8x64xf32>
    %43 = vector.extract_strided_slice %40 {offsets = [0, 128], sizes = [8, 64], strides = [1, 1]} : vector<8x256xf32> to vector<8x64xf32>
    %44 = vector.extract_strided_slice %40 {offsets = [0, 192], sizes = [8, 64], strides = [1, 1]} : vector<8x256xf32> to vector<8x64xf32>
    %45 = arith.mulf %42, %27 : vector<8x64xf32>
    %46 = arith.mulf %41, %43 : vector<8x64xf32>
    %47 = arith.addf %45, %46 : vector<8x64xf32>
    %48 = math.tanh %47 : vector<8x64xf32>
    %49 = arith.mulf %44, %48 : vector<8x64xf32>
    %c0_21 = arith.constant 0 : index
    %c0_22 = arith.constant 0 : index
    %50 = vector.load %arg4[%c0_21, %c0_22] : memref<64x256xf32, #tpu.memory_space<vmem>>, vector<64x256xf32>
    %cst_23 = arith.constant dense<0.000000e+00> : vector<8x256xf32>
    %51 = tpu.matmul %49, %50, %cst_23 {dimension_numbers = #tpu.dot_dimension_numbers<[1], [0], [0], [1], [0, 0, 1, 1], [], []>} : vector<8x64xf32>, vector<64x256xf32>, vector<8x256xf32> -> vector<8x256xf32>
    %52 = arith.addf %51, %31 : vector<8x256xf32>
    %53 = math.tanh %52 : vector<8x256xf32>
    %54 = arith.mulf %23, %53 : vector<8x256xf32>
    %55 = arith.addf %54, %26 : vector<8x256xf32>
    %56 = vector.extract_strided_slice %55 {offsets = [0, 0], sizes = [8, 64], strides = [1, 1]} : vector<8x256xf32> to vector<8x64xf32>
    %57 = vector.extract_strided_slice %55 {offsets = [0, 64], sizes = [8, 64], strides = [1, 1]} : vector<8x256xf32> to vector<8x64xf32>
    %58 = vector.extract_strided_slice %55 {offsets = [0, 128], sizes = [8, 64], strides = [1, 1]} : vector<8x256xf32> to vector<8x64xf32>
    %59 = vector.extract_strided_slice %55 {offsets = [0, 192], sizes = [8, 64], strides = [1, 1]} : vector<8x256xf32> to vector<8x64xf32>
    %60 = arith.mulf %57, %27 : vector<8x64xf32>
    %61 = arith.mulf %56, %58 : vector<8x64xf32>
    %62 = arith.addf %60, %61 : vector<8x64xf32>
    %63 = math.tanh %62 : vector<8x64xf32>
    %64 = arith.mulf %59, %63 : vector<8x64xf32>
    %65 = arith.mulf %64, %11 : vector<8x64xf32>
    %cst_24 = arith.constant dense<0.000000e+00> : vector<8xf32>
    %66 = vector.multi_reduction <add>, %65, %cst_24 [1] : vector<8x64xf32> to vector<8xf32>
    %67 = vector.shape_cast %66 : vector<8xf32> to vector<8x1xf32>
    %68 = arith.addf %67, %14 : vector<8x1xf32>
    %c0_25 = arith.constant 0 : index
    %c1 = arith.constant 1 : index
    %69 = vector.load %arg0[%c0_25, %c1] : memref<8x16xf32, #tpu.memory_space<vmem>>, vector<8x1xf32>
    %c0_26 = arith.constant 0 : index
    %c0_27 = arith.constant 0 : index
    %70 = vector.load %arg5[%c0_26, %c0_27] : memref<64x256xf32, #tpu.memory_space<vmem>>, vector<64x256xf32>
    %cst_28 = arith.constant dense<0.000000e+00> : vector<8x256xf32>
    %71 = tpu.matmul %64, %70, %cst_28 {dimension_numbers = #tpu.dot_dimension_numbers<[1], [0], [0], [1], [0, 0, 1, 1], [], []>} : vector<8x64xf32>, vector<64x256xf32>, vector<8x256xf32> -> vector<8x256xf32>
    %72 = arith.addf %71, %5 : vector<8x256xf32>
    %73 = vector.broadcast %69 : vector<8x1xf32> to vector<8x256xf32>
    %74 = arith.mulf %73, %8 : vector<8x256xf32>
    %c0_29 = arith.constant 0 : index
    %c0_30 = arith.constant 0 : index
    %75 = vector.load %arg2[%c0_29, %c0_30] : memref<64x256xf32, #tpu.memory_space<vmem>>, vector<64x256xf32>
    %cst_31 = arith.constant dense<0.000000e+00> : vector<8x256xf32>
    %76 = tpu.matmul %49, %75, %cst_31 {dimension_numbers = #tpu.dot_dimension_numbers<[1], [0], [0], [1], [0, 0, 1, 1], [], []>} : vector<8x64xf32>, vector<64x256xf32>, vector<8x256xf32> -> vector<8x256xf32>
    %77 = arith.addf %74, %76 : vector<8x256xf32>
    %78 = arith.addf %77, %2 : vector<8x256xf32>
    %79 = math.tanh %78 : vector<8x256xf32>
    %80 = arith.mulf %23, %79 : vector<8x256xf32>
    %81 = arith.addf %80, %26 : vector<8x256xf32>
    %82 = vector.extract_strided_slice %81 {offsets = [0, 0], sizes = [8, 64], strides = [1, 1]} : vector<8x256xf32> to vector<8x64xf32>
    %83 = vector.extract_strided_slice %81 {offsets = [0, 64], sizes = [8, 64], strides = [1, 1]} : vector<8x256xf32> to vector<8x64xf32>
    %84 = vector.extract_strided_slice %81 {offsets = [0, 128], sizes = [8, 64], strides = [1, 1]} : vector<8x256xf32> to vector<8x64xf32>
    %85 = vector.extract_strided_slice %81 {offsets = [0, 192], sizes = [8, 64], strides = [1, 1]} : vector<8x256xf32> to vector<8x64xf32>
    %86 = arith.mulf %83, %47 : vector<8x64xf32>
    %87 = arith.mulf %82, %84 : vector<8x64xf32>
    %88 = arith.addf %86, %87 : vector<8x64xf32>
    %89 = math.tanh %88 : vector<8x64xf32>
    %90 = arith.mulf %85, %89 : vector<8x64xf32>
    %c0_32 = arith.constant 0 : index
    %c0_33 = arith.constant 0 : index
    %91 = vector.load %arg4[%c0_32, %c0_33] : memref<64x256xf32, #tpu.memory_space<vmem>>, vector<64x256xf32>
    %cst_34 = arith.constant dense<0.000000e+00> : vector<8x256xf32>
    %92 = tpu.matmul %90, %91, %cst_34 {dimension_numbers = #tpu.dot_dimension_numbers<[1], [0], [0], [1], [0, 0, 1, 1], [], []>} : vector<8x64xf32>, vector<64x256xf32>, vector<8x256xf32> -> vector<8x256xf32>
    %93 = arith.addf %92, %72 : vector<8x256xf32>
    %94 = math.tanh %93 : vector<8x256xf32>
    %95 = arith.mulf %23, %94 : vector<8x256xf32>
    %96 = arith.addf %95, %26 : vector<8x256xf32>
    %97 = vector.extract_strided_slice %96 {offsets = [0, 0], sizes = [8, 64], strides = [1, 1]} : vector<8x256xf32> to vector<8x64xf32>
    %98 = vector.extract_strided_slice %96 {offsets = [0, 64], sizes = [8, 64], strides = [1, 1]} : vector<8x256xf32> to vector<8x64xf32>
    %99 = vector.extract_strided_slice %96 {offsets = [0, 128], sizes = [8, 64], strides = [1, 1]} : vector<8x256xf32> to vector<8x64xf32>
    %100 = vector.extract_strided_slice %96 {offsets = [0, 192], sizes = [8, 64], strides = [1, 1]} : vector<8x256xf32> to vector<8x64xf32>
    %101 = arith.mulf %98, %62 : vector<8x64xf32>
    %102 = arith.mulf %97, %99 : vector<8x64xf32>
    %103 = arith.addf %101, %102 : vector<8x64xf32>
    %104 = math.tanh %103 : vector<8x64xf32>
    %105 = arith.mulf %100, %104 : vector<8x64xf32>
    %106 = arith.mulf %105, %11 : vector<8x64xf32>
    %cst_35 = arith.constant dense<0.000000e+00> : vector<8xf32>
    %107 = vector.multi_reduction <add>, %106, %cst_35 [1] : vector<8x64xf32> to vector<8xf32>
    %108 = vector.shape_cast %107 : vector<8xf32> to vector<8x1xf32>
    %109 = arith.addf %108, %14 : vector<8x1xf32>
    %c0_36 = arith.constant 0 : index
    %c2 = arith.constant 2 : index
    %110 = vector.load %arg0[%c0_36, %c2] : memref<8x16xf32, #tpu.memory_space<vmem>>, vector<8x1xf32>
    %c0_37 = arith.constant 0 : index
    %c0_38 = arith.constant 0 : index
    %111 = vector.load %arg5[%c0_37, %c0_38] : memref<64x256xf32, #tpu.memory_space<vmem>>, vector<64x256xf32>
    %cst_39 = arith.constant dense<0.000000e+00> : vector<8x256xf32>
    %112 = tpu.matmul %105, %111, %cst_39 {dimension_numbers = #tpu.dot_dimension_numbers<[1], [0], [0], [1], [0, 0, 1, 1], [], []>} : vector<8x64xf32>, vector<64x256xf32>, vector<8x256xf32> -> vector<8x256xf32>
    %113 = arith.addf %112, %5 : vector<8x256xf32>
    %114 = vector.broadcast %110 : vector<8x1xf32> to vector<8x256xf32>
    %115 = arith.mulf %114, %8 : vector<8x256xf32>
    %c0_40 = arith.constant 0 : index
    %c0_41 = arith.constant 0 : index
    %116 = vector.load %arg2[%c0_40, %c0_41] : memref<64x256xf32, #tpu.memory_space<vmem>>, vector<64x256xf32>
    %cst_42 = arith.constant dense<0.000000e+00> : vector<8x256xf32>
    %117 = tpu.matmul %90, %116, %cst_42 {dimension_numbers = #tpu.dot_dimension_numbers<[1], [0], [0], [1], [0, 0, 1, 1], [], []>} : vector<8x64xf32>, vector<64x256xf32>, vector<8x256xf32> -> vector<8x256xf32>
    %118 = arith.addf %115, %117 : vector<8x256xf32>
    %119 = arith.addf %118, %2 : vector<8x256xf32>
    %120 = math.tanh %119 : vector<8x256xf32>
    %121 = arith.mulf %23, %120 : vector<8x256xf32>
    %122 = arith.addf %121, %26 : vector<8x256xf32>
    %123 = vector.extract_strided_slice %122 {offsets = [0, 0], sizes = [8, 64], strides = [1, 1]} : vector<8x256xf32> to vector<8x64xf32>
    %124 = vector.extract_strided_slice %122 {offsets = [0, 64], sizes = [8, 64], strides = [1, 1]} : vector<8x256xf32> to vector<8x64xf32>
    %125 = vector.extract_strided_slice %122 {offsets = [0, 128], sizes = [8, 64], strides = [1, 1]} : vector<8x256xf32> to vector<8x64xf32>
    %126 = vector.extract_strided_slice %122 {offsets = [0, 192], sizes = [8, 64], strides = [1, 1]} : vector<8x256xf32> to vector<8x64xf32>
    %127 = arith.mulf %124, %88 : vector<8x64xf32>
    %128 = arith.mulf %123, %125 : vector<8x64xf32>
    %129 = arith.addf %127, %128 : vector<8x64xf32>
    %130 = math.tanh %129 : vector<8x64xf32>
    %131 = arith.mulf %126, %130 : vector<8x64xf32>
    %c0_43 = arith.constant 0 : index
    %c0_44 = arith.constant 0 : index
    %132 = vector.load %arg4[%c0_43, %c0_44] : memref<64x256xf32, #tpu.memory_space<vmem>>, vector<64x256xf32>
    %cst_45 = arith.constant dense<0.000000e+00> : vector<8x256xf32>
    %133 = tpu.matmul %131, %132, %cst_45 {dimension_numbers = #tpu.dot_dimension_numbers<[1], [0], [0], [1], [0, 0, 1, 1], [], []>} : vector<8x64xf32>, vector<64x256xf32>, vector<8x256xf32> -> vector<8x256xf32>
    %134 = arith.addf %133, %113 : vector<8x256xf32>
    %135 = math.tanh %134 : vector<8x256xf32>
    %136 = arith.mulf %23, %135 : vector<8x256xf32>
    %137 = arith.addf %136, %26 : vector<8x256xf32>
    %138 = vector.extract_strided_slice %137 {offsets = [0, 0], sizes = [8, 64], strides = [1, 1]} : vector<8x256xf32> to vector<8x64xf32>
    %139 = vector.extract_strided_slice %137 {offsets = [0, 64], sizes = [8, 64], strides = [1, 1]} : vector<8x256xf32> to vector<8x64xf32>
    %140 = vector.extract_strided_slice %137 {offsets = [0, 128], sizes = [8, 64], strides = [1, 1]} : vector<8x256xf32> to vector<8x64xf32>
    %141 = vector.extract_strided_slice %137 {offsets = [0, 192], sizes = [8, 64], strides = [1, 1]} : vector<8x256xf32> to vector<8x64xf32>
    %142 = arith.mulf %139, %103 : vector<8x64xf32>
    %143 = arith.mulf %138, %140 : vector<8x64xf32>
    %144 = arith.addf %142, %143 : vector<8x64xf32>
    %145 = math.tanh %144 : vector<8x64xf32>
    %146 = arith.mulf %141, %145 : vector<8x64xf32>
    %147 = arith.mulf %146, %11 : vector<8x64xf32>
    %cst_46 = arith.constant dense<0.000000e+00> : vector<8xf32>
    %148 = vector.multi_reduction <add>, %147, %cst_46 [1] : vector<8x64xf32> to vector<8xf32>
    %149 = vector.shape_cast %148 : vector<8xf32> to vector<8x1xf32>
    %150 = arith.addf %149, %14 : vector<8x1xf32>
    %c0_47 = arith.constant 0 : index
    %c3 = arith.constant 3 : index
    %151 = vector.load %arg0[%c0_47, %c3] : memref<8x16xf32, #tpu.memory_space<vmem>>, vector<8x1xf32>
    %c0_48 = arith.constant 0 : index
    %c0_49 = arith.constant 0 : index
    %152 = vector.load %arg5[%c0_48, %c0_49] : memref<64x256xf32, #tpu.memory_space<vmem>>, vector<64x256xf32>
    %cst_50 = arith.constant dense<0.000000e+00> : vector<8x256xf32>
    %153 = tpu.matmul %146, %152, %cst_50 {dimension_numbers = #tpu.dot_dimension_numbers<[1], [0], [0], [1], [0, 0, 1, 1], [], []>} : vector<8x64xf32>, vector<64x256xf32>, vector<8x256xf32> -> vector<8x256xf32>
    %154 = arith.addf %153, %5 : vector<8x256xf32>
    %155 = vector.broadcast %151 : vector<8x1xf32> to vector<8x256xf32>
    %156 = arith.mulf %155, %8 : vector<8x256xf32>
    %c0_51 = arith.constant 0 : index
    %c0_52 = arith.constant 0 : index
    %157 = vector.load %arg2[%c0_51, %c0_52] : memref<64x256xf32, #tpu.memory_space<vmem>>, vector<64x256xf32>
    %cst_53 = arith.constant dense<0.000000e+00> : vector<8x256xf32>
    %158 = tpu.matmul %131, %157, %cst_53 {dimension_numbers = #tpu.dot_dimension_numbers<[1], [0], [0], [1], [0, 0, 1, 1], [], []>} : vector<8x64xf32>, vector<64x256xf32>, vector<8x256xf32> -> vector<8x256xf32>
    %159 = arith.addf %156, %158 : vector<8x256xf32>
    %160 = arith.addf %159, %2 : vector<8x256xf32>
    %161 = math.tanh %160 : vector<8x256xf32>
    %162 = arith.mulf %23, %161 : vector<8x256xf32>
    %163 = arith.addf %162, %26 : vector<8x256xf32>
    %164 = vector.extract_strided_slice %163 {offsets = [0, 0], sizes = [8, 64], strides = [1, 1]} : vector<8x256xf32> to vector<8x64xf32>
    %165 = vector.extract_strided_slice %163 {offsets = [0, 64], sizes = [8, 64], strides = [1, 1]} : vector<8x256xf32> to vector<8x64xf32>
    %166 = vector.extract_strided_slice %163 {offsets = [0, 128], sizes = [8, 64], strides = [1, 1]} : vector<8x256xf32> to vector<8x64xf32>
    %167 = vector.extract_strided_slice %163 {offsets = [0, 192], sizes = [8, 64], strides = [1, 1]} : vector<8x256xf32> to vector<8x64xf32>
    %168 = arith.mulf %165, %129 : vector<8x64xf32>
    %169 = arith.mulf %164, %166 : vector<8x64xf32>
    %170 = arith.addf %168, %169 : vector<8x64xf32>
    %171 = math.tanh %170 : vector<8x64xf32>
    %172 = arith.mulf %167, %171 : vector<8x64xf32>
    %c0_54 = arith.constant 0 : index
    %c0_55 = arith.constant 0 : index
    %173 = vector.load %arg4[%c0_54, %c0_55] : memref<64x256xf32, #tpu.memory_space<vmem>>, vector<64x256xf32>
    %cst_56 = arith.constant dense<0.000000e+00> : vector<8x256xf32>
    %174 = tpu.matmul %172, %173, %cst_56 {dimension_numbers = #tpu.dot_dimension_numbers<[1], [0], [0], [1], [0, 0, 1, 1], [], []>} : vector<8x64xf32>, vector<64x256xf32>, vector<8x256xf32> -> vector<8x256xf32>
    %175 = arith.addf %174, %154 : vector<8x256xf32>
    %176 = math.tanh %175 : vector<8x256xf32>
    %177 = arith.mulf %23, %176 : vector<8x256xf32>
    %178 = arith.addf %177, %26 : vector<8x256xf32>
    %179 = vector.extract_strided_slice %178 {offsets = [0, 0], sizes = [8, 64], strides = [1, 1]} : vector<8x256xf32> to vector<8x64xf32>
    %180 = vector.extract_strided_slice %178 {offsets = [0, 64], sizes = [8, 64], strides = [1, 1]} : vector<8x256xf32> to vector<8x64xf32>
    %181 = vector.extract_strided_slice %178 {offsets = [0, 128], sizes = [8, 64], strides = [1, 1]} : vector<8x256xf32> to vector<8x64xf32>
    %182 = vector.extract_strided_slice %178 {offsets = [0, 192], sizes = [8, 64], strides = [1, 1]} : vector<8x256xf32> to vector<8x64xf32>
    %183 = arith.mulf %180, %144 : vector<8x64xf32>
    %184 = arith.mulf %179, %181 : vector<8x64xf32>
    %185 = arith.addf %183, %184 : vector<8x64xf32>
    %186 = math.tanh %185 : vector<8x64xf32>
    %187 = arith.mulf %182, %186 : vector<8x64xf32>
    %188 = arith.mulf %187, %11 : vector<8x64xf32>
    %cst_57 = arith.constant dense<0.000000e+00> : vector<8xf32>
    %189 = vector.multi_reduction <add>, %188, %cst_57 [1] : vector<8x64xf32> to vector<8xf32>
    %190 = vector.shape_cast %189 : vector<8xf32> to vector<8x1xf32>
    %191 = arith.addf %190, %14 : vector<8x1xf32>
    %c0_58 = arith.constant 0 : index
    %c4 = arith.constant 4 : index
    %192 = vector.load %arg0[%c0_58, %c4] : memref<8x16xf32, #tpu.memory_space<vmem>>, vector<8x1xf32>
    %c0_59 = arith.constant 0 : index
    %c0_60 = arith.constant 0 : index
    %193 = vector.load %arg5[%c0_59, %c0_60] : memref<64x256xf32, #tpu.memory_space<vmem>>, vector<64x256xf32>
    %cst_61 = arith.constant dense<0.000000e+00> : vector<8x256xf32>
    %194 = tpu.matmul %187, %193, %cst_61 {dimension_numbers = #tpu.dot_dimension_numbers<[1], [0], [0], [1], [0, 0, 1, 1], [], []>} : vector<8x64xf32>, vector<64x256xf32>, vector<8x256xf32> -> vector<8x256xf32>
    %195 = arith.addf %194, %5 : vector<8x256xf32>
    %196 = vector.broadcast %192 : vector<8x1xf32> to vector<8x256xf32>
    %197 = arith.mulf %196, %8 : vector<8x256xf32>
    %c0_62 = arith.constant 0 : index
    %c0_63 = arith.constant 0 : index
    %198 = vector.load %arg2[%c0_62, %c0_63] : memref<64x256xf32, #tpu.memory_space<vmem>>, vector<64x256xf32>
    %cst_64 = arith.constant dense<0.000000e+00> : vector<8x256xf32>
    %199 = tpu.matmul %172, %198, %cst_64 {dimension_numbers = #tpu.dot_dimension_numbers<[1], [0], [0], [1], [0, 0, 1, 1], [], []>} : vector<8x64xf32>, vector<64x256xf32>, vector<8x256xf32> -> vector<8x256xf32>
    %200 = arith.addf %197, %199 : vector<8x256xf32>
    %201 = arith.addf %200, %2 : vector<8x256xf32>
    %202 = math.tanh %201 : vector<8x256xf32>
    %203 = arith.mulf %23, %202 : vector<8x256xf32>
    %204 = arith.addf %203, %26 : vector<8x256xf32>
    %205 = vector.extract_strided_slice %204 {offsets = [0, 0], sizes = [8, 64], strides = [1, 1]} : vector<8x256xf32> to vector<8x64xf32>
    %206 = vector.extract_strided_slice %204 {offsets = [0, 64], sizes = [8, 64], strides = [1, 1]} : vector<8x256xf32> to vector<8x64xf32>
    %207 = vector.extract_strided_slice %204 {offsets = [0, 128], sizes = [8, 64], strides = [1, 1]} : vector<8x256xf32> to vector<8x64xf32>
    %208 = vector.extract_strided_slice %204 {offsets = [0, 192], sizes = [8, 64], strides = [1, 1]} : vector<8x256xf32> to vector<8x64xf32>
    %209 = arith.mulf %206, %170 : vector<8x64xf32>
    %210 = arith.mulf %205, %207 : vector<8x64xf32>
    %211 = arith.addf %209, %210 : vector<8x64xf32>
    %212 = math.tanh %211 : vector<8x64xf32>
    %213 = arith.mulf %208, %212 : vector<8x64xf32>
    %c0_65 = arith.constant 0 : index
    %c0_66 = arith.constant 0 : index
    %214 = vector.load %arg4[%c0_65, %c0_66] : memref<64x256xf32, #tpu.memory_space<vmem>>, vector<64x256xf32>
    %cst_67 = arith.constant dense<0.000000e+00> : vector<8x256xf32>
    %215 = tpu.matmul %213, %214, %cst_67 {dimension_numbers = #tpu.dot_dimension_numbers<[1], [0], [0], [1], [0, 0, 1, 1], [], []>} : vector<8x64xf32>, vector<64x256xf32>, vector<8x256xf32> -> vector<8x256xf32>
    %216 = arith.addf %215, %195 : vector<8x256xf32>
    %217 = math.tanh %216 : vector<8x256xf32>
    %218 = arith.mulf %23, %217 : vector<8x256xf32>
    %219 = arith.addf %218, %26 : vector<8x256xf32>
    %220 = vector.extract_strided_slice %219 {offsets = [0, 0], sizes = [8, 64], strides = [1, 1]} : vector<8x256xf32> to vector<8x64xf32>
    %221 = vector.extract_strided_slice %219 {offsets = [0, 64], sizes = [8, 64], strides = [1, 1]} : vector<8x256xf32> to vector<8x64xf32>
    %222 = vector.extract_strided_slice %219 {offsets = [0, 128], sizes = [8, 64], strides = [1, 1]} : vector<8x256xf32> to vector<8x64xf32>
    %223 = vector.extract_strided_slice %219 {offsets = [0, 192], sizes = [8, 64], strides = [1, 1]} : vector<8x256xf32> to vector<8x64xf32>
    %224 = arith.mulf %221, %185 : vector<8x64xf32>
    %225 = arith.mulf %220, %222 : vector<8x64xf32>
    %226 = arith.addf %224, %225 : vector<8x64xf32>
    %227 = math.tanh %226 : vector<8x64xf32>
    %228 = arith.mulf %223, %227 : vector<8x64xf32>
    %229 = arith.mulf %228, %11 : vector<8x64xf32>
    %cst_68 = arith.constant dense<0.000000e+00> : vector<8xf32>
    %230 = vector.multi_reduction <add>, %229, %cst_68 [1] : vector<8x64xf32> to vector<8xf32>
    %231 = vector.shape_cast %230 : vector<8xf32> to vector<8x1xf32>
    %232 = arith.addf %231, %14 : vector<8x1xf32>
    %c0_69 = arith.constant 0 : index
    %c5 = arith.constant 5 : index
    %233 = vector.load %arg0[%c0_69, %c5] : memref<8x16xf32, #tpu.memory_space<vmem>>, vector<8x1xf32>
    %c0_70 = arith.constant 0 : index
    %c0_71 = arith.constant 0 : index
    %234 = vector.load %arg5[%c0_70, %c0_71] : memref<64x256xf32, #tpu.memory_space<vmem>>, vector<64x256xf32>
    %cst_72 = arith.constant dense<0.000000e+00> : vector<8x256xf32>
    %235 = tpu.matmul %228, %234, %cst_72 {dimension_numbers = #tpu.dot_dimension_numbers<[1], [0], [0], [1], [0, 0, 1, 1], [], []>} : vector<8x64xf32>, vector<64x256xf32>, vector<8x256xf32> -> vector<8x256xf32>
    %236 = arith.addf %235, %5 : vector<8x256xf32>
    %237 = vector.broadcast %233 : vector<8x1xf32> to vector<8x256xf32>
    %238 = arith.mulf %237, %8 : vector<8x256xf32>
    %c0_73 = arith.constant 0 : index
    %c0_74 = arith.constant 0 : index
    %239 = vector.load %arg2[%c0_73, %c0_74] : memref<64x256xf32, #tpu.memory_space<vmem>>, vector<64x256xf32>
    %cst_75 = arith.constant dense<0.000000e+00> : vector<8x256xf32>
    %240 = tpu.matmul %213, %239, %cst_75 {dimension_numbers = #tpu.dot_dimension_numbers<[1], [0], [0], [1], [0, 0, 1, 1], [], []>} : vector<8x64xf32>, vector<64x256xf32>, vector<8x256xf32> -> vector<8x256xf32>
    %241 = arith.addf %238, %240 : vector<8x256xf32>
    %242 = arith.addf %241, %2 : vector<8x256xf32>
    %243 = math.tanh %242 : vector<8x256xf32>
    %244 = arith.mulf %23, %243 : vector<8x256xf32>
    %245 = arith.addf %244, %26 : vector<8x256xf32>
    %246 = vector.extract_strided_slice %245 {offsets = [0, 0], sizes = [8, 64], strides = [1, 1]} : vector<8x256xf32> to vector<8x64xf32>
    %247 = vector.extract_strided_slice %245 {offsets = [0, 64], sizes = [8, 64], strides = [1, 1]} : vector<8x256xf32> to vector<8x64xf32>
    %248 = vector.extract_strided_slice %245 {offsets = [0, 128], sizes = [8, 64], strides = [1, 1]} : vector<8x256xf32> to vector<8x64xf32>
    %249 = vector.extract_strided_slice %245 {offsets = [0, 192], sizes = [8, 64], strides = [1, 1]} : vector<8x256xf32> to vector<8x64xf32>
    %250 = arith.mulf %247, %211 : vector<8x64xf32>
    %251 = arith.mulf %246, %248 : vector<8x64xf32>
    %252 = arith.addf %250, %251 : vector<8x64xf32>
    %253 = math.tanh %252 : vector<8x64xf32>
    %254 = arith.mulf %249, %253 : vector<8x64xf32>
    %c0_76 = arith.constant 0 : index
    %c0_77 = arith.constant 0 : index
    %255 = vector.load %arg4[%c0_76, %c0_77] : memref<64x256xf32, #tpu.memory_space<vmem>>, vector<64x256xf32>
    %cst_78 = arith.constant dense<0.000000e+00> : vector<8x256xf32>
    %256 = tpu.matmul %254, %255, %cst_78 {dimension_numbers = #tpu.dot_dimension_numbers<[1], [0], [0], [1], [0, 0, 1, 1], [], []>} : vector<8x64xf32>, vector<64x256xf32>, vector<8x256xf32> -> vector<8x256xf32>
    %257 = arith.addf %256, %236 : vector<8x256xf32>
    %258 = math.tanh %257 : vector<8x256xf32>
    %259 = arith.mulf %23, %258 : vector<8x256xf32>
    %260 = arith.addf %259, %26 : vector<8x256xf32>
    %261 = vector.extract_strided_slice %260 {offsets = [0, 0], sizes = [8, 64], strides = [1, 1]} : vector<8x256xf32> to vector<8x64xf32>
    %262 = vector.extract_strided_slice %260 {offsets = [0, 64], sizes = [8, 64], strides = [1, 1]} : vector<8x256xf32> to vector<8x64xf32>
    %263 = vector.extract_strided_slice %260 {offsets = [0, 128], sizes = [8, 64], strides = [1, 1]} : vector<8x256xf32> to vector<8x64xf32>
    %264 = vector.extract_strided_slice %260 {offsets = [0, 192], sizes = [8, 64], strides = [1, 1]} : vector<8x256xf32> to vector<8x64xf32>
    %265 = arith.mulf %262, %226 : vector<8x64xf32>
    %266 = arith.mulf %261, %263 : vector<8x64xf32>
    %267 = arith.addf %265, %266 : vector<8x64xf32>
    %268 = math.tanh %267 : vector<8x64xf32>
    %269 = arith.mulf %264, %268 : vector<8x64xf32>
    %270 = arith.mulf %269, %11 : vector<8x64xf32>
    %cst_79 = arith.constant dense<0.000000e+00> : vector<8xf32>
    %271 = vector.multi_reduction <add>, %270, %cst_79 [1] : vector<8x64xf32> to vector<8xf32>
    %272 = vector.shape_cast %271 : vector<8xf32> to vector<8x1xf32>
    %273 = arith.addf %272, %14 : vector<8x1xf32>
    %c0_80 = arith.constant 0 : index
    %c6 = arith.constant 6 : index
    %274 = vector.load %arg0[%c0_80, %c6] : memref<8x16xf32, #tpu.memory_space<vmem>>, vector<8x1xf32>
    %c0_81 = arith.constant 0 : index
    %c0_82 = arith.constant 0 : index
    %275 = vector.load %arg5[%c0_81, %c0_82] : memref<64x256xf32, #tpu.memory_space<vmem>>, vector<64x256xf32>
    %cst_83 = arith.constant dense<0.000000e+00> : vector<8x256xf32>
    %276 = tpu.matmul %269, %275, %cst_83 {dimension_numbers = #tpu.dot_dimension_numbers<[1], [0], [0], [1], [0, 0, 1, 1], [], []>} : vector<8x64xf32>, vector<64x256xf32>, vector<8x256xf32> -> vector<8x256xf32>
    %277 = arith.addf %276, %5 : vector<8x256xf32>
    %278 = vector.broadcast %274 : vector<8x1xf32> to vector<8x256xf32>
    %279 = arith.mulf %278, %8 : vector<8x256xf32>
    %c0_84 = arith.constant 0 : index
    %c0_85 = arith.constant 0 : index
    %280 = vector.load %arg2[%c0_84, %c0_85] : memref<64x256xf32, #tpu.memory_space<vmem>>, vector<64x256xf32>
    %cst_86 = arith.constant dense<0.000000e+00> : vector<8x256xf32>
    %281 = tpu.matmul %254, %280, %cst_86 {dimension_numbers = #tpu.dot_dimension_numbers<[1], [0], [0], [1], [0, 0, 1, 1], [], []>} : vector<8x64xf32>, vector<64x256xf32>, vector<8x256xf32> -> vector<8x256xf32>
    %282 = arith.addf %279, %281 : vector<8x256xf32>
    %283 = arith.addf %282, %2 : vector<8x256xf32>
    %284 = math.tanh %283 : vector<8x256xf32>
    %285 = arith.mulf %23, %284 : vector<8x256xf32>
    %286 = arith.addf %285, %26 : vector<8x256xf32>
    %287 = vector.extract_strided_slice %286 {offsets = [0, 0], sizes = [8, 64], strides = [1, 1]} : vector<8x256xf32> to vector<8x64xf32>
    %288 = vector.extract_strided_slice %286 {offsets = [0, 64], sizes = [8, 64], strides = [1, 1]} : vector<8x256xf32> to vector<8x64xf32>
    %289 = vector.extract_strided_slice %286 {offsets = [0, 128], sizes = [8, 64], strides = [1, 1]} : vector<8x256xf32> to vector<8x64xf32>
    %290 = vector.extract_strided_slice %286 {offsets = [0, 192], sizes = [8, 64], strides = [1, 1]} : vector<8x256xf32> to vector<8x64xf32>
    %291 = arith.mulf %288, %252 : vector<8x64xf32>
    %292 = arith.mulf %287, %289 : vector<8x64xf32>
    %293 = arith.addf %291, %292 : vector<8x64xf32>
    %294 = math.tanh %293 : vector<8x64xf32>
    %295 = arith.mulf %290, %294 : vector<8x64xf32>
    %c0_87 = arith.constant 0 : index
    %c0_88 = arith.constant 0 : index
    %296 = vector.load %arg4[%c0_87, %c0_88] : memref<64x256xf32, #tpu.memory_space<vmem>>, vector<64x256xf32>
    %cst_89 = arith.constant dense<0.000000e+00> : vector<8x256xf32>
    %297 = tpu.matmul %295, %296, %cst_89 {dimension_numbers = #tpu.dot_dimension_numbers<[1], [0], [0], [1], [0, 0, 1, 1], [], []>} : vector<8x64xf32>, vector<64x256xf32>, vector<8x256xf32> -> vector<8x256xf32>
    %298 = arith.addf %297, %277 : vector<8x256xf32>
    %299 = math.tanh %298 : vector<8x256xf32>
    %300 = arith.mulf %23, %299 : vector<8x256xf32>
    %301 = arith.addf %300, %26 : vector<8x256xf32>
    %302 = vector.extract_strided_slice %301 {offsets = [0, 0], sizes = [8, 64], strides = [1, 1]} : vector<8x256xf32> to vector<8x64xf32>
    %303 = vector.extract_strided_slice %301 {offsets = [0, 64], sizes = [8, 64], strides = [1, 1]} : vector<8x256xf32> to vector<8x64xf32>
    %304 = vector.extract_strided_slice %301 {offsets = [0, 128], sizes = [8, 64], strides = [1, 1]} : vector<8x256xf32> to vector<8x64xf32>
    %305 = vector.extract_strided_slice %301 {offsets = [0, 192], sizes = [8, 64], strides = [1, 1]} : vector<8x256xf32> to vector<8x64xf32>
    %306 = arith.mulf %303, %267 : vector<8x64xf32>
    %307 = arith.mulf %302, %304 : vector<8x64xf32>
    %308 = arith.addf %306, %307 : vector<8x64xf32>
    %309 = math.tanh %308 : vector<8x64xf32>
    %310 = arith.mulf %305, %309 : vector<8x64xf32>
    %311 = arith.mulf %310, %11 : vector<8x64xf32>
    %cst_90 = arith.constant dense<0.000000e+00> : vector<8xf32>
    %312 = vector.multi_reduction <add>, %311, %cst_90 [1] : vector<8x64xf32> to vector<8xf32>
    %313 = vector.shape_cast %312 : vector<8xf32> to vector<8x1xf32>
    %314 = arith.addf %313, %14 : vector<8x1xf32>
    %c0_91 = arith.constant 0 : index
    %c7 = arith.constant 7 : index
    %315 = vector.load %arg0[%c0_91, %c7] : memref<8x16xf32, #tpu.memory_space<vmem>>, vector<8x1xf32>
    %c0_92 = arith.constant 0 : index
    %c0_93 = arith.constant 0 : index
    %316 = vector.load %arg5[%c0_92, %c0_93] : memref<64x256xf32, #tpu.memory_space<vmem>>, vector<64x256xf32>
    %cst_94 = arith.constant dense<0.000000e+00> : vector<8x256xf32>
    %317 = tpu.matmul %310, %316, %cst_94 {dimension_numbers = #tpu.dot_dimension_numbers<[1], [0], [0], [1], [0, 0, 1, 1], [], []>} : vector<8x64xf32>, vector<64x256xf32>, vector<8x256xf32> -> vector<8x256xf32>
    %318 = arith.addf %317, %5 : vector<8x256xf32>
    %319 = vector.broadcast %315 : vector<8x1xf32> to vector<8x256xf32>
    %320 = arith.mulf %319, %8 : vector<8x256xf32>
    %c0_95 = arith.constant 0 : index
    %c0_96 = arith.constant 0 : index
    %321 = vector.load %arg2[%c0_95, %c0_96] : memref<64x256xf32, #tpu.memory_space<vmem>>, vector<64x256xf32>
    %cst_97 = arith.constant dense<0.000000e+00> : vector<8x256xf32>
    %322 = tpu.matmul %295, %321, %cst_97 {dimension_numbers = #tpu.dot_dimension_numbers<[1], [0], [0], [1], [0, 0, 1, 1], [], []>} : vector<8x64xf32>, vector<64x256xf32>, vector<8x256xf32> -> vector<8x256xf32>
    %323 = arith.addf %320, %322 : vector<8x256xf32>
    %324 = arith.addf %323, %2 : vector<8x256xf32>
    %325 = math.tanh %324 : vector<8x256xf32>
    %326 = arith.mulf %23, %325 : vector<8x256xf32>
    %327 = arith.addf %326, %26 : vector<8x256xf32>
    %328 = vector.extract_strided_slice %327 {offsets = [0, 0], sizes = [8, 64], strides = [1, 1]} : vector<8x256xf32> to vector<8x64xf32>
    %329 = vector.extract_strided_slice %327 {offsets = [0, 64], sizes = [8, 64], strides = [1, 1]} : vector<8x256xf32> to vector<8x64xf32>
    %330 = vector.extract_strided_slice %327 {offsets = [0, 128], sizes = [8, 64], strides = [1, 1]} : vector<8x256xf32> to vector<8x64xf32>
    %331 = vector.extract_strided_slice %327 {offsets = [0, 192], sizes = [8, 64], strides = [1, 1]} : vector<8x256xf32> to vector<8x64xf32>
    %332 = arith.mulf %329, %293 : vector<8x64xf32>
    %333 = arith.mulf %328, %330 : vector<8x64xf32>
    %334 = arith.addf %332, %333 : vector<8x64xf32>
    %335 = math.tanh %334 : vector<8x64xf32>
    %336 = arith.mulf %331, %335 : vector<8x64xf32>
    %c0_98 = arith.constant 0 : index
    %c0_99 = arith.constant 0 : index
    %337 = vector.load %arg4[%c0_98, %c0_99] : memref<64x256xf32, #tpu.memory_space<vmem>>, vector<64x256xf32>
    %cst_100 = arith.constant dense<0.000000e+00> : vector<8x256xf32>
    %338 = tpu.matmul %336, %337, %cst_100 {dimension_numbers = #tpu.dot_dimension_numbers<[1], [0], [0], [1], [0, 0, 1, 1], [], []>} : vector<8x64xf32>, vector<64x256xf32>, vector<8x256xf32> -> vector<8x256xf32>
    %339 = arith.addf %338, %318 : vector<8x256xf32>
    %340 = math.tanh %339 : vector<8x256xf32>
    %341 = arith.mulf %23, %340 : vector<8x256xf32>
    %342 = arith.addf %341, %26 : vector<8x256xf32>
    %343 = vector.extract_strided_slice %342 {offsets = [0, 0], sizes = [8, 64], strides = [1, 1]} : vector<8x256xf32> to vector<8x64xf32>
    %344 = vector.extract_strided_slice %342 {offsets = [0, 64], sizes = [8, 64], strides = [1, 1]} : vector<8x256xf32> to vector<8x64xf32>
    %345 = vector.extract_strided_slice %342 {offsets = [0, 128], sizes = [8, 64], strides = [1, 1]} : vector<8x256xf32> to vector<8x64xf32>
    %346 = vector.extract_strided_slice %342 {offsets = [0, 192], sizes = [8, 64], strides = [1, 1]} : vector<8x256xf32> to vector<8x64xf32>
    %347 = arith.mulf %344, %308 : vector<8x64xf32>
    %348 = arith.mulf %343, %345 : vector<8x64xf32>
    %349 = arith.addf %347, %348 : vector<8x64xf32>
    %350 = math.tanh %349 : vector<8x64xf32>
    %351 = arith.mulf %346, %350 : vector<8x64xf32>
    %352 = arith.mulf %351, %11 : vector<8x64xf32>
    %cst_101 = arith.constant dense<0.000000e+00> : vector<8xf32>
    %353 = vector.multi_reduction <add>, %352, %cst_101 [1] : vector<8x64xf32> to vector<8xf32>
    %354 = vector.shape_cast %353 : vector<8xf32> to vector<8x1xf32>
    %355 = arith.addf %354, %14 : vector<8x1xf32>
    %c0_102 = arith.constant 0 : index
    %c8 = arith.constant 8 : index
    %356 = vector.load %arg0[%c0_102, %c8] : memref<8x16xf32, #tpu.memory_space<vmem>>, vector<8x1xf32>
    %c0_103 = arith.constant 0 : index
    %c0_104 = arith.constant 0 : index
    %357 = vector.load %arg5[%c0_103, %c0_104] : memref<64x256xf32, #tpu.memory_space<vmem>>, vector<64x256xf32>
    %cst_105 = arith.constant dense<0.000000e+00> : vector<8x256xf32>
    %358 = tpu.matmul %351, %357, %cst_105 {dimension_numbers = #tpu.dot_dimension_numbers<[1], [0], [0], [1], [0, 0, 1, 1], [], []>} : vector<8x64xf32>, vector<64x256xf32>, vector<8x256xf32> -> vector<8x256xf32>
    %359 = arith.addf %358, %5 : vector<8x256xf32>
    %360 = vector.broadcast %356 : vector<8x1xf32> to vector<8x256xf32>
    %361 = arith.mulf %360, %8 : vector<8x256xf32>
    %c0_106 = arith.constant 0 : index
    %c0_107 = arith.constant 0 : index
    %362 = vector.load %arg2[%c0_106, %c0_107] : memref<64x256xf32, #tpu.memory_space<vmem>>, vector<64x256xf32>
    %cst_108 = arith.constant dense<0.000000e+00> : vector<8x256xf32>
    %363 = tpu.matmul %336, %362, %cst_108 {dimension_numbers = #tpu.dot_dimension_numbers<[1], [0], [0], [1], [0, 0, 1, 1], [], []>} : vector<8x64xf32>, vector<64x256xf32>, vector<8x256xf32> -> vector<8x256xf32>
    %364 = arith.addf %361, %363 : vector<8x256xf32>
    %365 = arith.addf %364, %2 : vector<8x256xf32>
    %366 = math.tanh %365 : vector<8x256xf32>
    %367 = arith.mulf %23, %366 : vector<8x256xf32>
    %368 = arith.addf %367, %26 : vector<8x256xf32>
    %369 = vector.extract_strided_slice %368 {offsets = [0, 0], sizes = [8, 64], strides = [1, 1]} : vector<8x256xf32> to vector<8x64xf32>
    %370 = vector.extract_strided_slice %368 {offsets = [0, 64], sizes = [8, 64], strides = [1, 1]} : vector<8x256xf32> to vector<8x64xf32>
    %371 = vector.extract_strided_slice %368 {offsets = [0, 128], sizes = [8, 64], strides = [1, 1]} : vector<8x256xf32> to vector<8x64xf32>
    %372 = vector.extract_strided_slice %368 {offsets = [0, 192], sizes = [8, 64], strides = [1, 1]} : vector<8x256xf32> to vector<8x64xf32>
    %373 = arith.mulf %370, %334 : vector<8x64xf32>
    %374 = arith.mulf %369, %371 : vector<8x64xf32>
    %375 = arith.addf %373, %374 : vector<8x64xf32>
    %376 = math.tanh %375 : vector<8x64xf32>
    %377 = arith.mulf %372, %376 : vector<8x64xf32>
    %c0_109 = arith.constant 0 : index
    %c0_110 = arith.constant 0 : index
    %378 = vector.load %arg4[%c0_109, %c0_110] : memref<64x256xf32, #tpu.memory_space<vmem>>, vector<64x256xf32>
    %cst_111 = arith.constant dense<0.000000e+00> : vector<8x256xf32>
    %379 = tpu.matmul %377, %378, %cst_111 {dimension_numbers = #tpu.dot_dimension_numbers<[1], [0], [0], [1], [0, 0, 1, 1], [], []>} : vector<8x64xf32>, vector<64x256xf32>, vector<8x256xf32> -> vector<8x256xf32>
    %380 = arith.addf %379, %359 : vector<8x256xf32>
    %381 = math.tanh %380 : vector<8x256xf32>
    %382 = arith.mulf %23, %381 : vector<8x256xf32>
    %383 = arith.addf %382, %26 : vector<8x256xf32>
    %384 = vector.extract_strided_slice %383 {offsets = [0, 0], sizes = [8, 64], strides = [1, 1]} : vector<8x256xf32> to vector<8x64xf32>
    %385 = vector.extract_strided_slice %383 {offsets = [0, 64], sizes = [8, 64], strides = [1, 1]} : vector<8x256xf32> to vector<8x64xf32>
    %386 = vector.extract_strided_slice %383 {offsets = [0, 128], sizes = [8, 64], strides = [1, 1]} : vector<8x256xf32> to vector<8x64xf32>
    %387 = vector.extract_strided_slice %383 {offsets = [0, 192], sizes = [8, 64], strides = [1, 1]} : vector<8x256xf32> to vector<8x64xf32>
    %388 = arith.mulf %385, %349 : vector<8x64xf32>
    %389 = arith.mulf %384, %386 : vector<8x64xf32>
    %390 = arith.addf %388, %389 : vector<8x64xf32>
    %391 = math.tanh %390 : vector<8x64xf32>
    %392 = arith.mulf %387, %391 : vector<8x64xf32>
    %393 = arith.mulf %392, %11 : vector<8x64xf32>
    %cst_112 = arith.constant dense<0.000000e+00> : vector<8xf32>
    %394 = vector.multi_reduction <add>, %393, %cst_112 [1] : vector<8x64xf32> to vector<8xf32>
    %395 = vector.shape_cast %394 : vector<8xf32> to vector<8x1xf32>
    %396 = arith.addf %395, %14 : vector<8x1xf32>
    %c0_113 = arith.constant 0 : index
    %c9 = arith.constant 9 : index
    %397 = vector.load %arg0[%c0_113, %c9] : memref<8x16xf32, #tpu.memory_space<vmem>>, vector<8x1xf32>
    %c0_114 = arith.constant 0 : index
    %c0_115 = arith.constant 0 : index
    %398 = vector.load %arg5[%c0_114, %c0_115] : memref<64x256xf32, #tpu.memory_space<vmem>>, vector<64x256xf32>
    %cst_116 = arith.constant dense<0.000000e+00> : vector<8x256xf32>
    %399 = tpu.matmul %392, %398, %cst_116 {dimension_numbers = #tpu.dot_dimension_numbers<[1], [0], [0], [1], [0, 0, 1, 1], [], []>} : vector<8x64xf32>, vector<64x256xf32>, vector<8x256xf32> -> vector<8x256xf32>
    %400 = arith.addf %399, %5 : vector<8x256xf32>
    %401 = vector.broadcast %397 : vector<8x1xf32> to vector<8x256xf32>
    %402 = arith.mulf %401, %8 : vector<8x256xf32>
    %c0_117 = arith.constant 0 : index
    %c0_118 = arith.constant 0 : index
    %403 = vector.load %arg2[%c0_117, %c0_118] : memref<64x256xf32, #tpu.memory_space<vmem>>, vector<64x256xf32>
    %cst_119 = arith.constant dense<0.000000e+00> : vector<8x256xf32>
    %404 = tpu.matmul %377, %403, %cst_119 {dimension_numbers = #tpu.dot_dimension_numbers<[1], [0], [0], [1], [0, 0, 1, 1], [], []>} : vector<8x64xf32>, vector<64x256xf32>, vector<8x256xf32> -> vector<8x256xf32>
    %405 = arith.addf %402, %404 : vector<8x256xf32>
    %406 = arith.addf %405, %2 : vector<8x256xf32>
    %407 = math.tanh %406 : vector<8x256xf32>
    %408 = arith.mulf %23, %407 : vector<8x256xf32>
    %409 = arith.addf %408, %26 : vector<8x256xf32>
    %410 = vector.extract_strided_slice %409 {offsets = [0, 0], sizes = [8, 64], strides = [1, 1]} : vector<8x256xf32> to vector<8x64xf32>
    %411 = vector.extract_strided_slice %409 {offsets = [0, 64], sizes = [8, 64], strides = [1, 1]} : vector<8x256xf32> to vector<8x64xf32>
    %412 = vector.extract_strided_slice %409 {offsets = [0, 128], sizes = [8, 64], strides = [1, 1]} : vector<8x256xf32> to vector<8x64xf32>
    %413 = vector.extract_strided_slice %409 {offsets = [0, 192], sizes = [8, 64], strides = [1, 1]} : vector<8x256xf32> to vector<8x64xf32>
    %414 = arith.mulf %411, %375 : vector<8x64xf32>
    %415 = arith.mulf %410, %412 : vector<8x64xf32>
    %416 = arith.addf %414, %415 : vector<8x64xf32>
    %417 = math.tanh %416 : vector<8x64xf32>
    %418 = arith.mulf %413, %417 : vector<8x64xf32>
    %c0_120 = arith.constant 0 : index
    %c0_121 = arith.constant 0 : index
    %419 = vector.load %arg4[%c0_120, %c0_121] : memref<64x256xf32, #tpu.memory_space<vmem>>, vector<64x256xf32>
    %cst_122 = arith.constant dense<0.000000e+00> : vector<8x256xf32>
    %420 = tpu.matmul %418, %419, %cst_122 {dimension_numbers = #tpu.dot_dimension_numbers<[1], [0], [0], [1], [0, 0, 1, 1], [], []>} : vector<8x64xf32>, vector<64x256xf32>, vector<8x256xf32> -> vector<8x256xf32>
    %421 = arith.addf %420, %400 : vector<8x256xf32>
    %422 = math.tanh %421 : vector<8x256xf32>
    %423 = arith.mulf %23, %422 : vector<8x256xf32>
    %424 = arith.addf %423, %26 : vector<8x256xf32>
    %425 = vector.extract_strided_slice %424 {offsets = [0, 0], sizes = [8, 64], strides = [1, 1]} : vector<8x256xf32> to vector<8x64xf32>
    %426 = vector.extract_strided_slice %424 {offsets = [0, 64], sizes = [8, 64], strides = [1, 1]} : vector<8x256xf32> to vector<8x64xf32>
    %427 = vector.extract_strided_slice %424 {offsets = [0, 128], sizes = [8, 64], strides = [1, 1]} : vector<8x256xf32> to vector<8x64xf32>
    %428 = vector.extract_strided_slice %424 {offsets = [0, 192], sizes = [8, 64], strides = [1, 1]} : vector<8x256xf32> to vector<8x64xf32>
    %429 = arith.mulf %426, %390 : vector<8x64xf32>
    %430 = arith.mulf %425, %427 : vector<8x64xf32>
    %431 = arith.addf %429, %430 : vector<8x64xf32>
    %432 = math.tanh %431 : vector<8x64xf32>
    %433 = arith.mulf %428, %432 : vector<8x64xf32>
    %434 = arith.mulf %433, %11 : vector<8x64xf32>
    %cst_123 = arith.constant dense<0.000000e+00> : vector<8xf32>
    %435 = vector.multi_reduction <add>, %434, %cst_123 [1] : vector<8x64xf32> to vector<8xf32>
    %436 = vector.shape_cast %435 : vector<8xf32> to vector<8x1xf32>
    %437 = arith.addf %436, %14 : vector<8x1xf32>
    %c0_124 = arith.constant 0 : index
    %c10 = arith.constant 10 : index
    %438 = vector.load %arg0[%c0_124, %c10] : memref<8x16xf32, #tpu.memory_space<vmem>>, vector<8x1xf32>
    %c0_125 = arith.constant 0 : index
    %c0_126 = arith.constant 0 : index
    %439 = vector.load %arg5[%c0_125, %c0_126] : memref<64x256xf32, #tpu.memory_space<vmem>>, vector<64x256xf32>
    %cst_127 = arith.constant dense<0.000000e+00> : vector<8x256xf32>
    %440 = tpu.matmul %433, %439, %cst_127 {dimension_numbers = #tpu.dot_dimension_numbers<[1], [0], [0], [1], [0, 0, 1, 1], [], []>} : vector<8x64xf32>, vector<64x256xf32>, vector<8x256xf32> -> vector<8x256xf32>
    %441 = arith.addf %440, %5 : vector<8x256xf32>
    %442 = vector.broadcast %438 : vector<8x1xf32> to vector<8x256xf32>
    %443 = arith.mulf %442, %8 : vector<8x256xf32>
    %c0_128 = arith.constant 0 : index
    %c0_129 = arith.constant 0 : index
    %444 = vector.load %arg2[%c0_128, %c0_129] : memref<64x256xf32, #tpu.memory_space<vmem>>, vector<64x256xf32>
    %cst_130 = arith.constant dense<0.000000e+00> : vector<8x256xf32>
    %445 = tpu.matmul %418, %444, %cst_130 {dimension_numbers = #tpu.dot_dimension_numbers<[1], [0], [0], [1], [0, 0, 1, 1], [], []>} : vector<8x64xf32>, vector<64x256xf32>, vector<8x256xf32> -> vector<8x256xf32>
    %446 = arith.addf %443, %445 : vector<8x256xf32>
    %447 = arith.addf %446, %2 : vector<8x256xf32>
    %448 = math.tanh %447 : vector<8x256xf32>
    %449 = arith.mulf %23, %448 : vector<8x256xf32>
    %450 = arith.addf %449, %26 : vector<8x256xf32>
    %451 = vector.extract_strided_slice %450 {offsets = [0, 0], sizes = [8, 64], strides = [1, 1]} : vector<8x256xf32> to vector<8x64xf32>
    %452 = vector.extract_strided_slice %450 {offsets = [0, 64], sizes = [8, 64], strides = [1, 1]} : vector<8x256xf32> to vector<8x64xf32>
    %453 = vector.extract_strided_slice %450 {offsets = [0, 128], sizes = [8, 64], strides = [1, 1]} : vector<8x256xf32> to vector<8x64xf32>
    %454 = vector.extract_strided_slice %450 {offsets = [0, 192], sizes = [8, 64], strides = [1, 1]} : vector<8x256xf32> to vector<8x64xf32>
    %455 = arith.mulf %452, %416 : vector<8x64xf32>
    %456 = arith.mulf %451, %453 : vector<8x64xf32>
    %457 = arith.addf %455, %456 : vector<8x64xf32>
    %458 = math.tanh %457 : vector<8x64xf32>
    %459 = arith.mulf %454, %458 : vector<8x64xf32>
    %c0_131 = arith.constant 0 : index
    %c0_132 = arith.constant 0 : index
    %460 = vector.load %arg4[%c0_131, %c0_132] : memref<64x256xf32, #tpu.memory_space<vmem>>, vector<64x256xf32>
    %cst_133 = arith.constant dense<0.000000e+00> : vector<8x256xf32>
    %461 = tpu.matmul %459, %460, %cst_133 {dimension_numbers = #tpu.dot_dimension_numbers<[1], [0], [0], [1], [0, 0, 1, 1], [], []>} : vector<8x64xf32>, vector<64x256xf32>, vector<8x256xf32> -> vector<8x256xf32>
    %462 = arith.addf %461, %441 : vector<8x256xf32>
    %463 = math.tanh %462 : vector<8x256xf32>
    %464 = arith.mulf %23, %463 : vector<8x256xf32>
    %465 = arith.addf %464, %26 : vector<8x256xf32>
    %466 = vector.extract_strided_slice %465 {offsets = [0, 0], sizes = [8, 64], strides = [1, 1]} : vector<8x256xf32> to vector<8x64xf32>
    %467 = vector.extract_strided_slice %465 {offsets = [0, 64], sizes = [8, 64], strides = [1, 1]} : vector<8x256xf32> to vector<8x64xf32>
    %468 = vector.extract_strided_slice %465 {offsets = [0, 128], sizes = [8, 64], strides = [1, 1]} : vector<8x256xf32> to vector<8x64xf32>
    %469 = vector.extract_strided_slice %465 {offsets = [0, 192], sizes = [8, 64], strides = [1, 1]} : vector<8x256xf32> to vector<8x64xf32>
    %470 = arith.mulf %467, %431 : vector<8x64xf32>
    %471 = arith.mulf %466, %468 : vector<8x64xf32>
    %472 = arith.addf %470, %471 : vector<8x64xf32>
    %473 = math.tanh %472 : vector<8x64xf32>
    %474 = arith.mulf %469, %473 : vector<8x64xf32>
    %475 = arith.mulf %474, %11 : vector<8x64xf32>
    %cst_134 = arith.constant dense<0.000000e+00> : vector<8xf32>
    %476 = vector.multi_reduction <add>, %475, %cst_134 [1] : vector<8x64xf32> to vector<8xf32>
    %477 = vector.shape_cast %476 : vector<8xf32> to vector<8x1xf32>
    %478 = arith.addf %477, %14 : vector<8x1xf32>
    %c0_135 = arith.constant 0 : index
    %c11 = arith.constant 11 : index
    %479 = vector.load %arg0[%c0_135, %c11] : memref<8x16xf32, #tpu.memory_space<vmem>>, vector<8x1xf32>
    %c0_136 = arith.constant 0 : index
    %c0_137 = arith.constant 0 : index
    %480 = vector.load %arg5[%c0_136, %c0_137] : memref<64x256xf32, #tpu.memory_space<vmem>>, vector<64x256xf32>
    %cst_138 = arith.constant dense<0.000000e+00> : vector<8x256xf32>
    %481 = tpu.matmul %474, %480, %cst_138 {dimension_numbers = #tpu.dot_dimension_numbers<[1], [0], [0], [1], [0, 0, 1, 1], [], []>} : vector<8x64xf32>, vector<64x256xf32>, vector<8x256xf32> -> vector<8x256xf32>
    %482 = arith.addf %481, %5 : vector<8x256xf32>
    %483 = vector.broadcast %479 : vector<8x1xf32> to vector<8x256xf32>
    %484 = arith.mulf %483, %8 : vector<8x256xf32>
    %c0_139 = arith.constant 0 : index
    %c0_140 = arith.constant 0 : index
    %485 = vector.load %arg2[%c0_139, %c0_140] : memref<64x256xf32, #tpu.memory_space<vmem>>, vector<64x256xf32>
    %cst_141 = arith.constant dense<0.000000e+00> : vector<8x256xf32>
    %486 = tpu.matmul %459, %485, %cst_141 {dimension_numbers = #tpu.dot_dimension_numbers<[1], [0], [0], [1], [0, 0, 1, 1], [], []>} : vector<8x64xf32>, vector<64x256xf32>, vector<8x256xf32> -> vector<8x256xf32>
    %487 = arith.addf %484, %486 : vector<8x256xf32>
    %488 = arith.addf %487, %2 : vector<8x256xf32>
    %489 = math.tanh %488 : vector<8x256xf32>
    %490 = arith.mulf %23, %489 : vector<8x256xf32>
    %491 = arith.addf %490, %26 : vector<8x256xf32>
    %492 = vector.extract_strided_slice %491 {offsets = [0, 0], sizes = [8, 64], strides = [1, 1]} : vector<8x256xf32> to vector<8x64xf32>
    %493 = vector.extract_strided_slice %491 {offsets = [0, 64], sizes = [8, 64], strides = [1, 1]} : vector<8x256xf32> to vector<8x64xf32>
    %494 = vector.extract_strided_slice %491 {offsets = [0, 128], sizes = [8, 64], strides = [1, 1]} : vector<8x256xf32> to vector<8x64xf32>
    %495 = vector.extract_strided_slice %491 {offsets = [0, 192], sizes = [8, 64], strides = [1, 1]} : vector<8x256xf32> to vector<8x64xf32>
    %496 = arith.mulf %493, %457 : vector<8x64xf32>
    %497 = arith.mulf %492, %494 : vector<8x64xf32>
    %498 = arith.addf %496, %497 : vector<8x64xf32>
    %499 = math.tanh %498 : vector<8x64xf32>
    %500 = arith.mulf %495, %499 : vector<8x64xf32>
    %c0_142 = arith.constant 0 : index
    %c0_143 = arith.constant 0 : index
    %501 = vector.load %arg4[%c0_142, %c0_143] : memref<64x256xf32, #tpu.memory_space<vmem>>, vector<64x256xf32>
    %cst_144 = arith.constant dense<0.000000e+00> : vector<8x256xf32>
    %502 = tpu.matmul %500, %501, %cst_144 {dimension_numbers = #tpu.dot_dimension_numbers<[1], [0], [0], [1], [0, 0, 1, 1], [], []>} : vector<8x64xf32>, vector<64x256xf32>, vector<8x256xf32> -> vector<8x256xf32>
    %503 = arith.addf %502, %482 : vector<8x256xf32>
    %504 = math.tanh %503 : vector<8x256xf32>
    %505 = arith.mulf %23, %504 : vector<8x256xf32>
    %506 = arith.addf %505, %26 : vector<8x256xf32>
    %507 = vector.extract_strided_slice %506 {offsets = [0, 0], sizes = [8, 64], strides = [1, 1]} : vector<8x256xf32> to vector<8x64xf32>
    %508 = vector.extract_strided_slice %506 {offsets = [0, 64], sizes = [8, 64], strides = [1, 1]} : vector<8x256xf32> to vector<8x64xf32>
    %509 = vector.extract_strided_slice %506 {offsets = [0, 128], sizes = [8, 64], strides = [1, 1]} : vector<8x256xf32> to vector<8x64xf32>
    %510 = vector.extract_strided_slice %506 {offsets = [0, 192], sizes = [8, 64], strides = [1, 1]} : vector<8x256xf32> to vector<8x64xf32>
    %511 = arith.mulf %508, %472 : vector<8x64xf32>
    %512 = arith.mulf %507, %509 : vector<8x64xf32>
    %513 = arith.addf %511, %512 : vector<8x64xf32>
    %514 = math.tanh %513 : vector<8x64xf32>
    %515 = arith.mulf %510, %514 : vector<8x64xf32>
    %516 = arith.mulf %515, %11 : vector<8x64xf32>
    %cst_145 = arith.constant dense<0.000000e+00> : vector<8xf32>
    %517 = vector.multi_reduction <add>, %516, %cst_145 [1] : vector<8x64xf32> to vector<8xf32>
    %518 = vector.shape_cast %517 : vector<8xf32> to vector<8x1xf32>
    %519 = arith.addf %518, %14 : vector<8x1xf32>
    %c0_146 = arith.constant 0 : index
    %c12 = arith.constant 12 : index
    %520 = vector.load %arg0[%c0_146, %c12] : memref<8x16xf32, #tpu.memory_space<vmem>>, vector<8x1xf32>
    %c0_147 = arith.constant 0 : index
    %c0_148 = arith.constant 0 : index
    %521 = vector.load %arg5[%c0_147, %c0_148] : memref<64x256xf32, #tpu.memory_space<vmem>>, vector<64x256xf32>
    %cst_149 = arith.constant dense<0.000000e+00> : vector<8x256xf32>
    %522 = tpu.matmul %515, %521, %cst_149 {dimension_numbers = #tpu.dot_dimension_numbers<[1], [0], [0], [1], [0, 0, 1, 1], [], []>} : vector<8x64xf32>, vector<64x256xf32>, vector<8x256xf32> -> vector<8x256xf32>
    %523 = arith.addf %522, %5 : vector<8x256xf32>
    %524 = vector.broadcast %520 : vector<8x1xf32> to vector<8x256xf32>
    %525 = arith.mulf %524, %8 : vector<8x256xf32>
    %c0_150 = arith.constant 0 : index
    %c0_151 = arith.constant 0 : index
    %526 = vector.load %arg2[%c0_150, %c0_151] : memref<64x256xf32, #tpu.memory_space<vmem>>, vector<64x256xf32>
    %cst_152 = arith.constant dense<0.000000e+00> : vector<8x256xf32>
    %527 = tpu.matmul %500, %526, %cst_152 {dimension_numbers = #tpu.dot_dimension_numbers<[1], [0], [0], [1], [0, 0, 1, 1], [], []>} : vector<8x64xf32>, vector<64x256xf32>, vector<8x256xf32> -> vector<8x256xf32>
    %528 = arith.addf %525, %527 : vector<8x256xf32>
    %529 = arith.addf %528, %2 : vector<8x256xf32>
    %530 = math.tanh %529 : vector<8x256xf32>
    %531 = arith.mulf %23, %530 : vector<8x256xf32>
    %532 = arith.addf %531, %26 : vector<8x256xf32>
    %533 = vector.extract_strided_slice %532 {offsets = [0, 0], sizes = [8, 64], strides = [1, 1]} : vector<8x256xf32> to vector<8x64xf32>
    %534 = vector.extract_strided_slice %532 {offsets = [0, 64], sizes = [8, 64], strides = [1, 1]} : vector<8x256xf32> to vector<8x64xf32>
    %535 = vector.extract_strided_slice %532 {offsets = [0, 128], sizes = [8, 64], strides = [1, 1]} : vector<8x256xf32> to vector<8x64xf32>
    %536 = vector.extract_strided_slice %532 {offsets = [0, 192], sizes = [8, 64], strides = [1, 1]} : vector<8x256xf32> to vector<8x64xf32>
    %537 = arith.mulf %534, %498 : vector<8x64xf32>
    %538 = arith.mulf %533, %535 : vector<8x64xf32>
    %539 = arith.addf %537, %538 : vector<8x64xf32>
    %540 = math.tanh %539 : vector<8x64xf32>
    %541 = arith.mulf %536, %540 : vector<8x64xf32>
    %c0_153 = arith.constant 0 : index
    %c0_154 = arith.constant 0 : index
    %542 = vector.load %arg4[%c0_153, %c0_154] : memref<64x256xf32, #tpu.memory_space<vmem>>, vector<64x256xf32>
    %cst_155 = arith.constant dense<0.000000e+00> : vector<8x256xf32>
    %543 = tpu.matmul %541, %542, %cst_155 {dimension_numbers = #tpu.dot_dimension_numbers<[1], [0], [0], [1], [0, 0, 1, 1], [], []>} : vector<8x64xf32>, vector<64x256xf32>, vector<8x256xf32> -> vector<8x256xf32>
    %544 = arith.addf %543, %523 : vector<8x256xf32>
    %545 = math.tanh %544 : vector<8x256xf32>
    %546 = arith.mulf %23, %545 : vector<8x256xf32>
    %547 = arith.addf %546, %26 : vector<8x256xf32>
    %548 = vector.extract_strided_slice %547 {offsets = [0, 0], sizes = [8, 64], strides = [1, 1]} : vector<8x256xf32> to vector<8x64xf32>
    %549 = vector.extract_strided_slice %547 {offsets = [0, 64], sizes = [8, 64], strides = [1, 1]} : vector<8x256xf32> to vector<8x64xf32>
    %550 = vector.extract_strided_slice %547 {offsets = [0, 128], sizes = [8, 64], strides = [1, 1]} : vector<8x256xf32> to vector<8x64xf32>
    %551 = vector.extract_strided_slice %547 {offsets = [0, 192], sizes = [8, 64], strides = [1, 1]} : vector<8x256xf32> to vector<8x64xf32>
    %552 = arith.mulf %549, %513 : vector<8x64xf32>
    %553 = arith.mulf %548, %550 : vector<8x64xf32>
    %554 = arith.addf %552, %553 : vector<8x64xf32>
    %555 = math.tanh %554 : vector<8x64xf32>
    %556 = arith.mulf %551, %555 : vector<8x64xf32>
    %557 = arith.mulf %556, %11 : vector<8x64xf32>
    %cst_156 = arith.constant dense<0.000000e+00> : vector<8xf32>
    %558 = vector.multi_reduction <add>, %557, %cst_156 [1] : vector<8x64xf32> to vector<8xf32>
    %559 = vector.shape_cast %558 : vector<8xf32> to vector<8x1xf32>
    %560 = arith.addf %559, %14 : vector<8x1xf32>
    %c0_157 = arith.constant 0 : index
    %c13 = arith.constant 13 : index
    %561 = vector.load %arg0[%c0_157, %c13] : memref<8x16xf32, #tpu.memory_space<vmem>>, vector<8x1xf32>
    %c0_158 = arith.constant 0 : index
    %c0_159 = arith.constant 0 : index
    %562 = vector.load %arg5[%c0_158, %c0_159] : memref<64x256xf32, #tpu.memory_space<vmem>>, vector<64x256xf32>
    %cst_160 = arith.constant dense<0.000000e+00> : vector<8x256xf32>
    %563 = tpu.matmul %556, %562, %cst_160 {dimension_numbers = #tpu.dot_dimension_numbers<[1], [0], [0], [1], [0, 0, 1, 1], [], []>} : vector<8x64xf32>, vector<64x256xf32>, vector<8x256xf32> -> vector<8x256xf32>
    %564 = arith.addf %563, %5 : vector<8x256xf32>
    %565 = vector.broadcast %561 : vector<8x1xf32> to vector<8x256xf32>
    %566 = arith.mulf %565, %8 : vector<8x256xf32>
    %c0_161 = arith.constant 0 : index
    %c0_162 = arith.constant 0 : index
    %567 = vector.load %arg2[%c0_161, %c0_162] : memref<64x256xf32, #tpu.memory_space<vmem>>, vector<64x256xf32>
    %cst_163 = arith.constant dense<0.000000e+00> : vector<8x256xf32>
    %568 = tpu.matmul %541, %567, %cst_163 {dimension_numbers = #tpu.dot_dimension_numbers<[1], [0], [0], [1], [0, 0, 1, 1], [], []>} : vector<8x64xf32>, vector<64x256xf32>, vector<8x256xf32> -> vector<8x256xf32>
    %569 = arith.addf %566, %568 : vector<8x256xf32>
    %570 = arith.addf %569, %2 : vector<8x256xf32>
    %571 = math.tanh %570 : vector<8x256xf32>
    %572 = arith.mulf %23, %571 : vector<8x256xf32>
    %573 = arith.addf %572, %26 : vector<8x256xf32>
    %574 = vector.extract_strided_slice %573 {offsets = [0, 0], sizes = [8, 64], strides = [1, 1]} : vector<8x256xf32> to vector<8x64xf32>
    %575 = vector.extract_strided_slice %573 {offsets = [0, 64], sizes = [8, 64], strides = [1, 1]} : vector<8x256xf32> to vector<8x64xf32>
    %576 = vector.extract_strided_slice %573 {offsets = [0, 128], sizes = [8, 64], strides = [1, 1]} : vector<8x256xf32> to vector<8x64xf32>
    %577 = vector.extract_strided_slice %573 {offsets = [0, 192], sizes = [8, 64], strides = [1, 1]} : vector<8x256xf32> to vector<8x64xf32>
    %578 = arith.mulf %575, %539 : vector<8x64xf32>
    %579 = arith.mulf %574, %576 : vector<8x64xf32>
    %580 = arith.addf %578, %579 : vector<8x64xf32>
    %581 = math.tanh %580 : vector<8x64xf32>
    %582 = arith.mulf %577, %581 : vector<8x64xf32>
    %c0_164 = arith.constant 0 : index
    %c0_165 = arith.constant 0 : index
    %583 = vector.load %arg4[%c0_164, %c0_165] : memref<64x256xf32, #tpu.memory_space<vmem>>, vector<64x256xf32>
    %cst_166 = arith.constant dense<0.000000e+00> : vector<8x256xf32>
    %584 = tpu.matmul %582, %583, %cst_166 {dimension_numbers = #tpu.dot_dimension_numbers<[1], [0], [0], [1], [0, 0, 1, 1], [], []>} : vector<8x64xf32>, vector<64x256xf32>, vector<8x256xf32> -> vector<8x256xf32>
    %585 = arith.addf %584, %564 : vector<8x256xf32>
    %586 = math.tanh %585 : vector<8x256xf32>
    %587 = arith.mulf %23, %586 : vector<8x256xf32>
    %588 = arith.addf %587, %26 : vector<8x256xf32>
    %589 = vector.extract_strided_slice %588 {offsets = [0, 0], sizes = [8, 64], strides = [1, 1]} : vector<8x256xf32> to vector<8x64xf32>
    %590 = vector.extract_strided_slice %588 {offsets = [0, 64], sizes = [8, 64], strides = [1, 1]} : vector<8x256xf32> to vector<8x64xf32>
    %591 = vector.extract_strided_slice %588 {offsets = [0, 128], sizes = [8, 64], strides = [1, 1]} : vector<8x256xf32> to vector<8x64xf32>
    %592 = vector.extract_strided_slice %588 {offsets = [0, 192], sizes = [8, 64], strides = [1, 1]} : vector<8x256xf32> to vector<8x64xf32>
    %593 = arith.mulf %590, %554 : vector<8x64xf32>
    %594 = arith.mulf %589, %591 : vector<8x64xf32>
    %595 = arith.addf %593, %594 : vector<8x64xf32>
    %596 = math.tanh %595 : vector<8x64xf32>
    %597 = arith.mulf %592, %596 : vector<8x64xf32>
    %598 = arith.mulf %597, %11 : vector<8x64xf32>
    %cst_167 = arith.constant dense<0.000000e+00> : vector<8xf32>
    %599 = vector.multi_reduction <add>, %598, %cst_167 [1] : vector<8x64xf32> to vector<8xf32>
    %600 = vector.shape_cast %599 : vector<8xf32> to vector<8x1xf32>
    %601 = arith.addf %600, %14 : vector<8x1xf32>
    %c0_168 = arith.constant 0 : index
    %c14 = arith.constant 14 : index
    %602 = vector.load %arg0[%c0_168, %c14] : memref<8x16xf32, #tpu.memory_space<vmem>>, vector<8x1xf32>
    %c0_169 = arith.constant 0 : index
    %c0_170 = arith.constant 0 : index
    %603 = vector.load %arg5[%c0_169, %c0_170] : memref<64x256xf32, #tpu.memory_space<vmem>>, vector<64x256xf32>
    %cst_171 = arith.constant dense<0.000000e+00> : vector<8x256xf32>
    %604 = tpu.matmul %597, %603, %cst_171 {dimension_numbers = #tpu.dot_dimension_numbers<[1], [0], [0], [1], [0, 0, 1, 1], [], []>} : vector<8x64xf32>, vector<64x256xf32>, vector<8x256xf32> -> vector<8x256xf32>
    %605 = arith.addf %604, %5 : vector<8x256xf32>
    %606 = vector.broadcast %602 : vector<8x1xf32> to vector<8x256xf32>
    %607 = arith.mulf %606, %8 : vector<8x256xf32>
    %c0_172 = arith.constant 0 : index
    %c0_173 = arith.constant 0 : index
    %608 = vector.load %arg2[%c0_172, %c0_173] : memref<64x256xf32, #tpu.memory_space<vmem>>, vector<64x256xf32>
    %cst_174 = arith.constant dense<0.000000e+00> : vector<8x256xf32>
    %609 = tpu.matmul %582, %608, %cst_174 {dimension_numbers = #tpu.dot_dimension_numbers<[1], [0], [0], [1], [0, 0, 1, 1], [], []>} : vector<8x64xf32>, vector<64x256xf32>, vector<8x256xf32> -> vector<8x256xf32>
    %610 = arith.addf %607, %609 : vector<8x256xf32>
    %611 = arith.addf %610, %2 : vector<8x256xf32>
    %612 = math.tanh %611 : vector<8x256xf32>
    %613 = arith.mulf %23, %612 : vector<8x256xf32>
    %614 = arith.addf %613, %26 : vector<8x256xf32>
    %615 = vector.extract_strided_slice %614 {offsets = [0, 0], sizes = [8, 64], strides = [1, 1]} : vector<8x256xf32> to vector<8x64xf32>
    %616 = vector.extract_strided_slice %614 {offsets = [0, 64], sizes = [8, 64], strides = [1, 1]} : vector<8x256xf32> to vector<8x64xf32>
    %617 = vector.extract_strided_slice %614 {offsets = [0, 128], sizes = [8, 64], strides = [1, 1]} : vector<8x256xf32> to vector<8x64xf32>
    %618 = vector.extract_strided_slice %614 {offsets = [0, 192], sizes = [8, 64], strides = [1, 1]} : vector<8x256xf32> to vector<8x64xf32>
    %619 = arith.mulf %616, %580 : vector<8x64xf32>
    %620 = arith.mulf %615, %617 : vector<8x64xf32>
    %621 = arith.addf %619, %620 : vector<8x64xf32>
    %622 = math.tanh %621 : vector<8x64xf32>
    %623 = arith.mulf %618, %622 : vector<8x64xf32>
    %c0_175 = arith.constant 0 : index
    %c0_176 = arith.constant 0 : index
    %624 = vector.load %arg4[%c0_175, %c0_176] : memref<64x256xf32, #tpu.memory_space<vmem>>, vector<64x256xf32>
    %cst_177 = arith.constant dense<0.000000e+00> : vector<8x256xf32>
    %625 = tpu.matmul %623, %624, %cst_177 {dimension_numbers = #tpu.dot_dimension_numbers<[1], [0], [0], [1], [0, 0, 1, 1], [], []>} : vector<8x64xf32>, vector<64x256xf32>, vector<8x256xf32> -> vector<8x256xf32>
    %626 = arith.addf %625, %605 : vector<8x256xf32>
    %627 = math.tanh %626 : vector<8x256xf32>
    %628 = arith.mulf %23, %627 : vector<8x256xf32>
    %629 = arith.addf %628, %26 : vector<8x256xf32>
    %630 = vector.extract_strided_slice %629 {offsets = [0, 0], sizes = [8, 64], strides = [1, 1]} : vector<8x256xf32> to vector<8x64xf32>
    %631 = vector.extract_strided_slice %629 {offsets = [0, 64], sizes = [8, 64], strides = [1, 1]} : vector<8x256xf32> to vector<8x64xf32>
    %632 = vector.extract_strided_slice %629 {offsets = [0, 128], sizes = [8, 64], strides = [1, 1]} : vector<8x256xf32> to vector<8x64xf32>
    %633 = vector.extract_strided_slice %629 {offsets = [0, 192], sizes = [8, 64], strides = [1, 1]} : vector<8x256xf32> to vector<8x64xf32>
    %634 = arith.mulf %631, %595 : vector<8x64xf32>
    %635 = arith.mulf %630, %632 : vector<8x64xf32>
    %636 = arith.addf %634, %635 : vector<8x64xf32>
    %637 = math.tanh %636 : vector<8x64xf32>
    %638 = arith.mulf %633, %637 : vector<8x64xf32>
    %639 = arith.mulf %638, %11 : vector<8x64xf32>
    %cst_178 = arith.constant dense<0.000000e+00> : vector<8xf32>
    %640 = vector.multi_reduction <add>, %639, %cst_178 [1] : vector<8x64xf32> to vector<8xf32>
    %641 = vector.shape_cast %640 : vector<8xf32> to vector<8x1xf32>
    %642 = arith.addf %641, %14 : vector<8x1xf32>
    %c0_179 = arith.constant 0 : index
    %c15 = arith.constant 15 : index
    %643 = vector.load %arg0[%c0_179, %c15] : memref<8x16xf32, #tpu.memory_space<vmem>>, vector<8x1xf32>
    %c0_180 = arith.constant 0 : index
    %c0_181 = arith.constant 0 : index
    %644 = vector.load %arg5[%c0_180, %c0_181] : memref<64x256xf32, #tpu.memory_space<vmem>>, vector<64x256xf32>
    %cst_182 = arith.constant dense<0.000000e+00> : vector<8x256xf32>
    %645 = tpu.matmul %638, %644, %cst_182 {dimension_numbers = #tpu.dot_dimension_numbers<[1], [0], [0], [1], [0, 0, 1, 1], [], []>} : vector<8x64xf32>, vector<64x256xf32>, vector<8x256xf32> -> vector<8x256xf32>
    %646 = arith.addf %645, %5 : vector<8x256xf32>
    %647 = vector.broadcast %643 : vector<8x1xf32> to vector<8x256xf32>
    %648 = arith.mulf %647, %8 : vector<8x256xf32>
    %c0_183 = arith.constant 0 : index
    %c0_184 = arith.constant 0 : index
    %649 = vector.load %arg2[%c0_183, %c0_184] : memref<64x256xf32, #tpu.memory_space<vmem>>, vector<64x256xf32>
    %cst_185 = arith.constant dense<0.000000e+00> : vector<8x256xf32>
    %650 = tpu.matmul %623, %649, %cst_185 {dimension_numbers = #tpu.dot_dimension_numbers<[1], [0], [0], [1], [0, 0, 1, 1], [], []>} : vector<8x64xf32>, vector<64x256xf32>, vector<8x256xf32> -> vector<8x256xf32>
    %651 = arith.addf %648, %650 : vector<8x256xf32>
    %652 = arith.addf %651, %2 : vector<8x256xf32>
    %653 = math.tanh %652 : vector<8x256xf32>
    %654 = arith.mulf %23, %653 : vector<8x256xf32>
    %655 = arith.addf %654, %26 : vector<8x256xf32>
    %656 = vector.extract_strided_slice %655 {offsets = [0, 0], sizes = [8, 64], strides = [1, 1]} : vector<8x256xf32> to vector<8x64xf32>
    %657 = vector.extract_strided_slice %655 {offsets = [0, 64], sizes = [8, 64], strides = [1, 1]} : vector<8x256xf32> to vector<8x64xf32>
    %658 = vector.extract_strided_slice %655 {offsets = [0, 128], sizes = [8, 64], strides = [1, 1]} : vector<8x256xf32> to vector<8x64xf32>
    %659 = vector.extract_strided_slice %655 {offsets = [0, 192], sizes = [8, 64], strides = [1, 1]} : vector<8x256xf32> to vector<8x64xf32>
    %660 = arith.mulf %657, %621 : vector<8x64xf32>
    %661 = arith.mulf %656, %658 : vector<8x64xf32>
    %662 = arith.addf %660, %661 : vector<8x64xf32>
    %663 = math.tanh %662 : vector<8x64xf32>
    %664 = arith.mulf %659, %663 : vector<8x64xf32>
    %c0_186 = arith.constant 0 : index
    %c0_187 = arith.constant 0 : index
    %665 = vector.load %arg4[%c0_186, %c0_187] : memref<64x256xf32, #tpu.memory_space<vmem>>, vector<64x256xf32>
    %cst_188 = arith.constant dense<0.000000e+00> : vector<8x256xf32>
    %666 = tpu.matmul %664, %665, %cst_188 {dimension_numbers = #tpu.dot_dimension_numbers<[1], [0], [0], [1], [0, 0, 1, 1], [], []>} : vector<8x64xf32>, vector<64x256xf32>, vector<8x256xf32> -> vector<8x256xf32>
    %667 = arith.addf %666, %646 : vector<8x256xf32>
    %668 = math.tanh %667 : vector<8x256xf32>
    %669 = arith.mulf %23, %668 : vector<8x256xf32>
    %670 = arith.addf %669, %26 : vector<8x256xf32>
    %671 = vector.extract_strided_slice %670 {offsets = [0, 0], sizes = [8, 64], strides = [1, 1]} : vector<8x256xf32> to vector<8x64xf32>
    %672 = vector.extract_strided_slice %670 {offsets = [0, 64], sizes = [8, 64], strides = [1, 1]} : vector<8x256xf32> to vector<8x64xf32>
    %673 = vector.extract_strided_slice %670 {offsets = [0, 128], sizes = [8, 64], strides = [1, 1]} : vector<8x256xf32> to vector<8x64xf32>
    %674 = vector.extract_strided_slice %670 {offsets = [0, 192], sizes = [8, 64], strides = [1, 1]} : vector<8x256xf32> to vector<8x64xf32>
    %675 = arith.mulf %672, %636 : vector<8x64xf32>
    %676 = arith.mulf %671, %673 : vector<8x64xf32>
    %677 = arith.addf %675, %676 : vector<8x64xf32>
    %678 = math.tanh %677 : vector<8x64xf32>
    %679 = arith.mulf %674, %678 : vector<8x64xf32>
    %680 = arith.mulf %679, %11 : vector<8x64xf32>
    %cst_189 = arith.constant dense<0.000000e+00> : vector<8xf32>
    %681 = vector.multi_reduction <add>, %680, %cst_189 [1] : vector<8x64xf32> to vector<8xf32>
    %682 = vector.shape_cast %681 : vector<8xf32> to vector<8x1xf32>
    %683 = arith.addf %682, %14 : vector<8x1xf32>
    %684 = tpu.concatenate %68, %109, %150, %191, %232, %273, %314, %355, %396, %437, %478, %519, %560, %601, %642, %683 in 1 : vector<8x1xf32>, vector<8x1xf32>, vector<8x1xf32>, vector<8x1xf32>, vector<8x1xf32>, vector<8x1xf32>, vector<8x1xf32>, vector<8x1xf32>, vector<8x1xf32>, vector<8x1xf32>, vector<8x1xf32>, vector<8x1xf32>, vector<8x1xf32>, vector<8x1xf32>, vector<8x1xf32>, vector<8x1xf32> -> vector<8x16xf32>
    %c0_190 = arith.constant 0 : index
    %c0_191 = arith.constant 0 : index
    %685 = vector.load %arg9[%c0_190, %c0_191] : memref<8x16xf32, #tpu.memory_space<vmem>>, vector<8x16xf32>
    tpu.vector_store %arg9[%c0_190, %c0_191], %684 {strides = array<i32>} : memref<8x16xf32, #tpu.memory_space<vmem>>, vector<8x16xf32>,
    return
  }
}

</mosaic_0001>

<llo_original>
// kernel: lstm_forward.1
$region0: #{lstm_forward.1}
  #allocation0 [shape = 'u32[]', space=smem, size = 0x4, offset = 0x4, fixed_abs, tag = 'smem constant byte address 0x4 - core index']
  #allocation1 [shape = 'u32[144,128]{1,0:T(1,128)}', space=vmem, size = 0x12000, scoped, tag = 'internal scratch']
  #allocation2 [shape = 'f32[1,1]{1,0:T(1,128)S(1)}', space=vmem, size = 0x200, scoped, tag = 'scoped memory for lstm_forward.1']
  %s0 = inlined_call_operand.vmem [shape: f32[8,16], index: 0, kind: input, shape index: {}]
  %s1 = inlined_call_operand.vmem [shape: f32[1,256], index: 1, kind: input, shape index: {}]
  %s2 = inlined_call_operand.vmem [shape: f32[64,256], index: 2, kind: input, shape index: {}]
  %s3 = inlined_call_operand.vmem [shape: f32[1,256], index: 3, kind: input, shape index: {}]
  %s4 = inlined_call_operand.vmem [shape: f32[64,256], index: 4, kind: input, shape index: {}]
  %s5 = inlined_call_operand.vmem [shape: f32[64,256], index: 5, kind: input, shape index: {}]
  %s6 = inlined_call_operand.vmem [shape: f32[1,256], index: 6, kind: input, shape index: {}]
  %s7 = inlined_call_operand.vmem [shape: f32[1,64], index: 7, kind: input, shape index: {}]
  %s8 = inlined_call_operand.<no memory space> [shape: f32[1,1], index: 8, kind: input, shape index: {}]
  %s9 = inlined_call_operand.hbm [shape: f32[8,16], index: 9, kind: output, shape index: {}]
  %s10 = sld [smem:[#allocation0]]
  $region46: #{lstm_forward.1} parent=0
    _
  %s12 = ssub.s32 1, %s10
  %s13 = scalar_select 0, %s12, %s10
  %v14 = vstv %s8
  %15 = vst [vmem:[#allocation2] sm:$0x1] %v14
  $region1: #{lstm_forward.1} parent=0
    #allocation3 [shape = 'u8[4096]{0}', space=vmem, size = 0x1000, scoped, tag = 'output window, operand 0, single buffered']
    #allocation4 [shape = 's32[1]{0}', space=sflag, size = 0x4, scoped, tag = 'scoped memory for lstm_forward.1']
    %16 = vsyncpa [#allocation4], 0
    // Predicated region
    $region2: #{lstm_forward.1} parent=1 // pred_check
      _
    $region3: #{lstm_forward.1} parent=1 // pred_check_branch
      %18 = sbr.rel (0) target = $region5
    $region4: #{lstm_forward.1} parent=1 // pred_region
      _
    $region5: #{lstm_forward.1} parent=1 // pred_fallthru
      _
    // Predicated region
    $region6: #{lstm_forward.1} parent=1 // pred_check
      _
    $region7: #{lstm_forward.1} parent=1 // pred_check_branch
      %20 = sbr.rel (0) target = $region9
    $region8: #{lstm_forward.1} parent=1 // pred_region
      _
    $region9: #{lstm_forward.1} parent=1 // pred_fallthru
      _
    // Predicated region
    $region10: #{lstm_forward.1} parent=1 // pred_check
      _
    $region11: #{lstm_forward.1} parent=1 // pred_check_branch
      %22 = sbr.rel (0) target = $region13
    $region12: #{lstm_forward.1} parent=1 // pred_region
      _
    $region13: #{lstm_forward.1} parent=1 // pred_fallthru
      _
    // Predicated region
    $region14: #{lstm_forward.1} parent=1 // pred_check
      _
    $region15: #{lstm_forward.1} parent=1 // pred_check_branch
      %24 = sbr.rel (0) target = $region17
    $region16: #{lstm_forward.1} parent=1 // pred_region
      _
    $region17: #{lstm_forward.1} parent=1 // pred_fallthru
      _
    // Predicated region
    $region18: #{lstm_forward.1} parent=1 // pred_check
      _
    $region19: #{lstm_forward.1} parent=1 // pred_check_branch
      %26 = sbr.rel (0) target = $region21
    $region20: #{lstm_forward.1} parent=1 // pred_region
      _
    $region21: #{lstm_forward.1} parent=1 // pred_fallthru
      _
    // Predicated region
    $region22: #{lstm_forward.1} parent=1 // pred_check
      _
    $region23: #{lstm_forward.1} parent=1 // pred_check_branch
      %28 = sbr.rel (0) target = $region25
    $region24: #{lstm_forward.1} parent=1 // pred_region
      _
    $region25: #{lstm_forward.1} parent=1 // pred_fallthru
      _
    // Predicated region
    $region26: #{lstm_forward.1} parent=1 // pred_check
      _
    $region27: #{lstm_forward.1} parent=1 // pred_check_branch
      %30 = sbr.rel (0) target = $region29
    $region28: #{lstm_forward.1} parent=1 // pred_region
      _
    $region29: #{lstm_forward.1} parent=1 // pred_fallthru
      _
    // Predicated region
    $region30: #{lstm_forward.1} parent=1 // pred_check
      _
    $region31: #{lstm_forward.1} parent=1 // pred_check_branch
      %32 = sbr.rel (0) target = $region33
    $region32: #{lstm_forward.1} parent=1 // pred_region
      _
    $region33: #{lstm_forward.1} parent=1 // pred_fallthru
      _
    // Predicated region
    $region34: #{lstm_forward.1} parent=1 // pred_check
      _
    $region35: #{lstm_forward.1} parent=1 // pred_check_branch
      %34 = sbr.rel (0) target = $region37
    $region36: #{lstm_forward.1} parent=1 // pred_region
      _
    $region37: #{lstm_forward.1} parent=1 // pred_fallthru
      _
    %v35 = vld [vmem:[%s3] sm:$0x3]
    %v37 = vlaneseq
    %v38 = vshrl.u32 %v37, 7
    %v39 = vsub.s32 0, %v38
    %v40 = vrot.slane %v35, %v39
    %v41 = vlaneseq
    %v42 = vshrl.u32 %v41, 7
    %v43 = vsub.s32 1, %v42
    %v44 = vrot.slane %v35, %v43
    %v47 = vld [vmem:[%s6] sm:$0x3]
    %v49 = vlaneseq
    %v50 = vshrl.u32 %v49, 7
    %v51 = vsub.s32 0, %v50
    %v52 = vrot.slane %v47, %v51
    %v53 = vlaneseq
    %v54 = vshrl.u32 %v53, 7
    %v55 = vsub.s32 1, %v54
    %v56 = vrot.slane %v47, %v55
    %v59 = vld [vmem:[%s1] sm:$0x3]
    %v61 = vlaneseq
    %v62 = vshrl.u32 %v61, 7
    %v63 = vsub.s32 0, %v62
    %v64 = vrot.slane %v59, %v63
    %v65 = vlaneseq
    %v66 = vshrl.u32 %v65, 7
    %v67 = vsub.s32 1, %v66
    %v68 = vrot.slane %v59, %v67
    %v71 = vld [vmem:[%s7] sm:$0x1]
    %v73 = vlaneseq
    %v74 = vshrl.u32 %v73, 7
    %v75 = vsub.s32 0, %v74
    %v76 = vrot.slane %v71, %v75
    %v77 = vld [vmem:[#allocation2] sm:$0x1]
    %v79 = vlaneseq
    %v80 = vshrl.u32 %v79, 7
    %v81 = vsub.s32 0, %v80
    %v82 = vrot.slane %v77, %v81
    %v84 = vlaneseq
    %v85 = vand.u32 %v84, 127
    %v86 = vadd.s32 %v85, 128
    %vm87 = vcmp.ge.s32.totalorder %v85, 128
    %vm88 = vcmp.ge.s32.totalorder %v86, 128
    %vm89 = vcmp.lt.s32.totalorder %v85, 192
    %vm90 = vcmp.lt.s32.totalorder %v86, 192
    %vm91 = vmand %vm87, %vm89
    %vm92 = vmand %vm88, %vm90
    %v93 = vsel %vm91, 1.0, 0.5
    %v94 = vsel %vm92, 1.0, 0.5
    %v95 = vsel %vm91, 0.0, 0.5
    %v96 = vsel %vm92, 0.0, 0.5
    %v97 = vld [vmem:[%s0] sm:$0xff]
    %v98 = vld [vmem:[%s5] sm:$0xff]
    %v99 = vld [vmem:[%s5 + $0x8] sm:$0xff]
    %v100 = vld [vmem:[%s5 + $0x10] sm:$0xff]
    %v101 = vld [vmem:[%s5 + $0x18] sm:$0xff]
    %v102 = vld [vmem:[%s5 + $0x20] sm:$0xff]
    %v103 = vld [vmem:[%s5 + $0x28] sm:$0xff]
    %v104 = vld [vmem:[%s5 + $0x30] sm:$0xff]
    %v105 = vld [vmem:[%s5 + $0x38] sm:$0xff]
    %v106 = vld [vmem:[%s5 + $0x40] sm:$0xff]
    %v107 = vld [vmem:[%s5 + $0x48] sm:$0xff]
    %v108 = vld [vmem:[%s5 + $0x50] sm:$0xff]
    %v109 = vld [vmem:[%s5 + $0x58] sm:$0xff]
    %v110 = vld [vmem:[%s5 + $0x60] sm:$0xff]
    %v111 = vld [vmem:[%s5 + $0x68] sm:$0xff]
    %v112 = vld [vmem:[%s5 + $0x70] sm:$0xff]
    %v113 = vld [vmem:[%s5 + $0x78] sm:$0xff]
    %vm114 = vcmask 523264
    %v116 = vsel %vm114, 0.0, 0
    %118 = vmatprep.subr.mxu0 0.0
    %119 = vmatpush1.msra.mxu0 0.0
    %120 = vmatprep.subr.mxu0 0.0
    %121 = vmatpush1.msra.mxu0 0.0
    %122 = vmatprep.subr.mxu0 0.0
    %123 = vmatpush1.msra.mxu0 0.0
    %124 = vmatprep.subr.mxu0 0.0
    %125 = vmatpush1.msra.mxu0 0.0
    %126 = vmatprep.subr.mxu0 0.0
    %127 = vmatpush1.msra.mxu0 0.0
    %128 = vmatprep.subr.mxu0 0.0
    %129 = vmatpush1.msra.mxu0 0.0
    %130 = vmatprep.subr.mxu0 0.0
    %131 = vmatpush1.msra.mxu0 0.0
    %132 = vmatprep.subr.mxu0 0.0
    %133 = vmatpush1.msra.mxu0 0.0
    %134 = vmatprep.subr.mxu0 %v113
    %135 = vmatpush1.msra.mxu0 %v112
    %136 = vmatprep.subr.mxu0 %v111
    %137 = vmatpush1.msra.mxu0 %v110
    %138 = vmatprep.subr.mxu0 %v109
    %139 = vmatpush1.msra.mxu0 %v108
    %140 = vmatprep.subr.mxu0 %v107
    %141 = vmatpush1.msra.mxu0 %v106
    %142 = vmatprep.subr.mxu0 %v105
    %143 = vmatpush1.msra.mxu0 %v104
    %144 = vmatprep.subr.mxu0 %v103
    %145 = vmatpush1.msra.mxu0 %v102
    %146 = vmatprep.subr.mxu0 %v101
    %147 = vmatpush1.msra.mxu0 %v100
    %148 = vmatprep.subr.mxu0 %v99
    %149 = vmatpush1.msra.mxu0 %v98
    %150 = vmatprep.subr.mxu0 0.0
    %151 = vmatpush2.msra.mxu0 0.0
    %152 = vmatprep.subr.mxu0 0.0
    %153 = vmatpush2.msra.mxu0 0.0
    %154 = vmatprep.subr.mxu0 0.0
    %155 = vmatpush2.msra.mxu0 0.0
    %156 = vmatprep.subr.mxu0 0.0
    %157 = vmatpush2.msra.mxu0 0.0
    %158 = vmatprep.subr.mxu0 0.0
    %159 = vmatpush2.msra.mxu0 0.0
    %160 = vmatprep.subr.mxu0 0.0
    %161 = vmatpush2.msra.mxu0 0.0
    %162 = vmatprep.subr.mxu0 0.0
    %163 = vmatpush2.msra.mxu0 0.0
    %164 = vmatprep.subr.mxu0 0.0
    %165 = vmatpush2.msra.mxu0 0.0
    %166 = vmatprep.subr.mxu0 0.0
    %167 = vmatpush2.msra.mxu0 0.0
    %168 = vmatprep.subr.mxu0 0.0
    %169 = vmatpush2.msra.mxu0 0.0
    %170 = vmatprep.subr.mxu0 0.0
    %171 = vmatpush2.msra.mxu0 0.0
    %172 = vmatprep.subr.mxu0 0.0
    %173 = vmatpush2.msra.mxu0 0.0
    %174 = vmatprep.subr.mxu0 0.0
    %175 = vmatpush2.msra.mxu0 0.0
    %176 = vmatprep.subr.mxu0 0.0
    %177 = vmatpush2.msra.mxu0 0.0
    %178 = vmatprep.subr.mxu0 0.0
    %179 = vmatpush2.msra.mxu0 0.0
    %180 = vmatprep.subr.mxu0 0.0
    %181 = vmatpush2.msra.mxu0 0.0
    %182 = vmatprep.mubr.f32.mxu0 0.0
    %183 = vmatmul.mubr.f32.gmra.mxu0 %v116
    %v184 = vpop.f32.mrf.mxu0
    %v185 = vadd.f32 %v52, %v184
    %v186 = vpop.f32.mrf.mxu0
    %v187 = vadd.f32 %v56, %v186
    %188 = vdwg.mxu0
    %190 = vset.pattern.permute.xlu0 0
    %191 = vperm.xlu0 %190, %v97
    %v192 = vpop.permute.xlu0 %191
    %v194 = vmul.f32 %v192, %v64
    %v195 = vmul.f32 %v192, %v68
    %v196 = vld [vmem:[%s2] sm:$0xff]
    %v197 = vld [vmem:[%s2 + $0x8] sm:$0xff]
    %v198 = vld [vmem:[%s2 + $0x10] sm:$0xff]
    %v199 = vld [vmem:[%s2 + $0x18] sm:$0xff]
    %v200 = vld [vmem:[%s2 + $0x20] sm:$0xff]
    %v201 = vld [vmem:[%s2 + $0x28] sm:$0xff]
    %v202 = vld [vmem:[%s2 + $0x30] sm:$0xff]
    %v203 = vld [vmem:[%s2 + $0x38] sm:$0xff]
    %v204 = vld [vmem:[%s2 + $0x40] sm:$0xff]
    %v205 = vld [vmem:[%s2 + $0x48] sm:$0xff]
    %v206 = vld [vmem:[%s2 + $0x50] sm:$0xff]
    %v207 = vld [vmem:[%s2 + $0x58] sm:$0xff]
    %v208 = vld [vmem:[%s2 + $0x60] sm:$0xff]
    %v209 = vld [vmem:[%s2 + $0x68] sm:$0xff]
    %v210 = vld [vmem:[%s2 + $0x70] sm:$0xff]
    %v211 = vld [vmem:[%s2 + $0x78] sm:$0xff]
    %212 = vmatprep.subr.mxu0 0.0
    %213 = vmatpush1.msra.mxu0 0.0
    %214 = vmatprep.subr.mxu0 0.0
    %215 = vmatpush1.msra.mxu0 0.0
    %216 = vmatprep.subr.mxu0 0.0
    %217 = vmatpush1.msra.mxu0 0.0
    %218 = vmatprep.subr.mxu0 0.0
    %219 = vmatpush1.msra.mxu0 0.0
    %220 = vmatprep.subr.mxu0 0.0
    %221 = vmatpush1.msra.mxu0 0.0
    %222 = vmatprep.subr.mxu0 0.0
    %223 = vmatpush1.msra.mxu0 0.0
    %224 = vmatprep.subr.mxu0 0.0
    %225 = vmatpush1.msra.mxu0 0.0
    %226 = vmatprep.subr.mxu0 0.0
    %227 = vmatpush1.msra.mxu0 0.0
    %228 = vmatprep.subr.mxu0 %v211
    %229 = vmatpush1.msra.mxu0 %v210
    %230 = vmatprep.subr.mxu0 %v209
    %231 = vmatpush1.msra.mxu0 %v208
    %232 = vmatprep.subr.mxu0 %v207
    %233 = vmatpush1.msra.mxu0 %v206
    %234 = vmatprep.subr.mxu0 %v205
    %235 = vmatpush1.msra.mxu0 %v204
    %236 = vmatprep.subr.mxu0 %v203
    %237 = vmatpush1.msra.mxu0 %v202
    %238 = vmatprep.subr.mxu0 %v201
    %239 = vmatpush1.msra.mxu0 %v200
    %240 = vmatprep.subr.mxu0 %v199
    %241 = vmatpush1.msra.mxu0 %v198
    %242 = vmatprep.subr.mxu0 %v197
    %243 = vmatpush1.msra.mxu0 %v196
    %244 = vmatprep.subr.mxu0 0.0
    %245 = vmatpush2.msra.mxu0 0.0
    %246 = vmatprep.subr.mxu0 0.0
    %247 = vmatpush2.msra.mxu0 0.0
    %248 = vmatprep.subr.mxu0 0.0
    %249 = vmatpush2.msra.mxu0 0.0
    %250 = vmatprep.subr.mxu0 0.0
    %251 = vmatpush2.msra.mxu0 0.0
    %252 = vmatprep.subr.mxu0 0.0
    %253 = vmatpush2.msra.mxu0 0.0
    %254 = vmatprep.subr.mxu0 0.0
    %255 = vmatpush2.msra.mxu0 0.0
    %256 = vmatprep.subr.mxu0 0.0
    %257 = vmatpush2.msra.mxu0 0.0
    %258 = vmatprep.subr.mxu0 0.0
    %259 = vmatpush2.msra.mxu0 0.0
    %260 = vmatprep.subr.mxu0 0.0
    %261 = vmatpush2.msra.mxu0 0.0
    %262 = vmatprep.subr.mxu0 0.0
    %263 = vmatpush2.msra.mxu0 0.0
    %264 = vmatprep.subr.mxu0 0.0
    %265 = vmatpush2.msra.mxu0 0.0
    %266 = vmatprep.subr.mxu0 0.0
    %267 = vmatpush2.msra.mxu0 0.0
    %268 = vmatprep.subr.mxu0 0.0
    %269 = vmatpush2.msra.mxu0 0.0
    %270 = vmatprep.subr.mxu0 0.0
    %271 = vmatpush2.msra.mxu0 0.0
    %272 = vmatprep.subr.mxu0 0.0
    %273 = vmatpush2.msra.mxu0 0.0
    %274 = vmatprep.subr.mxu0 0.0
    %275 = vmatpush2.msra.mxu0 0.0
    %276 = vmatprep.mubr.f32.mxu0 0.0
    %277 = vmatmul.mubr.f32.gmra.mxu0 %v116
    %v278 = vpop.f32.mrf.mxu0
    %v279 = vadd.f32 0.0, %v278
    %v280 = vpop.f32.mrf.mxu0
    %v281 = vadd.f32 0.0, %v280
    %282 = vdwg.mxu0
    %v283 = vadd.f32 %v194, %v279
    %v284 = vadd.f32 %v195, %v281
    %v285 = vadd.f32 %v283, %v40
    %v286 = vadd.f32 %v284, %v44
    %v287 = vtanh.pop %v285
    %v288 = vtanh.pop %v286
    %v289 = vmul.f32 %v93, %v287
    %v290 = vmul.f32 %v94, %v288
    %v291 = vadd.f32 %v289, %v95
    %v292 = vadd.f32 %v290, %v96
    %v293 = vmul.f32 %v291, 0.0
    %v294 = vmul.f32 %v291, %v292
    %296 = vrot.lane.b32.xlu0 %v294, 64
    %v297 = vpop.permute.xlu0 %296
    %v299 = vadd.f32 %v293, %v297
    %v300 = vtanh.pop %v299
    %v301 = vmul.f32 %v292, %v300
    %v302 = vld [vmem:[%s4] sm:$0xff]
    %v303 = vld [vmem:[%s4 + $0x8] sm:$0xff]
    %v304 = vld [vmem:[%s4 + $0x10] sm:$0xff]
    %v305 = vld [vmem:[%s4 + $0x18] sm:$0xff]
    %v306 = vld [vmem:[%s4 + $0x20] sm:$0xff]
    %v307 = vld [vmem:[%s4 + $0x28] sm:$0xff]
    %v308 = vld [vmem:[%s4 + $0x30] sm:$0xff]
    %v309 = vld [vmem:[%s4 + $0x38] sm:$0xff]
    %v310 = vld [vmem:[%s4 + $0x40] sm:$0xff]
    %v311 = vld [vmem:[%s4 + $0x48] sm:$0xff]
    %v312 = vld [vmem:[%s4 + $0x50] sm:$0xff]
    %v313 = vld [vmem:[%s4 + $0x58] sm:$0xff]
    %v314 = vld [vmem:[%s4 + $0x60] sm:$0xff]
    %v315 = vld [vmem:[%s4 + $0x68] sm:$0xff]
    %v316 = vld [vmem:[%s4 + $0x70] sm:$0xff]
    %v317 = vld [vmem:[%s4 + $0x78] sm:$0xff]
    %319 = vrot.lane.b32.xlu0 %v301, 64
    %v320 = vpop.permute.xlu0 %319
    %v321 = vsel %vm114, %v320, 0
    %323 = vmatprep.subr.mxu0 0.0
    %324 = vmatpush1.msra.mxu0 0.0
    %325 = vmatprep.subr.mxu0 0.0
    %326 = vmatpush1.msra.mxu0 0.0
    %327 = vmatprep.subr.mxu0 0.0
    %328 = vmatpush1.msra.mxu0 0.0
    %329 = vmatprep.subr.mxu0 0.0
    %330 = vmatpush1.msra.mxu0 0.0
    %331 = vmatprep.subr.mxu0 0.0
    %332 = vmatpush1.msra.mxu0 0.0
    %333 = vmatprep.subr.mxu0 0.0
    %334 = vmatpush1.msra.mxu0 0.0
    %335 = vmatprep.subr.mxu0 0.0
    %336 = vmatpush1.msra.mxu0 0.0
    %337 = vmatprep.subr.mxu0 0.0
    %338 = vmatpush1.msra.mxu0 0.0
    %339 = vmatprep.subr.mxu0 %v317
    %340 = vmatpush1.msra.mxu0 %v316
    %341 = vmatprep.subr.mxu0 %v315
    %342 = vmatpush1.msra.mxu0 %v314
    %343 = vmatprep.subr.mxu0 %v313
    %344 = vmatpush1.msra.mxu0 %v312
    %345 = vmatprep.subr.mxu0 %v311
    %346 = vmatpush1.msra.mxu0 %v310
    %347 = vmatprep.subr.mxu0 %v309
    %348 = vmatpush1.msra.mxu0 %v308
    %349 = vmatprep.subr.mxu0 %v307
    %350 = vmatpush1.msra.mxu0 %v306
    %351 = vmatprep.subr.mxu0 %v305
    %352 = vmatpush1.msra.mxu0 %v304
    %353 = vmatprep.subr.mxu0 %v303
    %354 = vmatpush1.msra.mxu0 %v302
    %355 = vmatprep.subr.mxu0 0.0
    %356 = vmatpush2.msra.mxu0 0.0
    %357 = vmatprep.subr.mxu0 0.0
    %358 = vmatpush2.msra.mxu0 0.0
    %359 = vmatprep.subr.mxu0 0.0
    %360 = vmatpush2.msra.mxu0 0.0
    %361 = vmatprep.subr.mxu0 0.0
    %362 = vmatpush2.msra.mxu0 0.0
    %363 = vmatprep.subr.mxu0 0.0
    %364 = vmatpush2.msra.mxu0 0.0
    %365 = vmatprep.subr.mxu0 0.0
    %366 = vmatpush2.msra.mxu0 0.0
    %367 = vmatprep.subr.mxu0 0.0
    %368 = vmatpush2.msra.mxu0 0.0
    %369 = vmatprep.subr.mxu0 0.0
    %370 = vmatpush2.msra.mxu0 0.0
    %371 = vmatprep.subr.mxu0 0.0
    %372 = vmatpush2.msra.mxu0 0.0
    %373 = vmatprep.subr.mxu0 0.0
    %374 = vmatpush2.msra.mxu0 0.0
    %375 = vmatprep.subr.mxu0 0.0
    %376 = vmatpush2.msra.mxu0 0.0
    %377 = vmatprep.subr.mxu0 0.0
    %378 = vmatpush2.msra.mxu0 0.0
    %379 = vmatprep.subr.mxu0 0.0
    %380 = vmatpush2.msra.mxu0 0.0
    %381 = vmatprep.subr.mxu0 0.0
    %382 = vmatpush2.msra.mxu0 0.0
    %383 = vmatprep.subr.mxu0 0.0
    %384 = vmatpush2.msra.mxu0 0.0
    %385 = vmatprep.subr.mxu0 0.0
    %386 = vmatpush2.msra.mxu0 0.0
    %387 = vmatprep.mubr.f32.mxu0 0.0
    %388 = vmatmul.mubr.f32.gmra.mxu0 %v321
    %v389 = vpop.f32.mrf.mxu0
    %v390 = vadd.f32 %v185, %v389
    %v391 = vpop.f32.mrf.mxu0
    %v392 = vadd.f32 %v187, %v391
    %393 = vdwg.mxu0
    %v394 = vtanh.pop %v390
    %v395 = vtanh.pop %v392
    %v396 = vmul.f32 %v93, %v394
    %v397 = vmul.f32 %v94, %v395
    %v398 = vadd.f32 %v396, %v95
    %v399 = vadd.f32 %v397, %v96
    %v400 = vmul.f32 %v398, 0.0
    %v401 = vmul.f32 %v398, %v399
    %403 = vrot.lane.b32.xlu0 %v401, 64
    %v404 = vpop.permute.xlu0 %403
    %v406 = vadd.f32 %v400, %v404
    %v407 = vtanh.pop %v406
    %v408 = vmul.f32 %v399, %v407
    %409 = vrot.lane.b32.xlu0 %v76, 64
    %v410 = vpop.permute.xlu0 %409
    %v412 = vmul.f32 %v408, %v410
    %414 = vrot.lane.b32.xlu0 %v412, 64
    %v415 = vpop.permute.xlu0 %414
    %v417 = vsel %vm114, %v415, 0.0
    %418 = vadd.xlane.f32.xlu0 %v417
    %v419 = vpop.xlane.xlu0 %418
    %v420 = vadd.f32 %v419, %v82
    %422 = vrot.lane.b32.xlu0 %v408, 64
    %v423 = vpop.permute.xlu0 %422
    %v424 = vsel %vm114, %v423, 0
    %426 = vmatprep.subr.mxu0 0.0
    %427 = vmatpush1.msra.mxu0 0.0
    %428 = vmatprep.subr.mxu0 0.0
    %429 = vmatpush1.msra.mxu0 0.0
    %430 = vmatprep.subr.mxu0 0.0
    %431 = vmatpush1.msra.mxu0 0.0
    %432 = vmatprep.subr.mxu0 0.0
    %433 = vmatpush1.msra.mxu0 0.0
    %434 = vmatprep.subr.mxu0 0.0
    %435 = vmatpush1.msra.mxu0 0.0
    %436 = vmatprep.subr.mxu0 0.0
    %437 = vmatpush1.msra.mxu0 0.0
    %438 = vmatprep.subr.mxu0 0.0
    %439 = vmatpush1.msra.mxu0 0.0
    %440 = vmatprep.subr.mxu0 0.0
    %441 = vmatpush1.msra.mxu0 0.0
    %442 = vmatprep.subr.mxu0 %v113
    %443 = vmatpush1.msra.mxu0 %v112
    %444 = vmatprep.subr.mxu0 %v111
    %445 = vmatpush1.msra.mxu0 %v110
    %446 = vmatprep.subr.mxu0 %v109
    %447 = vmatpush1.msra.mxu0 %v108
    %448 = vmatprep.subr.mxu0 %v107
    %449 = vmatpush1.msra.mxu0 %v106
    %450 = vmatprep.subr.mxu0 %v105
    %451 = vmatpush1.msra.mxu0 %v104
    %452 = vmatprep.subr.mxu0 %v103
    %453 = vmatpush1.msra.mxu0 %v102
    %454 = vmatprep.subr.mxu0 %v101
    %455 = vmatpush1.msra.mxu0 %v100
    %456 = vmatprep.subr.mxu0 %v99
    %457 = vmatpush1.msra.mxu0 %v98
    %458 = vmatprep.subr.mxu0 0.0
    %459 = vmatpush2.msra.mxu0 0.0
    %460 = vmatprep.subr.mxu0 0.0
    %461 = vmatpush2.msra.mxu0 0.0
    %462 = vmatprep.subr.mxu0 0.0
    %463 = vmatpush2.msra.mxu0 0.0
    %464 = vmatprep.subr.mxu0 0.0
    %465 = vmatpush2.msra.mxu0 0.0
    %466 = vmatprep.subr.mxu0 0.0
    %467 = vmatpush2.msra.mxu0 0.0
    %468 = vmatprep.subr.mxu0 0.0
    %469 = vmatpush2.msra.mxu0 0.0
    %470 = vmatprep.subr.mxu0 0.0
    %471 = vmatpush2.msra.mxu0 0.0
    %472 = vmatprep.subr.mxu0 0.0
    %473 = vmatpush2.msra.mxu0 0.0
    %474 = vmatprep.subr.mxu0 0.0
    %475 = vmatpush2.msra.mxu0 0.0
    %476 = vmatprep.subr.mxu0 0.0
    %477 = vmatpush2.msra.mxu0 0.0
    %478 = vmatprep.subr.mxu0 0.0
    %479 = vmatpush2.msra.mxu0 0.0
    %480 = vmatprep.subr.mxu0 0.0
    %481 = vmatpush2.msra.mxu0 0.0
    %482 = vmatprep.subr.mxu0 0.0
    %483 = vmatpush2.msra.mxu0 0.0
    %484 = vmatprep.subr.mxu0 0.0
    %485 = vmatpush2.msra.mxu0 0.0
    %486 = vmatprep.subr.mxu0 0.0
    %487 = vmatpush2.msra.mxu0 0.0
    %488 = vmatprep.subr.mxu0 0.0
    %489 = vmatpush2.msra.mxu0 0.0
    %490 = vmatprep.mubr.f32.mxu0 0.0
    %491 = vmatmul.mubr.f32.gmra.mxu0 %v424
    %v492 = vpop.f32.mrf.mxu0
    %v493 = vadd.f32 %v52, %v492
    %v494 = vpop.f32.mrf.mxu0
    %v495 = vadd.f32 %v56, %v494
    %496 = vdwg.mxu0
    %497 = vset.pattern.permute.xlu0 1
    %498 = vperm.xlu0 %497, %v97
    %v499 = vpop.permute.xlu0 %498
    %v501 = vmul.f32 %v499, %v64
    %v502 = vmul.f32 %v499, %v68
    %503 = vmatprep.subr.mxu0 0.0
    %504 = vmatpush1.msra.mxu0 0.0
    %505 = vmatprep.subr.mxu0 0.0
    %506 = vmatpush1.msra.mxu0 0.0
    %507 = vmatprep.subr.mxu0 0.0
    %508 = vmatpush1.msra.mxu0 0.0
    %509 = vmatprep.subr.mxu0 0.0
    %510 = vmatpush1.msra.mxu0 0.0
    %511 = vmatprep.subr.mxu0 0.0
    %512 = vmatpush1.msra.mxu0 0.0
    %513 = vmatprep.subr.mxu0 0.0
    %514 = vmatpush1.msra.mxu0 0.0
    %515 = vmatprep.subr.mxu0 0.0
    %516 = vmatpush1.msra.mxu0 0.0
    %517 = vmatprep.subr.mxu0 0.0
    %518 = vmatpush1.msra.mxu0 0.0
    %519 = vmatprep.subr.mxu0 %v211
    %520 = vmatpush1.msra.mxu0 %v210
    %521 = vmatprep.subr.mxu0 %v209
    %522 = vmatpush1.msra.mxu0 %v208
    %523 = vmatprep.subr.mxu0 %v207
    %524 = vmatpush1.msra.mxu0 %v206
    %525 = vmatprep.subr.mxu0 %v205
    %526 = vmatpush1.msra.mxu0 %v204
    %527 = vmatprep.subr.mxu0 %v203
    %528 = vmatpush1.msra.mxu0 %v202
    %529 = vmatprep.subr.mxu0 %v201
    %530 = vmatpush1.msra.mxu0 %v200
    %531 = vmatprep.subr.mxu0 %v199
    %532 = vmatpush1.msra.mxu0 %v198
    %533 = vmatprep.subr.mxu0 %v197
    %534 = vmatpush1.msra.mxu0 %v196
    %535 = vmatprep.subr.mxu0 0.0
    %536 = vmatpush2.msra.mxu0 0.0
    %537 = vmatprep.subr.mxu0 0.0
    %538 = vmatpush2.msra.mxu0 0.0
    %539 = vmatprep.subr.mxu0 0.0
    %540 = vmatpush2.msra.mxu0 0.0
    %541 = vmatprep.subr.mxu0 0.0
    %542 = vmatpush2.msra.mxu0 0.0
    %543 = vmatprep.subr.mxu0 0.0
    %544 = vmatpush2.msra.mxu0 0.0
    %545 = vmatprep.subr.mxu0 0.0
    %546 = vmatpush2.msra.mxu0 0.0
    %547 = vmatprep.subr.mxu0 0.0
    %548 = vmatpush2.msra.mxu0 0.0
    %549 = vmatprep.subr.mxu0 0.0
    %550 = vmatpush2.msra.mxu0 0.0
    %551 = vmatprep.subr.mxu0 0.0
    %552 = vmatpush2.msra.mxu0 0.0
    %553 = vmatprep.subr.mxu0 0.0
    %554 = vmatpush2.msra.mxu0 0.0
    %555 = vmatprep.subr.mxu0 0.0
    %556 = vmatpush2.msra.mxu0 0.0
    %557 = vmatprep.subr.mxu0 0.0
    %558 = vmatpush2.msra.mxu0 0.0
    %559 = vmatprep.subr.mxu0 0.0
    %560 = vmatpush2.msra.mxu0 0.0
    %561 = vmatprep.subr.mxu0 0.0
    %562 = vmatpush2.msra.mxu0 0.0
    %563 = vmatprep.subr.mxu0 0.0
    %564 = vmatpush2.msra.mxu0 0.0
    %565 = vmatprep.subr.mxu0 0.0
    %566 = vmatpush2.msra.mxu0 0.0
    %567 = vmatprep.mubr.f32.mxu0 0.0
    %568 = vmatmul.mubr.f32.gmra.mxu0 %v321
    %v569 = vpop.f32.mrf.mxu0
    %v570 = vadd.f32 0.0, %v569
    %v571 = vpop.f32.mrf.mxu0
    %v572 = vadd.f32 0.0, %v571
    %573 = vdwg.mxu0
    %v574 = vadd.f32 %v501, %v570
    %v575 = vadd.f32 %v502, %v572
    %v576 = vadd.f32 %v574, %v40
    %v577 = vadd.f32 %v575, %v44
    %v578 = vtanh.pop %v576
    %v579 = vtanh.pop %v577
    %v580 = vmul.f32 %v93, %v578
    %v581 = vmul.f32 %v94, %v579
    %v582 = vadd.f32 %v580, %v95
    %v583 = vadd.f32 %v581, %v96
    %v584 = vmul.f32 %v582, %v299
    %v585 = vmul.f32 %v582, %v583
    %587 = vrot.lane.b32.xlu0 %v585, 64
    %v588 = vpop.permute.xlu0 %587
    %v590 = vadd.f32 %v584, %v588
    %v591 = vtanh.pop %v590
    %v592 = vmul.f32 %v583, %v591
    %594 = vrot.lane.b32.xlu0 %v592, 64
    %v595 = vpop.permute.xlu0 %594
    %v596 = vsel %vm114, %v595, 0
    %598 = vmatprep.subr.mxu0 0.0
    %599 = vmatpush1.msra.mxu0 0.0
    %600 = vmatprep.subr.mxu0 0.0
    %601 = vmatpush1.msra.mxu0 0.0
    %602 = vmatprep.subr.mxu0 0.0
    %603 = vmatpush1.msra.mxu0 0.0
    %604 = vmatprep.subr.mxu0 0.0
    %605 = vmatpush1.msra.mxu0 0.0
    %606 = vmatprep.subr.mxu0 0.0
    %607 = vmatpush1.msra.mxu0 0.0
    %608 = vmatprep.subr.mxu0 0.0
    %609 = vmatpush1.msra.mxu0 0.0
    %610 = vmatprep.subr.mxu0 0.0
    %611 = vmatpush1.msra.mxu0 0.0
    %612 = vmatprep.subr.mxu0 0.0
    %613 = vmatpush1.msra.mxu0 0.0
    %614 = vmatprep.subr.mxu0 %v317
    %615 = vmatpush1.msra.mxu0 %v316
    %616 = vmatprep.subr.mxu0 %v315
    %617 = vmatpush1.msra.mxu0 %v314
    %618 = vmatprep.subr.mxu0 %v313
    %619 = vmatpush1.msra.mxu0 %v312
    %620 = vmatprep.subr.mxu0 %v311
    %621 = vmatpush1.msra.mxu0 %v310
    %622 = vmatprep.subr.mxu0 %v309
    %623 = vmatpush1.msra.mxu0 %v308
    %624 = vmatprep.subr.mxu0 %v307
    %625 = vmatpush1.msra.mxu0 %v306
    %626 = vmatprep.subr.mxu0 %v305
    %627 = vmatpush1.msra.mxu0 %v304
    %628 = vmatprep.subr.mxu0 %v303
    %629 = vmatpush1.msra.mxu0 %v302
    %630 = vmatprep.subr.mxu0 0.0
    %631 = vmatpush2.msra.mxu0 0.0
    %632 = vmatprep.subr.mxu0 0.0
    %633 = vmatpush2.msra.mxu0 0.0
    %634 = vmatprep.subr.mxu0 0.0
    %635 = vmatpush2.msra.mxu0 0.0
    %636 = vmatprep.subr.mxu0 0.0
    %637 = vmatpush2.msra.mxu0 0.0
    %638 = vmatprep.subr.mxu0 0.0
    %639 = vmatpush2.msra.mxu0 0.0
    %640 = vmatprep.subr.mxu0 0.0
    %641 = vmatpush2.msra.mxu0 0.0
    %642 = vmatprep.subr.mxu0 0.0
    %643 = vmatpush2.msra.mxu0 0.0
    %644 = vmatprep.subr.mxu0 0.0
    %645 = vmatpush2.msra.mxu0 0.0
    %646 = vmatprep.subr.mxu0 0.0
    %647 = vmatpush2.msra.mxu0 0.0
    %648 = vmatprep.subr.mxu0 0.0
    %649 = vmatpush2.msra.mxu0 0.0
    %650 = vmatprep.subr.mxu0 0.0
    %651 = vmatpush2.msra.mxu0 0.0
    %652 = vmatprep.subr.mxu0 0.0
    %653 = vmatpush2.msra.mxu0 0.0
    %654 = vmatprep.subr.mxu0 0.0
    %655 = vmatpush2.msra.mxu0 0.0
    %656 = vmatprep.subr.mxu0 0.0
    %657 = vmatpush2.msra.mxu0 0.0
    %658 = vmatprep.subr.mxu0 0.0
    %659 = vmatpush2.msra.mxu0 0.0
    %660 = vmatprep.subr.mxu0 0.0
    %661 = vmatpush2.msra.mxu0 0.0
    %662 = vmatprep.mubr.f32.mxu0 0.0
    %663 = vmatmul.mubr.f32.gmra.mxu0 %v596
    %v664 = vpop.f32.mrf.mxu0
    %v665 = vadd.f32 %v493, %v664
    %v666 = vpop.f32.mrf.mxu0
    %v667 = vadd.f32 %v495, %v666
    %668 = vdwg.mxu0
    %v669 = vtanh.pop %v665
    %v670 = vtanh.pop %v667
    %v671 = vmul.f32 %v93, %v669
    %v672 = vmul.f32 %v94, %v670
    %v673 = vadd.f32 %v671, %v95
    %v674 = vadd.f32 %v672, %v96
    %v675 = vmul.f32 %v673, %v406
    %v676 = vmul.f32 %v673, %v674
    %678 = vrot.lane.b32.xlu0 %v676, 64
    %v679 = vpop.permute.xlu0 %678
    %v681 = vadd.f32 %v675, %v679
    %v682 = vtanh.pop %v681
    %v683 = vmul.f32 %v674, %v682
    %v684 = vmul.f32 %v683, %v410
    %686 = vrot.lane.b32.xlu0 %v684, 64
    %v687 = vpop.permute.xlu0 %686
    %v689 = vsel %vm114, %v687, 0.0
    %690 = vadd.xlane.f32.xlu0 %v689
    %v691 = vpop.xlane.xlu0 %690
    %v692 = vadd.f32 %v691, %v82
    %694 = vrot.lane.b32.xlu0 %v683, 64
    %v695 = vpop.permute.xlu0 %694
    %v696 = vsel %vm114, %v695, 0
    %698 = vmatprep.subr.mxu0 0.0
    %699 = vmatpush1.msra.mxu0 0.0
    %700 = vmatprep.subr.mxu0 0.0
    %701 = vmatpush1.msra.mxu0 0.0
    %702 = vmatprep.subr.mxu0 0.0
    %703 = vmatpush1.msra.mxu0 0.0
    %704 = vmatprep.subr.mxu0 0.0
    %705 = vmatpush1.msra.mxu0 0.0
    %706 = vmatprep.subr.mxu0 0.0
    %707 = vmatpush1.msra.mxu0 0.0
    %708 = vmatprep.subr.mxu0 0.0
    %709 = vmatpush1.msra.mxu0 0.0
    %710 = vmatprep.subr.mxu0 0.0
    %711 = vmatpush1.msra.mxu0 0.0
    %712 = vmatprep.subr.mxu0 0.0
    %713 = vmatpush1.msra.mxu0 0.0
    %714 = vmatprep.subr.mxu0 %v113
    %715 = vmatpush1.msra.mxu0 %v112
    %716 = vmatprep.subr.mxu0 %v111
    %717 = vmatpush1.msra.mxu0 %v110
    %718 = vmatprep.subr.mxu0 %v109
    %719 = vmatpush1.msra.mxu0 %v108
    %720 = vmatprep.subr.mxu0 %v107
    %721 = vmatpush1.msra.mxu0 %v106
    %722 = vmatprep.subr.mxu0 %v105
    %723 = vmatpush1.msra.mxu0 %v104
    %724 = vmatprep.subr.mxu0 %v103
    %725 = vmatpush1.msra.mxu0 %v102
    %726 = vmatprep.subr.mxu0 %v101
    %727 = vmatpush1.msra.mxu0 %v100
    %728 = vmatprep.subr.mxu0 %v99
    %729 = vmatpush1.msra.mxu0 %v98
    %730 = vmatprep.subr.mxu0 0.0
    %731 = vmatpush2.msra.mxu0 0.0
    %732 = vmatprep.subr.mxu0 0.0
    %733 = vmatpush2.msra.mxu0 0.0
    %734 = vmatprep.subr.mxu0 0.0
    %735 = vmatpush2.msra.mxu0 0.0
    %736 = vmatprep.subr.mxu0 0.0
    %737 = vmatpush2.msra.mxu0 0.0
    %738 = vmatprep.subr.mxu0 0.0
    %739 = vmatpush2.msra.mxu0 0.0
    %740 = vmatprep.subr.mxu0 0.0
    %741 = vmatpush2.msra.mxu0 0.0
    %742 = vmatprep.subr.mxu0 0.0
    %743 = vmatpush2.msra.mxu0 0.0
    %744 = vmatprep.subr.mxu0 0.0
    %745 = vmatpush2.msra.mxu0 0.0
    %746 = vmatprep.subr.mxu0 0.0
    %747 = vmatpush2.msra.mxu0 0.0
    %748 = vmatprep.subr.mxu0 0.0
    %749 = vmatpush2.msra.mxu0 0.0
    %750 = vmatprep.subr.mxu0 0.0
    %751 = vmatpush2.msra.mxu0 0.0
    %752 = vmatprep.subr.mxu0 0.0
    %753 = vmatpush2.msra.mxu0 0.0
    %754 = vmatprep.subr.mxu0 0.0
    %755 = vmatpush2.msra.mxu0 0.0
    %756 = vmatprep.subr.mxu0 0.0
    %757 = vmatpush2.msra.mxu0 0.0
    %758 = vmatprep.subr.mxu0 0.0
    %759 = vmatpush2.msra.mxu0 0.0
    %760 = vmatprep.subr.mxu0 0.0
    %761 = vmatpush2.msra.mxu0 0.0
    %762 = vmatprep.mubr.f32.mxu0 0.0
    %763 = vmatmul.mubr.f32.gmra.mxu0 %v696
    %v764 = vpop.f32.mrf.mxu0
    %v765 = vadd.f32 %v52, %v764
    %v766 = vpop.f32.mrf.mxu0
    %v767 = vadd.f32 %v56, %v766
    %768 = vdwg.mxu0
    %769 = vset.pattern.permute.xlu0 2
    %770 = vperm.xlu0 %769, %v97
    %v771 = vpop.permute.xlu0 %770
    %v773 = vmul.f32 %v771, %v64
    %v774 = vmul.f32 %v771, %v68
    %775 = vmatprep.subr.mxu0 0.0
    %776 = vmatpush1.msra.mxu0 0.0
    %777 = vmatprep.subr.mxu0 0.0
    %778 = vmatpush1.msra.mxu0 0.0
    %779 = vmatprep.subr.mxu0 0.0
    %780 = vmatpush1.msra.mxu0 0.0
    %781 = vmatprep.subr.mxu0 0.0
    %782 = vmatpush1.msra.mxu0 0.0
    %783 = vmatprep.subr.mxu0 0.0
    %784 = vmatpush1.msra.mxu0 0.0
    %785 = vmatprep.subr.mxu0 0.0
    %786 = vmatpush1.msra.mxu0 0.0
    %787 = vmatprep.subr.mxu0 0.0
    %788 = vmatpush1.msra.mxu0 0.0
    %789 = vmatprep.subr.mxu0 0.0
    %790 = vmatpush1.msra.mxu0 0.0
    %791 = vmatprep.subr.mxu0 %v211
    %792 = vmatpush1.msra.mxu0 %v210
    %793 = vmatprep.subr.mxu0 %v209
    %794 = vmatpush1.msra.mxu0 %v208
    %795 = vmatprep.subr.mxu0 %v207
    %796 = vmatpush1.msra.mxu0 %v206
    %797 = vmatprep.subr.mxu0 %v205
    %798 = vmatpush1.msra.mxu0 %v204
    %799 = vmatprep.subr.mxu0 %v203
    %800 = vmatpush1.msra.mxu0 %v202
    %801 = vmatprep.subr.mxu0 %v201
    %802 = vmatpush1.msra.mxu0 %v200
    %803 = vmatprep.subr.mxu0 %v199
    %804 = vmatpush1.msra.mxu0 %v198
    %805 = vmatprep.subr.mxu0 %v197
    %806 = vmatpush1.msra.mxu0 %v196
    %807 = vmatprep.subr.mxu0 0.0
    %808 = vmatpush2.msra.mxu0 0.0
    %809 = vmatprep.subr.mxu0 0.0
    %810 = vmatpush2.msra.mxu0 0.0
    %811 = vmatprep.subr.mxu0 0.0
    %812 = vmatpush2.msra.mxu0 0.0
    %813 = vmatprep.subr.mxu0 0.0
    %814 = vmatpush2.msra.mxu0 0.0
    %815 = vmatprep.subr.mxu0 0.0
    %816 = vmatpush2.msra.mxu0 0.0
    %817 = vmatprep.subr.mxu0 0.0
    %818 = vmatpush2.msra.mxu0 0.0
    %819 = vmatprep.subr.mxu0 0.0
    %820 = vmatpush2.msra.mxu0 0.0
    %821 = vmatprep.subr.mxu0 0.0
    %822 = vmatpush2.msra.mxu0 0.0
    %823 = vmatprep.subr.mxu0 0.0
    %824 = vmatpush2.msra.mxu0 0.0
    %825 = vmatprep.subr.mxu0 0.0
    %826 = vmatpush2.msra.mxu0 0.0
    %827 = vmatprep.subr.mxu0 0.0
    %828 = vmatpush2.msra.mxu0 0.0
    %829 = vmatprep.subr.mxu0 0.0
    %830 = vmatpush2.msra.mxu0 0.0
    %831 = vmatprep.subr.mxu0 0.0
    %832 = vmatpush2.msra.mxu0 0.0
    %833 = vmatprep.subr.mxu0 0.0
    %834 = vmatpush2.msra.mxu0 0.0
    %835 = vmatprep.subr.mxu0 0.0
    %836 = vmatpush2.msra.mxu0 0.0
    %837 = vmatprep.subr.mxu0 0.0
    %838 = vmatpush2.msra.mxu0 0.0
    %839 = vmatprep.mubr.f32.mxu0 0.0
    %840 = vmatmul.mubr.f32.gmra.mxu0 %v596
    %v841 = vpop.f32.mrf.mxu0
    %v842 = vadd.f32 0.0, %v841
    %v843 = vpop.f32.mrf.mxu0
    %v844 = vadd.f32 0.0, %v843
    %845 = vdwg.mxu0
    %v846 = vadd.f32 %v773, %v842
    %v847 = vadd.f32 %v774, %v844
    %v848 = vadd.f32 %v846, %v40
    %v849 = vadd.f32 %v847, %v44
    %v850 = vtanh.pop %v848
    %v851 = vtanh.pop %v849
    %v852 = vmul.f32 %v93, %v850
    %v853 = vmul.f32 %v94, %v851
    %v854 = vadd.f32 %v852, %v95
    %v855 = vadd.f32 %v853, %v96
    %v856 = vmul.f32 %v854, %v590
    %v857 = vmul.f32 %v854, %v855
    %859 = vrot.lane.b32.xlu0 %v857, 64
    %v860 = vpop.permute.xlu0 %859
    %v862 = vadd.f32 %v856, %v860
    %v863 = vtanh.pop %v862
    %v864 = vmul.f32 %v855, %v863
    %866 = vrot.lane.b32.xlu0 %v864, 64
    %v867 = vpop.permute.xlu0 %866
    %v868 = vsel %vm114, %v867, 0
    %870 = vmatprep.subr.mxu0 0.0
    %871 = vmatpush1.msra.mxu0 0.0
    %872 = vmatprep.subr.mxu0 0.0
    %873 = vmatpush1.msra.mxu0 0.0
    %874 = vmatprep.subr.mxu0 0.0
    %875 = vmatpush1.msra.mxu0 0.0
    %876 = vmatprep.subr.mxu0 0.0
    %877 = vmatpush1.msra.mxu0 0.0
    %878 = vmatprep.subr.mxu0 0.0
    %879 = vmatpush1.msra.mxu0 0.0
    %880 = vmatprep.subr.mxu0 0.0
    %881 = vmatpush1.msra.mxu0 0.0
    %882 = vmatprep.subr.mxu0 0.0
    %883 = vmatpush1.msra.mxu0 0.0
    %884 = vmatprep.subr.mxu0 0.0
    %885 = vmatpush1.msra.mxu0 0.0
    %886 = vmatprep.subr.mxu0 %v317
    %887 = vmatpush1.msra.mxu0 %v316
    %888 = vmatprep.subr.mxu0 %v315
    %889 = vmatpush1.msra.mxu0 %v314
    %890 = vmatprep.subr.mxu0 %v313
    %891 = vmatpush1.msra.mxu0 %v312
    %892 = vmatprep.subr.mxu0 %v311
    %893 = vmatpush1.msra.mxu0 %v310
    %894 = vmatprep.subr.mxu0 %v309
    %895 = vmatpush1.msra.mxu0 %v308
    %896 = vmatprep.subr.mxu0 %v307
    %897 = vmatpush1.msra.mxu0 %v306
    %898 = vmatprep.subr.mxu0 %v305
    %899 = vmatpush1.msra.mxu0 %v304
    %900 = vmatprep.subr.mxu0 %v303
    %901 = vmatpush1.msra.mxu0 %v302
    %902 = vmatprep.subr.mxu0 0.0
    %903 = vmatpush2.msra.mxu0 0.0
    %904 = vmatprep.subr.mxu0 0.0
    %905 = vmatpush2.msra.mxu0 0.0
    %906 = vmatprep.subr.mxu0 0.0
    %907 = vmatpush2.msra.mxu0 0.0
    %908 = vmatprep.subr.mxu0 0.0
    %909 = vmatpush2.msra.mxu0 0.0
    %910 = vmatprep.subr.mxu0 0.0
    %911 = vmatpush2.msra.mxu0 0.0
    %912 = vmatprep.subr.mxu0 0.0
    %913 = vmatpush2.msra.mxu0 0.0
    %914 = vmatprep.subr.mxu0 0.0
    %915 = vmatpush2.msra.mxu0 0.0
    %916 = vmatprep.subr.mxu0 0.0
    %917 = vmatpush2.msra.mxu0 0.0
    %918 = vmatprep.subr.mxu0 0.0
    %919 = vmatpush2.msra.mxu0 0.0
    %920 = vmatprep.subr.mxu0 0.0
    %921 = vmatpush2.msra.mxu0 0.0
    %922 = vmatprep.subr.mxu0 0.0
    %923 = vmatpush2.msra.mxu0 0.0
    %924 = vmatprep.subr.mxu0 0.0
    %925 = vmatpush2.msra.mxu0 0.0
    %926 = vmatprep.subr.mxu0 0.0
    %927 = vmatpush2.msra.mxu0 0.0
    %928 = vmatprep.subr.mxu0 0.0
    %929 = vmatpush2.msra.mxu0 0.0
    %930 = vmatprep.subr.mxu0 0.0
    %931 = vmatpush2.msra.mxu0 0.0
    %932 = vmatprep.subr.mxu0 0.0
    %933 = vmatpush2.msra.mxu0 0.0
    %934 = vmatprep.mubr.f32.mxu0 0.0
    %935 = vmatmul.mubr.f32.gmra.mxu0 %v868
    %v936 = vpop.f32.mrf.mxu0
    %v937 = vadd.f32 %v765, %v936
    %v938 = vpop.f32.mrf.mxu0
    %v939 = vadd.f32 %v767, %v938
    %940 = vdwg.mxu0
    %v941 = vtanh.pop %v937
    %v942 = vtanh.pop %v939
    %v943 = vmul.f32 %v93, %v941
    %v944 = vmul.f32 %v94, %v942
    %v945 = vadd.f32 %v943, %v95
    %v946 = vadd.f32 %v944, %v96
    %v947 = vmul.f32 %v945, %v681
    %v948 = vmul.f32 %v945, %v946
    %950 = vrot.lane.b32.xlu0 %v948, 64
    %v951 = vpop.permute.xlu0 %950
    %v953 = vadd.f32 %v947, %v951
    %v954 = vtanh.pop %v953
    %v955 = vmul.f32 %v946, %v954
    %v956 = vmul.f32 %v955, %v410
    %958 = vrot.lane.b32.xlu0 %v956, 64
    %v959 = vpop.permute.xlu0 %958
    %v961 = vsel %vm114, %v959, 0.0
    %962 = vadd.xlane.f32.xlu0 %v961
    %v963 = vpop.xlane.xlu0 %962
    %v964 = vadd.f32 %v963, %v82
    %966 = vrot.lane.b32.xlu0 %v955, 64
    %v967 = vpop.permute.xlu0 %966
    %v968 = vsel %vm114, %v967, 0
    %970 = vmatprep.subr.mxu0 0.0
    %971 = vmatpush1.msra.mxu0 0.0
    %972 = vmatprep.subr.mxu0 0.0
    %973 = vmatpush1.msra.mxu0 0.0
    %974 = vmatprep.subr.mxu0 0.0
    %975 = vmatpush1.msra.mxu0 0.0
    %976 = vmatprep.subr.mxu0 0.0
    %977 = vmatpush1.msra.mxu0 0.0
    %978 = vmatprep.subr.mxu0 0.0
    %979 = vmatpush1.msra.mxu0 0.0
    %980 = vmatprep.subr.mxu0 0.0
    %981 = vmatpush1.msra.mxu0 0.0
    %982 = vmatprep.subr.mxu0 0.0
    %983 = vmatpush1.msra.mxu0 0.0
    %984 = vmatprep.subr.mxu0 0.0
    %985 = vmatpush1.msra.mxu0 0.0
    %986 = vmatprep.subr.mxu0 %v113
    %987 = vmatpush1.msra.mxu0 %v112
    %988 = vmatprep.subr.mxu0 %v111
    %989 = vmatpush1.msra.mxu0 %v110
    %990 = vmatprep.subr.mxu0 %v109
    %991 = vmatpush1.msra.mxu0 %v108
    %992 = vmatprep.subr.mxu0 %v107
    %993 = vmatpush1.msra.mxu0 %v106
    %994 = vmatprep.subr.mxu0 %v105
    %995 = vmatpush1.msra.mxu0 %v104
    %996 = vmatprep.subr.mxu0 %v103
    %997 = vmatpush1.msra.mxu0 %v102
    %998 = vmatprep.subr.mxu0 %v101
    %999 = vmatpush1.msra.mxu0 %v100
    %1000 = vmatprep.subr.mxu0 %v99
    %1001 = vmatpush1.msra.mxu0 %v98
    %1002 = vmatprep.subr.mxu0 0.0
    %1003 = vmatpush2.msra.mxu0 0.0
    %1004 = vmatprep.subr.mxu0 0.0
    %1005 = vmatpush2.msra.mxu0 0.0
    %1006 = vmatprep.subr.mxu0 0.0
    %1007 = vmatpush2.msra.mxu0 0.0
    %1008 = vmatprep.subr.mxu0 0.0
    %1009 = vmatpush2.msra.mxu0 0.0
    %1010 = vmatprep.subr.mxu0 0.0
    %1011 = vmatpush2.msra.mxu0 0.0
    %1012 = vmatprep.subr.mxu0 0.0
    %1013 = vmatpush2.msra.mxu0 0.0
    %1014 = vmatprep.subr.mxu0 0.0
    %1015 = vmatpush2.msra.mxu0 0.0
    %1016 = vmatprep.subr.mxu0 0.0
    %1017 = vmatpush2.msra.mxu0 0.0
    %1018 = vmatprep.subr.mxu0 0.0
    %1019 = vmatpush2.msra.mxu0 0.0
    %1020 = vmatprep.subr.mxu0 0.0
    %1021 = vmatpush2.msra.mxu0 0.0
    %1022 = vmatprep.subr.mxu0 0.0
    %1023 = vmatpush2.msra.mxu0 0.0
    %1024 = vmatprep.subr.mxu0 0.0
    %1025 = vmatpush2.msra.mxu0 0.0
    %1026 = vmatprep.subr.mxu0 0.0
    %1027 = vmatpush2.msra.mxu0 0.0
    %1028 = vmatprep.subr.mxu0 0.0
    %1029 = vmatpush2.msra.mxu0 0.0
    %1030 = vmatprep.subr.mxu0 0.0
    %1031 = vmatpush2.msra.mxu0 0.0
    %1032 = vmatprep.subr.mxu0 0.0
    %1033 = vmatpush2.msra.mxu0 0.0
    %1034 = vmatprep.mubr.f32.mxu0 0.0
    %1035 = vmatmul.mubr.f32.gmra.mxu0 %v968
    %v1036 = vpop.f32.mrf.mxu0
    %v1037 = vadd.f32 %v52, %v1036
    %v1038 = vpop.f32.mrf.mxu0
    %v1039 = vadd.f32 %v56, %v1038
    %1040 = vdwg.mxu0
    %1041 = vset.pattern.permute.xlu0 3
    %1042 = vperm.xlu0 %1041, %v97
    %v1043 = vpop.permute.xlu0 %1042
    %v1045 = vmul.f32 %v1043, %v64
    %v1046 = vmul.f32 %v1043, %v68
    %1047 = vmatprep.subr.mxu0 0.0
    %1048 = vmatpush1.msra.mxu0 0.0
    %1049 = vmatprep.subr.mxu0 0.0
    %1050 = vmatpush1.msra.mxu0 0.0
    %1051 = vmatprep.subr.mxu0 0.0
    %1052 = vmatpush1.msra.mxu0 0.0
    %1053 = vmatprep.subr.mxu0 0.0
    %1054 = vmatpush1.msra.mxu0 0.0
    %1055 = vmatprep.subr.mxu0 0.0
    %1056 = vmatpush1.msra.mxu0 0.0
    %1057 = vmatprep.subr.mxu0 0.0
    %1058 = vmatpush1.msra.mxu0 0.0
    %1059 = vmatprep.subr.mxu0 0.0
    %1060 = vmatpush1.msra.mxu0 0.0
    %1061 = vmatprep.subr.mxu0 0.0
    %1062 = vmatpush1.msra.mxu0 0.0
    %1063 = vmatprep.subr.mxu0 %v211
    %1064 = vmatpush1.msra.mxu0 %v210
    %1065 = vmatprep.subr.mxu0 %v209
    %1066 = vmatpush1.msra.mxu0 %v208
    %1067 = vmatprep.subr.mxu0 %v207
    %1068 = vmatpush1.msra.mxu0 %v206
    %1069 = vmatprep.subr.mxu0 %v205
    %1070 = vmatpush1.msra.mxu0 %v204
    %1071 = vmatprep.subr.mxu0 %v203
    %1072 = vmatpush1.msra.mxu0 %v202
    %1073 = vmatprep.subr.mxu0 %v201
    %1074 = vmatpush1.msra.mxu0 %v200
    %1075 = vmatprep.subr.mxu0 %v199
    %1076 = vmatpush1.msra.mxu0 %v198
    %1077 = vmatprep.subr.mxu0 %v197
    %1078 = vmatpush1.msra.mxu0 %v196
    %1079 = vmatprep.subr.mxu0 0.0
    %1080 = vmatpush2.msra.mxu0 0.0
    %1081 = vmatprep.subr.mxu0 0.0
    %1082 = vmatpush2.msra.mxu0 0.0
    %1083 = vmatprep.subr.mxu0 0.0
    %1084 = vmatpush2.msra.mxu0 0.0
    %1085 = vmatprep.subr.mxu0 0.0
    %1086 = vmatpush2.msra.mxu0 0.0
    %1087 = vmatprep.subr.mxu0 0.0
    %1088 = vmatpush2.msra.mxu0 0.0
    %1089 = vmatprep.subr.mxu0 0.0
    %1090 = vmatpush2.msra.mxu0 0.0
    %1091 = vmatprep.subr.mxu0 0.0
    %1092 = vmatpush2.msra.mxu0 0.0
    %1093 = vmatprep.subr.mxu0 0.0
    %1094 = vmatpush2.msra.mxu0 0.0
    %1095 = vmatprep.subr.mxu0 0.0
    %1096 = vmatpush2.msra.mxu0 0.0
    %1097 = vmatprep.subr.mxu0 0.0
    %1098 = vmatpush2.msra.mxu0 0.0
    %1099 = vmatprep.subr.mxu0 0.0
    %1100 = vmatpush2.msra.mxu0 0.0
    %1101 = vmatprep.subr.mxu0 0.0
    %1102 = vmatpush2.msra.mxu0 0.0
    %1103 = vmatprep.subr.mxu0 0.0
    %1104 = vmatpush2.msra.mxu0 0.0
    %1105 = vmatprep.subr.mxu0 0.0
    %1106 = vmatpush2.msra.mxu0 0.0
    %1107 = vmatprep.subr.mxu0 0.0
    %1108 = vmatpush2.msra.mxu0 0.0
    %1109 = vmatprep.subr.mxu0 0.0
    %1110 = vmatpush2.msra.mxu0 0.0
    %1111 = vmatprep.mubr.f32.mxu0 0.0
    %1112 = vmatmul.mubr.f32.gmra.mxu0 %v868
    %v1113 = vpop.f32.mrf.mxu0
    %v1114 = vadd.f32 0.0, %v1113
    %v1115 = vpop.f32.mrf.mxu0
    %v1116 = vadd.f32 0.0, %v1115
    %1117 = vdwg.mxu0
    %v1118 = vadd.f32 %v1045, %v1114
    %v1119 = vadd.f32 %v1046, %v1116
    %v1120 = vadd.f32 %v1118, %v40
    %v1121 = vadd.f32 %v1119, %v44
    %v1122 = vtanh.pop %v1120
    %v1123 = vtanh.pop %v1121
    %v1124 = vmul.f32 %v93, %v1122
    %v1125 = vmul.f32 %v94, %v1123
    %v1126 = vadd.f32 %v1124, %v95
    %v1127 = vadd.f32 %v1125, %v96
    %v1128 = vmul.f32 %v1126, %v862
    %v1129 = vmul.f32 %v1126, %v1127
    %1131 = vrot.lane.b32.xlu0 %v1129, 64
    %v1132 = vpop.permute.xlu0 %1131
    %v1134 = vadd.f32 %v1128, %v1132
    %v1135 = vtanh.pop %v1134
    %v1136 = vmul.f32 %v1127, %v1135
    %1138 = vrot.lane.b32.xlu0 %v1136, 64
    %v1139 = vpop.permute.xlu0 %1138
    %v1140 = vsel %vm114, %v1139, 0
    %1142 = vmatprep.subr.mxu0 0.0
    %1143 = vmatpush1.msra.mxu0 0.0
    %1144 = vmatprep.subr.mxu0 0.0
    %1145 = vmatpush1.msra.mxu0 0.0
    %1146 = vmatprep.subr.mxu0 0.0
    %1147 = vmatpush1.msra.mxu0 0.0
    %1148 = vmatprep.subr.mxu0 0.0
    %1149 = vmatpush1.msra.mxu0 0.0
    %1150 = vmatprep.subr.mxu0 0.0
    %1151 = vmatpush1.msra.mxu0 0.0
    %1152 = vmatprep.subr.mxu0 0.0
    %1153 = vmatpush1.msra.mxu0 0.0
    %1154 = vmatprep.subr.mxu0 0.0
    %1155 = vmatpush1.msra.mxu0 0.0
    %1156 = vmatprep.subr.mxu0 0.0
    %1157 = vmatpush1.msra.mxu0 0.0
    %1158 = vmatprep.subr.mxu0 %v317
    %1159 = vmatpush1.msra.mxu0 %v316
    %1160 = vmatprep.subr.mxu0 %v315
    %1161 = vmatpush1.msra.mxu0 %v314
    %1162 = vmatprep.subr.mxu0 %v313
    %1163 = vmatpush1.msra.mxu0 %v312
    %1164 = vmatprep.subr.mxu0 %v311
    %1165 = vmatpush1.msra.mxu0 %v310
    %1166 = vmatprep.subr.mxu0 %v309
    %1167 = vmatpush1.msra.mxu0 %v308
    %1168 = vmatprep.subr.mxu0 %v307
    %1169 = vmatpush1.msra.mxu0 %v306
    %1170 = vmatprep.subr.mxu0 %v305
    %1171 = vmatpush1.msra.mxu0 %v304
    %1172 = vmatprep.subr.mxu0 %v303
    %1173 = vmatpush1.msra.mxu0 %v302
    %1174 = vmatprep.subr.mxu0 0.0
    %1175 = vmatpush2.msra.mxu0 0.0
    %1176 = vmatprep.subr.mxu0 0.0
    %1177 = vmatpush2.msra.mxu0 0.0
    %1178 = vmatprep.subr.mxu0 0.0
    %1179 = vmatpush2.msra.mxu0 0.0
    %1180 = vmatprep.subr.mxu0 0.0
    %1181 = vmatpush2.msra.mxu0 0.0
    %1182 = vmatprep.subr.mxu0 0.0
    %1183 = vmatpush2.msra.mxu0 0.0
    %1184 = vmatprep.subr.mxu0 0.0
    %1185 = vmatpush2.msra.mxu0 0.0
    %1186 = vmatprep.subr.mxu0 0.0
    %1187 = vmatpush2.msra.mxu0 0.0
    %1188 = vmatprep.subr.mxu0 0.0
    %1189 = vmatpush2.msra.mxu0 0.0
    %1190 = vmatprep.subr.mxu0 0.0
    %1191 = vmatpush2.msra.mxu0 0.0
    %1192 = vmatprep.subr.mxu0 0.0
    %1193 = vmatpush2.msra.mxu0 0.0
    %1194 = vmatprep.subr.mxu0 0.0
    %1195 = vmatpush2.msra.mxu0 0.0
    %1196 = vmatprep.subr.mxu0 0.0
    %1197 = vmatpush2.msra.mxu0 0.0
    %1198 = vmatprep.subr.mxu0 0.0
    %1199 = vmatpush2.msra.mxu0 0.0
    %1200 = vmatprep.subr.mxu0 0.0
    %1201 = vmatpush2.msra.mxu0 0.0
    %1202 = vmatprep.subr.mxu0 0.0
    %1203 = vmatpush2.msra.mxu0 0.0
    %1204 = vmatprep.subr.mxu0 0.0
    %1205 = vmatpush2.msra.mxu0 0.0
    %1206 = vmatprep.mubr.f32.mxu0 0.0
    %1207 = vmatmul.mubr.f32.gmra.mxu0 %v1140
    %v1208 = vpop.f32.mrf.mxu0
    %v1209 = vadd.f32 %v1037, %v1208
    %v1210 = vpop.f32.mrf.mxu0
    %v1211 = vadd.f32 %v1039, %v1210
    %1212 = vdwg.mxu0
    %v1213 = vtanh.pop %v1209
    %v1214 = vtanh.pop %v1211
    %v1215 = vmul.f32 %v93, %v1213
    %v1216 = vmul.f32 %v94, %v1214
    %v1217 = vadd.f32 %v1215, %v95
    %v1218 = vadd.f32 %v1216, %v96
    %v1219 = vmul.f32 %v1217, %v953
    %v1220 = vmul.f32 %v1217, %v1218
    %1222 = vrot.lane.b32.xlu0 %v1220, 64
    %v1223 = vpop.permute.xlu0 %1222
    %v1225 = vadd.f32 %v1219, %v1223
    %v1226 = vtanh.pop %v1225
    %v1227 = vmul.f32 %v1218, %v1226
    %v1228 = vmul.f32 %v1227, %v410
    %1230 = vrot.lane.b32.xlu0 %v1228, 64
    %v1231 = vpop.permute.xlu0 %1230
    %v1233 = vsel %vm114, %v1231, 0.0
    %1234 = vadd.xlane.f32.xlu0 %v1233
    %v1235 = vpop.xlane.xlu0 %1234
    %v1236 = vadd.f32 %v1235, %v82
    %1238 = vrot.lane.b32.xlu0 %v1227, 64
    %v1239 = vpop.permute.xlu0 %1238
    %v1240 = vsel %vm114, %v1239, 0
    %1242 = vmatprep.subr.mxu0 0.0
    %1243 = vmatpush1.msra.mxu0 0.0
    %1244 = vmatprep.subr.mxu0 0.0
    %1245 = vmatpush1.msra.mxu0 0.0
    %1246 = vmatprep.subr.mxu0 0.0
    %1247 = vmatpush1.msra.mxu0 0.0
    %1248 = vmatprep.subr.mxu0 0.0
    %1249 = vmatpush1.msra.mxu0 0.0
    %1250 = vmatprep.subr.mxu0 0.0
    %1251 = vmatpush1.msra.mxu0 0.0
    %1252 = vmatprep.subr.mxu0 0.0
    %1253 = vmatpush1.msra.mxu0 0.0
    %1254 = vmatprep.subr.mxu0 0.0
    %1255 = vmatpush1.msra.mxu0 0.0
    %1256 = vmatprep.subr.mxu0 0.0
    %1257 = vmatpush1.msra.mxu0 0.0
    %1258 = vmatprep.subr.mxu0 %v113
    %1259 = vmatpush1.msra.mxu0 %v112
    %1260 = vmatprep.subr.mxu0 %v111
    %1261 = vmatpush1.msra.mxu0 %v110
    %1262 = vmatprep.subr.mxu0 %v109
    %1263 = vmatpush1.msra.mxu0 %v108
    %1264 = vmatprep.subr.mxu0 %v107
    %1265 = vmatpush1.msra.mxu0 %v106
    %1266 = vmatprep.subr.mxu0 %v105
    %1267 = vmatpush1.msra.mxu0 %v104
    %1268 = vmatprep.subr.mxu0 %v103
    %1269 = vmatpush1.msra.mxu0 %v102
    %1270 = vmatprep.subr.mxu0 %v101
    %1271 = vmatpush1.msra.mxu0 %v100
    %1272 = vmatprep.subr.mxu0 %v99
    %1273 = vmatpush1.msra.mxu0 %v98
    %1274 = vmatprep.subr.mxu0 0.0
    %1275 = vmatpush2.msra.mxu0 0.0
    %1276 = vmatprep.subr.mxu0 0.0
    %1277 = vmatpush2.msra.mxu0 0.0
    %1278 = vmatprep.subr.mxu0 0.0
    %1279 = vmatpush2.msra.mxu0 0.0
    %1280 = vmatprep.subr.mxu0 0.0
    %1281 = vmatpush2.msra.mxu0 0.0
    %1282 = vmatprep.subr.mxu0 0.0
    %1283 = vmatpush2.msra.mxu0 0.0
    %1284 = vmatprep.subr.mxu0 0.0
    %1285 = vmatpush2.msra.mxu0 0.0
    %1286 = vmatprep.subr.mxu0 0.0
    %1287 = vmatpush2.msra.mxu0 0.0
    %1288 = vmatprep.subr.mxu0 0.0
    %1289 = vmatpush2.msra.mxu0 0.0
    %1290 = vmatprep.subr.mxu0 0.0
    %1291 = vmatpush2.msra.mxu0 0.0
    %1292 = vmatprep.subr.mxu0 0.0
    %1293 = vmatpush2.msra.mxu0 0.0
    %1294 = vmatprep.subr.mxu0 0.0
    %1295 = vmatpush2.msra.mxu0 0.0
    %1296 = vmatprep.subr.mxu0 0.0
    %1297 = vmatpush2.msra.mxu0 0.0
    %1298 = vmatprep.subr.mxu0 0.0
    %1299 = vmatpush2.msra.mxu0 0.0
    %1300 = vmatprep.subr.mxu0 0.0
    %1301 = vmatpush2.msra.mxu0 0.0
    %1302 = vmatprep.subr.mxu0 0.0
    %1303 = vmatpush2.msra.mxu0 0.0
    %1304 = vmatprep.subr.mxu0 0.0
    %1305 = vmatpush2.msra.mxu0 0.0
    %1306 = vmatprep.mubr.f32.mxu0 0.0
    %1307 = vmatmul.mubr.f32.gmra.mxu0 %v1240
    %v1308 = vpop.f32.mrf.mxu0
    %v1309 = vadd.f32 %v52, %v1308
    %v1310 = vpop.f32.mrf.mxu0
    %v1311 = vadd.f32 %v56, %v1310
    %1312 = vdwg.mxu0
    %1313 = vset.pattern.permute.xlu0 4
    %1314 = vperm.xlu0 %1313, %v97
    %v1315 = vpop.permute.xlu0 %1314
    %v1317 = vmul.f32 %v1315, %v64
    %v1318 = vmul.f32 %v1315, %v68
    %1319 = vmatprep.subr.mxu0 0.0
    %1320 = vmatpush1.msra.mxu0 0.0
    %1321 = vmatprep.subr.mxu0 0.0
    %1322 = vmatpush1.msra.mxu0 0.0
    %1323 = vmatprep.subr.mxu0 0.0
    %1324 = vmatpush1.msra.mxu0 0.0
    %1325 = vmatprep.subr.mxu0 0.0
    %1326 = vmatpush1.msra.mxu0 0.0
    %1327 = vmatprep.subr.mxu0 0.0
    %1328 = vmatpush1.msra.mxu0 0.0
    %1329 = vmatprep.subr.mxu0 0.0
    %1330 = vmatpush1.msra.mxu0 0.0
    %1331 = vmatprep.subr.mxu0 0.0
    %1332 = vmatpush1.msra.mxu0 0.0
    %1333 = vmatprep.subr.mxu0 0.0
    %1334 = vmatpush1.msra.mxu0 0.0
    %1335 = vmatprep.subr.mxu0 %v211
    %1336 = vmatpush1.msra.mxu0 %v210
    %1337 = vmatprep.subr.mxu0 %v209
    %1338 = vmatpush1.msra.mxu0 %v208
    %1339 = vmatprep.subr.mxu0 %v207
    %1340 = vmatpush1.msra.mxu0 %v206
    %1341 = vmatprep.subr.mxu0 %v205
    %1342 = vmatpush1.msra.mxu0 %v204
    %1343 = vmatprep.subr.mxu0 %v203
    %1344 = vmatpush1.msra.mxu0 %v202
    %1345 = vmatprep.subr.mxu0 %v201
    %1346 = vmatpush1.msra.mxu0 %v200
    %1347 = vmatprep.subr.mxu0 %v199
    %1348 = vmatpush1.msra.mxu0 %v198
    %1349 = vmatprep.subr.mxu0 %v197
    %1350 = vmatpush1.msra.mxu0 %v196
    %1351 = vmatprep.subr.mxu0 0.0
    %1352 = vmatpush2.msra.mxu0 0.0
    %1353 = vmatprep.subr.mxu0 0.0
    %1354 = vmatpush2.msra.mxu0 0.0
    %1355 = vmatprep.subr.mxu0 0.0
    %1356 = vmatpush2.msra.mxu0 0.0
    %1357 = vmatprep.subr.mxu0 0.0
    %1358 = vmatpush2.msra.mxu0 0.0
    %1359 = vmatprep.subr.mxu0 0.0
    %1360 = vmatpush2.msra.mxu0 0.0
    %1361 = vmatprep.subr.mxu0 0.0
    %1362 = vmatpush2.msra.mxu0 0.0
    %1363 = vmatprep.subr.mxu0 0.0
    %1364 = vmatpush2.msra.mxu0 0.0
    %1365 = vmatprep.subr.mxu0 0.0
    %1366 = vmatpush2.msra.mxu0 0.0
    %1367 = vmatprep.subr.mxu0 0.0
    %1368 = vmatpush2.msra.mxu0 0.0
    %1369 = vmatprep.subr.mxu0 0.0
    %1370 = vmatpush2.msra.mxu0 0.0
    %1371 = vmatprep.subr.mxu0 0.0
    %1372 = vmatpush2.msra.mxu0 0.0
    %1373 = vmatprep.subr.mxu0 0.0
    %1374 = vmatpush2.msra.mxu0 0.0
    %1375 = vmatprep.subr.mxu0 0.0
    %1376 = vmatpush2.msra.mxu0 0.0
    %1377 = vmatprep.subr.mxu0 0.0
    %1378 = vmatpush2.msra.mxu0 0.0
    %1379 = vmatprep.subr.mxu0 0.0
    %1380 = vmatpush2.msra.mxu0 0.0
    %1381 = vmatprep.subr.mxu0 0.0
    %1382 = vmatpush2.msra.mxu0 0.0
    %1383 = vmatprep.mubr.f32.mxu0 0.0
    %1384 = vmatmul.mubr.f32.gmra.mxu0 %v1140
    %v1385 = vpop.f32.mrf.mxu0
    %v1386 = vadd.f32 0.0, %v1385
    %v1387 = vpop.f32.mrf.mxu0
    %v1388 = vadd.f32 0.0, %v1387
    %1389 = vdwg.mxu0
    %v1390 = vadd.f32 %v1317, %v1386
    %v1391 = vadd.f32 %v1318, %v1388
    %v1392 = vadd.f32 %v1390, %v40
    %v1393 = vadd.f32 %v1391, %v44
    %v1394 = vtanh.pop %v1392
    %v1395 = vtanh.pop %v1393
    %v1396 = vmul.f32 %v93, %v1394
    %v1397 = vmul.f32 %v94, %v1395
    %v1398 = vadd.f32 %v1396, %v95
    %v1399 = vadd.f32 %v1397, %v96
    %v1400 = vmul.f32 %v1398, %v1134
    %v1401 = vmul.f32 %v1398, %v1399
    %1403 = vrot.lane.b32.xlu0 %v1401, 64
    %v1404 = vpop.permute.xlu0 %1403
    %v1406 = vadd.f32 %v1400, %v1404
    %v1407 = vtanh.pop %v1406
    %v1408 = vmul.f32 %v1399, %v1407
    %1410 = vrot.lane.b32.xlu0 %v1408, 64
    %v1411 = vpop.permute.xlu0 %1410
    %v1412 = vsel %vm114, %v1411, 0
    %1414 = vmatprep.subr.mxu0 0.0
    %1415 = vmatpush1.msra.mxu0 0.0
    %1416 = vmatprep.subr.mxu0 0.0
    %1417 = vmatpush1.msra.mxu0 0.0
    %1418 = vmatprep.subr.mxu0 0.0
    %1419 = vmatpush1.msra.mxu0 0.0
    %1420 = vmatprep.subr.mxu0 0.0
    %1421 = vmatpush1.msra.mxu0 0.0
    %1422 = vmatprep.subr.mxu0 0.0
    %1423 = vmatpush1.msra.mxu0 0.0
    %1424 = vmatprep.subr.mxu0 0.0
    %1425 = vmatpush1.msra.mxu0 0.0
    %1426 = vmatprep.subr.mxu0 0.0
    %1427 = vmatpush1.msra.mxu0 0.0
    %1428 = vmatprep.subr.mxu0 0.0
    %1429 = vmatpush1.msra.mxu0 0.0
    %1430 = vmatprep.subr.mxu0 %v317
    %1431 = vmatpush1.msra.mxu0 %v316
    %1432 = vmatprep.subr.mxu0 %v315
    %1433 = vmatpush1.msra.mxu0 %v314
    %1434 = vmatprep.subr.mxu0 %v313
    %1435 = vmatpush1.msra.mxu0 %v312
    %1436 = vmatprep.subr.mxu0 %v311
    %1437 = vmatpush1.msra.mxu0 %v310
    %1438 = vmatprep.subr.mxu0 %v309
    %1439 = vmatpush1.msra.mxu0 %v308
    %1440 = vmatprep.subr.mxu0 %v307
    %1441 = vmatpush1.msra.mxu0 %v306
    %1442 = vmatprep.subr.mxu0 %v305
    %1443 = vmatpush1.msra.mxu0 %v304
    %1444 = vmatprep.subr.mxu0 %v303
    %1445 = vmatpush1.msra.mxu0 %v302
    %1446 = vmatprep.subr.mxu0 0.0
    %1447 = vmatpush2.msra.mxu0 0.0
    %1448 = vmatprep.subr.mxu0 0.0
    %1449 = vmatpush2.msra.mxu0 0.0
    %1450 = vmatprep.subr.mxu0 0.0
    %1451 = vmatpush2.msra.mxu0 0.0
    %1452 = vmatprep.subr.mxu0 0.0
    %1453 = vmatpush2.msra.mxu0 0.0
    %1454 = vmatprep.subr.mxu0 0.0
    %1455 = vmatpush2.msra.mxu0 0.0
    %1456 = vmatprep.subr.mxu0 0.0
    %1457 = vmatpush2.msra.mxu0 0.0
    %1458 = vmatprep.subr.mxu0 0.0
    %1459 = vmatpush2.msra.mxu0 0.0
    %1460 = vmatprep.subr.mxu0 0.0
    %1461 = vmatpush2.msra.mxu0 0.0
    %1462 = vmatprep.subr.mxu0 0.0
    %1463 = vmatpush2.msra.mxu0 0.0
    %1464 = vmatprep.subr.mxu0 0.0
    %1465 = vmatpush2.msra.mxu0 0.0
    %1466 = vmatprep.subr.mxu0 0.0
    %1467 = vmatpush2.msra.mxu0 0.0
    %1468 = vmatprep.subr.mxu0 0.0
    %1469 = vmatpush2.msra.mxu0 0.0
    %1470 = vmatprep.subr.mxu0 0.0
    %1471 = vmatpush2.msra.mxu0 0.0
    %1472 = vmatprep.subr.mxu0 0.0
    %1473 = vmatpush2.msra.mxu0 0.0
    %1474 = vmatprep.subr.mxu0 0.0
    %1475 = vmatpush2.msra.mxu0 0.0
    %1476 = vmatprep.subr.mxu0 0.0
    %1477 = vmatpush2.msra.mxu0 0.0
    %1478 = vmatprep.mubr.f32.mxu0 0.0
    %1479 = vmatmul.mubr.f32.gmra.mxu0 %v1412
    %v1480 = vpop.f32.mrf.mxu0
    %v1481 = vadd.f32 %v1309, %v1480
    %v1482 = vpop.f32.mrf.mxu0
    %v1483 = vadd.f32 %v1311, %v1482
    %1484 = vdwg.mxu0
    %v1485 = vtanh.pop %v1481
    %v1486 = vtanh.pop %v1483
    %v1487 = vmul.f32 %v93, %v1485
    %v1488 = vmul.f32 %v94, %v1486
    %v1489 = vadd.f32 %v1487, %v95
    %v1490 = vadd.f32 %v1488, %v96
    %v1491 = vmul.f32 %v1489, %v1225
    %v1492 = vmul.f32 %v1489, %v1490
    %1494 = vrot.lane.b32.xlu0 %v1492, 64
    %v1495 = vpop.permute.xlu0 %1494
    %v1497 = vadd.f32 %v1491, %v1495
    %v1498 = vtanh.pop %v1497
    %v1499 = vmul.f32 %v1490, %v1498
    %v1500 = vmul.f32 %v1499, %v410
    %1502 = vrot.lane.b32.xlu0 %v1500, 64
    %v1503 = vpop.permute.xlu0 %1502
    %v1505 = vsel %vm114, %v1503, 0.0
    %1506 = vadd.xlane.f32.xlu0 %v1505
    %v1507 = vpop.xlane.xlu0 %1506
    %v1508 = vadd.f32 %v1507, %v82
    %1510 = vrot.lane.b32.xlu0 %v1499, 64
    %v1511 = vpop.permute.xlu0 %1510
    %v1512 = vsel %vm114, %v1511, 0
    %1514 = vmatprep.subr.mxu0 0.0
    %1515 = vmatpush1.msra.mxu0 0.0
    %1516 = vmatprep.subr.mxu0 0.0
    %1517 = vmatpush1.msra.mxu0 0.0
    %1518 = vmatprep.subr.mxu0 0.0
    %1519 = vmatpush1.msra.mxu0 0.0
    %1520 = vmatprep.subr.mxu0 0.0
    %1521 = vmatpush1.msra.mxu0 0.0
    %1522 = vmatprep.subr.mxu0 0.0
    %1523 = vmatpush1.msra.mxu0 0.0
    %1524 = vmatprep.subr.mxu0 0.0
    %1525 = vmatpush1.msra.mxu0 0.0
    %1526 = vmatprep.subr.mxu0 0.0
    %1527 = vmatpush1.msra.mxu0 0.0
    %1528 = vmatprep.subr.mxu0 0.0
    %1529 = vmatpush1.msra.mxu0 0.0
    %1530 = vmatprep.subr.mxu0 %v113
    %1531 = vmatpush1.msra.mxu0 %v112
    %1532 = vmatprep.subr.mxu0 %v111
    %1533 = vmatpush1.msra.mxu0 %v110
    %1534 = vmatprep.subr.mxu0 %v109
    %1535 = vmatpush1.msra.mxu0 %v108
    %1536 = vmatprep.subr.mxu0 %v107
    %1537 = vmatpush1.msra.mxu0 %v106
    %1538 = vmatprep.subr.mxu0 %v105
    %1539 = vmatpush1.msra.mxu0 %v104
    %1540 = vmatprep.subr.mxu0 %v103
    %1541 = vmatpush1.msra.mxu0 %v102
    %1542 = vmatprep.subr.mxu0 %v101
    %1543 = vmatpush1.msra.mxu0 %v100
    %1544 = vmatprep.subr.mxu0 %v99
    %1545 = vmatpush1.msra.mxu0 %v98
    %1546 = vmatprep.subr.mxu0 0.0
    %1547 = vmatpush2.msra.mxu0 0.0
    %1548 = vmatprep.subr.mxu0 0.0
    %1549 = vmatpush2.msra.mxu0 0.0
    %1550 = vmatprep.subr.mxu0 0.0
    %1551 = vmatpush2.msra.mxu0 0.0
    %1552 = vmatprep.subr.mxu0 0.0
    %1553 = vmatpush2.msra.mxu0 0.0
    %1554 = vmatprep.subr.mxu0 0.0
    %1555 = vmatpush2.msra.mxu0 0.0
    %1556 = vmatprep.subr.mxu0 0.0
    %1557 = vmatpush2.msra.mxu0 0.0
    %1558 = vmatprep.subr.mxu0 0.0
    %1559 = vmatpush2.msra.mxu0 0.0
    %1560 = vmatprep.subr.mxu0 0.0
    %1561 = vmatpush2.msra.mxu0 0.0
    %1562 = vmatprep.subr.mxu0 0.0
    %1563 = vmatpush2.msra.mxu0 0.0
    %1564 = vmatprep.subr.mxu0 0.0
    %1565 = vmatpush2.msra.mxu0 0.0
    %1566 = vmatprep.subr.mxu0 0.0
    %1567 = vmatpush2.msra.mxu0 0.0
    %1568 = vmatprep.subr.mxu0 0.0
    %1569 = vmatpush2.msra.mxu0 0.0
    %1570 = vmatprep.subr.mxu0 0.0
    %1571 = vmatpush2.msra.mxu0 0.0
    %1572 = vmatprep.subr.mxu0 0.0
    %1573 = vmatpush2.msra.mxu0 0.0
    %1574 = vmatprep.subr.mxu0 0.0
    %1575 = vmatpush2.msra.mxu0 0.0
    %1576 = vmatprep.subr.mxu0 0.0
    %1577 = vmatpush2.msra.mxu0 0.0
    %1578 = vmatprep.mubr.f32.mxu0 0.0
    %1579 = vmatmul.mubr.f32.gmra.mxu0 %v1512
    %v1580 = vpop.f32.mrf.mxu0
    %v1581 = vadd.f32 %v52, %v1580
    %v1582 = vpop.f32.mrf.mxu0
    %v1583 = vadd.f32 %v56, %v1582
    %1584 = vdwg.mxu0
    %1585 = vset.pattern.permute.xlu0 5
    %1586 = vperm.xlu0 %1585, %v97
    %v1587 = vpop.permute.xlu0 %1586
    %v1589 = vmul.f32 %v1587, %v64
    %v1590 = vmul.f32 %v1587, %v68
    %1591 = vmatprep.subr.mxu0 0.0
    %1592 = vmatpush1.msra.mxu0 0.0
    %1593 = vmatprep.subr.mxu0 0.0
    %1594 = vmatpush1.msra.mxu0 0.0
    %1595 = vmatprep.subr.mxu0 0.0
    %1596 = vmatpush1.msra.mxu0 0.0
    %1597 = vmatprep.subr.mxu0 0.0
    %1598 = vmatpush1.msra.mxu0 0.0
    %1599 = vmatprep.subr.mxu0 0.0
    %1600 = vmatpush1.msra.mxu0 0.0
    %1601 = vmatprep.subr.mxu0 0.0
    %1602 = vmatpush1.msra.mxu0 0.0
    %1603 = vmatprep.subr.mxu0 0.0
    %1604 = vmatpush1.msra.mxu0 0.0
    %1605 = vmatprep.subr.mxu0 0.0
    %1606 = vmatpush1.msra.mxu0 0.0
    %1607 = vmatprep.subr.mxu0 %v211
    %1608 = vmatpush1.msra.mxu0 %v210
    %1609 = vmatprep.subr.mxu0 %v209
    %1610 = vmatpush1.msra.mxu0 %v208
    %1611 = vmatprep.subr.mxu0 %v207
    %1612 = vmatpush1.msra.mxu0 %v206
    %1613 = vmatprep.subr.mxu0 %v205
    %1614 = vmatpush1.msra.mxu0 %v204
    %1615 = vmatprep.subr.mxu0 %v203
    %1616 = vmatpush1.msra.mxu0 %v202
    %1617 = vmatprep.subr.mxu0 %v201
    %1618 = vmatpush1.msra.mxu0 %v200
    %1619 = vmatprep.subr.mxu0 %v199
    %1620 = vmatpush1.msra.mxu0 %v198
    %1621 = vmatprep.subr.mxu0 %v197
    %1622 = vmatpush1.msra.mxu0 %v196
    %1623 = vmatprep.subr.mxu0 0.0
    %1624 = vmatpush2.msra.mxu0 0.0
    %1625 = vmatprep.subr.mxu0 0.0
    %1626 = vmatpush2.msra.mxu0 0.0
    %1627 = vmatprep.subr.mxu0 0.0
    %1628 = vmatpush2.msra.mxu0 0.0
    %1629 = vmatprep.subr.mxu0 0.0
    %1630 = vmatpush2.msra.mxu0 0.0
    %1631 = vmatprep.subr.mxu0 0.0
    %1632 = vmatpush2.msra.mxu0 0.0
    %1633 = vmatprep.subr.mxu0 0.0
    %1634 = vmatpush2.msra.mxu0 0.0
    %1635 = vmatprep.subr.mxu0 0.0
    %1636 = vmatpush2.msra.mxu0 0.0
    %1637 = vmatprep.subr.mxu0 0.0
    %1638 = vmatpush2.msra.mxu0 0.0
    %1639 = vmatprep.subr.mxu0 0.0
    %1640 = vmatpush2.msra.mxu0 0.0
    %1641 = vmatprep.subr.mxu0 0.0
    %1642 = vmatpush2.msra.mxu0 0.0
    %1643 = vmatprep.subr.mxu0 0.0
    %1644 = vmatpush2.msra.mxu0 0.0
    %1645 = vmatprep.subr.mxu0 0.0
    %1646 = vmatpush2.msra.mxu0 0.0
    %1647 = vmatprep.subr.mxu0 0.0
    %1648 = vmatpush2.msra.mxu0 0.0
    %1649 = vmatprep.subr.mxu0 0.0
    %1650 = vmatpush2.msra.mxu0 0.0
    %1651 = vmatprep.subr.mxu0 0.0
    %1652 = vmatpush2.msra.mxu0 0.0
    %1653 = vmatprep.subr.mxu0 0.0
    %1654 = vmatpush2.msra.mxu0 0.0
    %1655 = vmatprep.mubr.f32.mxu0 0.0
    %1656 = vmatmul.mubr.f32.gmra.mxu0 %v1412
    %v1657 = vpop.f32.mrf.mxu0
    %v1658 = vadd.f32 0.0, %v1657
    %v1659 = vpop.f32.mrf.mxu0
    %v1660 = vadd.f32 0.0, %v1659
    %1661 = vdwg.mxu0
    %v1662 = vadd.f32 %v1589, %v1658
    %v1663 = vadd.f32 %v1590, %v1660
    %v1664 = vadd.f32 %v1662, %v40
    %v1665 = vadd.f32 %v1663, %v44
    %v1666 = vtanh.pop %v1664
    %v1667 = vtanh.pop %v1665
    %v1668 = vmul.f32 %v93, %v1666
    %v1669 = vmul.f32 %v94, %v1667
    %v1670 = vadd.f32 %v1668, %v95
    %v1671 = vadd.f32 %v1669, %v96
    %v1672 = vmul.f32 %v1670, %v1406
    %v1673 = vmul.f32 %v1670, %v1671
    %1675 = vrot.lane.b32.xlu0 %v1673, 64
    %v1676 = vpop.permute.xlu0 %1675
    %v1678 = vadd.f32 %v1672, %v1676
    %v1679 = vtanh.pop %v1678
    %v1680 = vmul.f32 %v1671, %v1679
    %1682 = vrot.lane.b32.xlu0 %v1680, 64
    %v1683 = vpop.permute.xlu0 %1682
    %v1684 = vsel %vm114, %v1683, 0
    %1686 = vmatprep.subr.mxu0 0.0
    %1687 = vmatpush1.msra.mxu0 0.0
    %1688 = vmatprep.subr.mxu0 0.0
    %1689 = vmatpush1.msra.mxu0 0.0
    %1690 = vmatprep.subr.mxu0 0.0
    %1691 = vmatpush1.msra.mxu0 0.0
    %1692 = vmatprep.subr.mxu0 0.0
    %1693 = vmatpush1.msra.mxu0 0.0
    %1694 = vmatprep.subr.mxu0 0.0
    %1695 = vmatpush1.msra.mxu0 0.0
    %1696 = vmatprep.subr.mxu0 0.0
    %1697 = vmatpush1.msra.mxu0 0.0
    %1698 = vmatprep.subr.mxu0 0.0
    %1699 = vmatpush1.msra.mxu0 0.0
    %1700 = vmatprep.subr.mxu0 0.0
    %1701 = vmatpush1.msra.mxu0 0.0
    %1702 = vmatprep.subr.mxu0 %v317
    %1703 = vmatpush1.msra.mxu0 %v316
    %1704 = vmatprep.subr.mxu0 %v315
    %1705 = vmatpush1.msra.mxu0 %v314
    %1706 = vmatprep.subr.mxu0 %v313
    %1707 = vmatpush1.msra.mxu0 %v312
    %1708 = vmatprep.subr.mxu0 %v311
    %1709 = vmatpush1.msra.mxu0 %v310
    %1710 = vmatprep.subr.mxu0 %v309
    %1711 = vmatpush1.msra.mxu0 %v308
    %1712 = vmatprep.subr.mxu0 %v307
    %1713 = vmatpush1.msra.mxu0 %v306
    %1714 = vmatprep.subr.mxu0 %v305
    %1715 = vmatpush1.msra.mxu0 %v304
    %1716 = vmatprep.subr.mxu0 %v303
    %1717 = vmatpush1.msra.mxu0 %v302
    %1718 = vmatprep.subr.mxu0 0.0
    %1719 = vmatpush2.msra.mxu0 0.0
    %1720 = vmatprep.subr.mxu0 0.0
    %1721 = vmatpush2.msra.mxu0 0.0
    %1722 = vmatprep.subr.mxu0 0.0
    %1723 = vmatpush2.msra.mxu0 0.0
    %1724 = vmatprep.subr.mxu0 0.0
    %1725 = vmatpush2.msra.mxu0 0.0
    %1726 = vmatprep.subr.mxu0 0.0
    %1727 = vmatpush2.msra.mxu0 0.0
    %1728 = vmatprep.subr.mxu0 0.0
    %1729 = vmatpush2.msra.mxu0 0.0
    %1730 = vmatprep.subr.mxu0 0.0
    %1731 = vmatpush2.msra.mxu0 0.0
    %1732 = vmatprep.subr.mxu0 0.0
    %1733 = vmatpush2.msra.mxu0 0.0
    %1734 = vmatprep.subr.mxu0 0.0
    %1735 = vmatpush2.msra.mxu0 0.0
    %1736 = vmatprep.subr.mxu0 0.0
    %1737 = vmatpush2.msra.mxu0 0.0
    %1738 = vmatprep.subr.mxu0 0.0
    %1739 = vmatpush2.msra.mxu0 0.0
    %1740 = vmatprep.subr.mxu0 0.0
    %1741 = vmatpush2.msra.mxu0 0.0
    %1742 = vmatprep.subr.mxu0 0.0
    %1743 = vmatpush2.msra.mxu0 0.0
    %1744 = vmatprep.subr.mxu0 0.0
    %1745 = vmatpush2.msra.mxu0 0.0
    %1746 = vmatprep.subr.mxu0 0.0
    %1747 = vmatpush2.msra.mxu0 0.0
    %1748 = vmatprep.subr.mxu0 0.0
    %1749 = vmatpush2.msra.mxu0 0.0
    %1750 = vmatprep.mubr.f32.mxu0 0.0
    %1751 = vmatmul.mubr.f32.gmra.mxu0 %v1684
    %v1752 = vpop.f32.mrf.mxu0
    %v1753 = vadd.f32 %v1581, %v1752
    %v1754 = vpop.f32.mrf.mxu0
    %v1755 = vadd.f32 %v1583, %v1754
    %1756 = vdwg.mxu0
    %v1757 = vtanh.pop %v1753
    %v1758 = vtanh.pop %v1755
    %v1759 = vmul.f32 %v93, %v1757
    %v1760 = vmul.f32 %v94, %v1758
    %v1761 = vadd.f32 %v1759, %v95
    %v1762 = vadd.f32 %v1760, %v96
    %v1763 = vmul.f32 %v1761, %v1497
    %v1764 = vmul.f32 %v1761, %v1762
    %1766 = vrot.lane.b32.xlu0 %v1764, 64
    %v1767 = vpop.permute.xlu0 %1766
    %v1769 = vadd.f32 %v1763, %v1767
    %v1770 = vtanh.pop %v1769
    %v1771 = vmul.f32 %v1762, %v1770
    %v1772 = vmul.f32 %v1771, %v410
    %1774 = vrot.lane.b32.xlu0 %v1772, 64
    %v1775 = vpop.permute.xlu0 %1774
    %v1777 = vsel %vm114, %v1775, 0.0
    %1778 = vadd.xlane.f32.xlu0 %v1777
    %v1779 = vpop.xlane.xlu0 %1778
    %v1780 = vadd.f32 %v1779, %v82
    %1782 = vrot.lane.b32.xlu0 %v1771, 64
    %v1783 = vpop.permute.xlu0 %1782
    %v1784 = vsel %vm114, %v1783, 0
    %1786 = vmatprep.subr.mxu0 0.0
    %1787 = vmatpush1.msra.mxu0 0.0
    %1788 = vmatprep.subr.mxu0 0.0
    %1789 = vmatpush1.msra.mxu0 0.0
    %1790 = vmatprep.subr.mxu0 0.0
    %1791 = vmatpush1.msra.mxu0 0.0
    %1792 = vmatprep.subr.mxu0 0.0
    %1793 = vmatpush1.msra.mxu0 0.0
    %1794 = vmatprep.subr.mxu0 0.0
    %1795 = vmatpush1.msra.mxu0 0.0
    %1796 = vmatprep.subr.mxu0 0.0
    %1797 = vmatpush1.msra.mxu0 0.0
    %1798 = vmatprep.subr.mxu0 0.0
    %1799 = vmatpush1.msra.mxu0 0.0
    %1800 = vmatprep.subr.mxu0 0.0
    %1801 = vmatpush1.msra.mxu0 0.0
    %1802 = vmatprep.subr.mxu0 %v113
    %1803 = vmatpush1.msra.mxu0 %v112
    %1804 = vmatprep.subr.mxu0 %v111
    %1805 = vmatpush1.msra.mxu0 %v110
    %1806 = vmatprep.subr.mxu0 %v109
    %1807 = vmatpush1.msra.mxu0 %v108
    %1808 = vmatprep.subr.mxu0 %v107
    %1809 = vmatpush1.msra.mxu0 %v106
    %1810 = vmatprep.subr.mxu0 %v105
    %1811 = vmatpush1.msra.mxu0 %v104
    %1812 = vmatprep.subr.mxu0 %v103
    %1813 = vmatpush1.msra.mxu0 %v102
    %1814 = vmatprep.subr.mxu0 %v101
    %1815 = vmatpush1.msra.mxu0 %v100
    %1816 = vmatprep.subr.mxu0 %v99
    %1817 = vmatpush1.msra.mxu0 %v98
    %1818 = vmatprep.subr.mxu0 0.0
    %1819 = vmatpush2.msra.mxu0 0.0
    %1820 = vmatprep.subr.mxu0 0.0
    %1821 = vmatpush2.msra.mxu0 0.0
    %1822 = vmatprep.subr.mxu0 0.0
    %1823 = vmatpush2.msra.mxu0 0.0
    %1824 = vmatprep.subr.mxu0 0.0
    %1825 = vmatpush2.msra.mxu0 0.0
    %1826 = vmatprep.subr.mxu0 0.0
    %1827 = vmatpush2.msra.mxu0 0.0
    %1828 = vmatprep.subr.mxu0 0.0
    %1829 = vmatpush2.msra.mxu0 0.0
    %1830 = vmatprep.subr.mxu0 0.0
    %1831 = vmatpush2.msra.mxu0 0.0
    %1832 = vmatprep.subr.mxu0 0.0
    %1833 = vmatpush2.msra.mxu0 0.0
    %1834 = vmatprep.subr.mxu0 0.0
    %1835 = vmatpush2.msra.mxu0 0.0
    %1836 = vmatprep.subr.mxu0 0.0
    %1837 = vmatpush2.msra.mxu0 0.0
    %1838 = vmatprep.subr.mxu0 0.0
    %1839 = vmatpush2.msra.mxu0 0.0
    %1840 = vmatprep.subr.mxu0 0.0
    %1841 = vmatpush2.msra.mxu0 0.0
    %1842 = vmatprep.subr.mxu0 0.0
    %1843 = vmatpush2.msra.mxu0 0.0
    %1844 = vmatprep.subr.mxu0 0.0
    %1845 = vmatpush2.msra.mxu0 0.0
    %1846 = vmatprep.subr.mxu0 0.0
    %1847 = vmatpush2.msra.mxu0 0.0
    %1848 = vmatprep.subr.mxu0 0.0
    %1849 = vmatpush2.msra.mxu0 0.0
    %1850 = vmatprep.mubr.f32.mxu0 0.0
    %1851 = vmatmul.mubr.f32.gmra.mxu0 %v1784
    %v1852 = vpop.f32.mrf.mxu0
    %v1853 = vadd.f32 %v52, %v1852
    %v1854 = vpop.f32.mrf.mxu0
    %v1855 = vadd.f32 %v56, %v1854
    %1856 = vdwg.mxu0
    %1857 = vset.pattern.permute.xlu0 6
    %1858 = vperm.xlu0 %1857, %v97
    %v1859 = vpop.permute.xlu0 %1858
    %v1861 = vmul.f32 %v1859, %v64
    %v1862 = vmul.f32 %v1859, %v68
    %1863 = vmatprep.subr.mxu0 0.0
    %1864 = vmatpush1.msra.mxu0 0.0
    %1865 = vmatprep.subr.mxu0 0.0
    %1866 = vmatpush1.msra.mxu0 0.0
    %1867 = vmatprep.subr.mxu0 0.0
    %1868 = vmatpush1.msra.mxu0 0.0
    %1869 = vmatprep.subr.mxu0 0.0
    %1870 = vmatpush1.msra.mxu0 0.0
    %1871 = vmatprep.subr.mxu0 0.0
    %1872 = vmatpush1.msra.mxu0 0.0
    %1873 = vmatprep.subr.mxu0 0.0
    %1874 = vmatpush1.msra.mxu0 0.0
    %1875 = vmatprep.subr.mxu0 0.0
    %1876 = vmatpush1.msra.mxu0 0.0
    %1877 = vmatprep.subr.mxu0 0.0
    %1878 = vmatpush1.msra.mxu0 0.0
    %1879 = vmatprep.subr.mxu0 %v211
    %1880 = vmatpush1.msra.mxu0 %v210
    %1881 = vmatprep.subr.mxu0 %v209
    %1882 = vmatpush1.msra.mxu0 %v208
    %1883 = vmatprep.subr.mxu0 %v207
    %1884 = vmatpush1.msra.mxu0 %v206
    %1885 = vmatprep.subr.mxu0 %v205
    %1886 = vmatpush1.msra.mxu0 %v204
    %1887 = vmatprep.subr.mxu0 %v203
    %1888 = vmatpush1.msra.mxu0 %v202
    %1889 = vmatprep.subr.mxu0 %v201
    %1890 = vmatpush1.msra.mxu0 %v200
    %1891 = vmatprep.subr.mxu0 %v199
    %1892 = vmatpush1.msra.mxu0 %v198
    %1893 = vmatprep.subr.mxu0 %v197
    %1894 = vmatpush1.msra.mxu0 %v196
    %1895 = vmatprep.subr.mxu0 0.0
    %1896 = vmatpush2.msra.mxu0 0.0
    %1897 = vmatprep.subr.mxu0 0.0
    %1898 = vmatpush2.msra.mxu0 0.0
    %1899 = vmatprep.subr.mxu0 0.0
    %1900 = vmatpush2.msra.mxu0 0.0
    %1901 = vmatprep.subr.mxu0 0.0
    %1902 = vmatpush2.msra.mxu0 0.0
    %1903 = vmatprep.subr.mxu0 0.0
    %1904 = vmatpush2.msra.mxu0 0.0
    %1905 = vmatprep.subr.mxu0 0.0
    %1906 = vmatpush2.msra.mxu0 0.0
    %1907 = vmatprep.subr.mxu0 0.0
    %1908 = vmatpush2.msra.mxu0 0.0
    %1909 = vmatprep.subr.mxu0 0.0
    %1910 = vmatpush2.msra.mxu0 0.0
    %1911 = vmatprep.subr.mxu0 0.0
    %1912 = vmatpush2.msra.mxu0 0.0
    %1913 = vmatprep.subr.mxu0 0.0
    %1914 = vmatpush2.msra.mxu0 0.0
    %1915 = vmatprep.subr.mxu0 0.0
    %1916 = vmatpush2.msra.mxu0 0.0
    %1917 = vmatprep.subr.mxu0 0.0
    %1918 = vmatpush2.msra.mxu0 0.0
    %1919 = vmatprep.subr.mxu0 0.0
    %1920 = vmatpush2.msra.mxu0 0.0
    %1921 = vmatprep.subr.mxu0 0.0
    %1922 = vmatpush2.msra.mxu0 0.0
    %1923 = vmatprep.subr.mxu0 0.0
    %1924 = vmatpush2.msra.mxu0 0.0
    %1925 = vmatprep.subr.mxu0 0.0
    %1926 = vmatpush2.msra.mxu0 0.0
    %1927 = vmatprep.mubr.f32.mxu0 0.0
    %1928 = vmatmul.mubr.f32.gmra.mxu0 %v1684
    %v1929 = vpop.f32.mrf.mxu0
    %v1930 = vadd.f32 0.0, %v1929
    %v1931 = vpop.f32.mrf.mxu0
    %v1932 = vadd.f32 0.0, %v1931
    %1933 = vdwg.mxu0
    %v1934 = vadd.f32 %v1861, %v1930
    %v1935 = vadd.f32 %v1862, %v1932
    %v1936 = vadd.f32 %v1934, %v40
    %v1937 = vadd.f32 %v1935, %v44
    %v1938 = vtanh.pop %v1936
    %v1939 = vtanh.pop %v1937
    %v1940 = vmul.f32 %v93, %v1938
    %v1941 = vmul.f32 %v94, %v1939
    %v1942 = vadd.f32 %v1940, %v95
    %v1943 = vadd.f32 %v1941, %v96
    %v1944 = vmul.f32 %v1942, %v1678
    %v1945 = vmul.f32 %v1942, %v1943
    %1947 = vrot.lane.b32.xlu0 %v1945, 64
    %v1948 = vpop.permute.xlu0 %1947
    %v1950 = vadd.f32 %v1944, %v1948
    %v1951 = vtanh.pop %v1950
    %v1952 = vmul.f32 %v1943, %v1951
    %1954 = vrot.lane.b32.xlu0 %v1952, 64
    %v1955 = vpop.permute.xlu0 %1954
    %v1956 = vsel %vm114, %v1955, 0
    %1958 = vmatprep.subr.mxu0 0.0
    %1959 = vmatpush1.msra.mxu0 0.0
    %1960 = vmatprep.subr.mxu0 0.0
    %1961 = vmatpush1.msra.mxu0 0.0
    %1962 = vmatprep.subr.mxu0 0.0
    %1963 = vmatpush1.msra.mxu0 0.0
    %1964 = vmatprep.subr.mxu0 0.0
    %1965 = vmatpush1.msra.mxu0 0.0
    %1966 = vmatprep.subr.mxu0 0.0
    %1967 = vmatpush1.msra.mxu0 0.0
    %1968 = vmatprep.subr.mxu0 0.0
    %1969 = vmatpush1.msra.mxu0 0.0
    %1970 = vmatprep.subr.mxu0 0.0
    %1971 = vmatpush1.msra.mxu0 0.0
    %1972 = vmatprep.subr.mxu0 0.0
    %1973 = vmatpush1.msra.mxu0 0.0
    %1974 = vmatprep.subr.mxu0 %v317
    %1975 = vmatpush1.msra.mxu0 %v316
    %1976 = vmatprep.subr.mxu0 %v315
    %1977 = vmatpush1.msra.mxu0 %v314
    %1978 = vmatprep.subr.mxu0 %v313
    %1979 = vmatpush1.msra.mxu0 %v312
    %1980 = vmatprep.subr.mxu0 %v311
    %1981 = vmatpush1.msra.mxu0 %v310
    %1982 = vmatprep.subr.mxu0 %v309
    %1983 = vmatpush1.msra.mxu0 %v308
    %1984 = vmatprep.subr.mxu0 %v307
    %1985 = vmatpush1.msra.mxu0 %v306
    %1986 = vmatprep.subr.mxu0 %v305
    %1987 = vmatpush1.msra.mxu0 %v304
    %1988 = vmatprep.subr.mxu0 %v303
    %1989 = vmatpush1.msra.mxu0 %v302
    %1990 = vmatprep.subr.mxu0 0.0
    %1991 = vmatpush2.msra.mxu0 0.0
    %1992 = vmatprep.subr.mxu0 0.0
    %1993 = vmatpush2.msra.mxu0 0.0
    %1994 = vmatprep.subr.mxu0 0.0
    %1995 = vmatpush2.msra.mxu0 0.0
    %1996 = vmatprep.subr.mxu0 0.0
    %1997 = vmatpush2.msra.mxu0 0.0
    %1998 = vmatprep.subr.mxu0 0.0
    %1999 = vmatpush2.msra.mxu0 0.0
    %2000 = vmatprep.subr.mxu0 0.0
    %2001 = vmatpush2.msra.mxu0 0.0
    %2002 = vmatprep.subr.mxu0 0.0
    %2003 = vmatpush2.msra.mxu0 0.0
    %2004 = vmatprep.subr.mxu0 0.0
    %2005 = vmatpush2.msra.mxu0 0.0
    %2006 = vmatprep.subr.mxu0 0.0
    %2007 = vmatpush2.msra.mxu0 0.0
    %2008 = vmatprep.subr.mxu0 0.0
    %2009 = vmatpush2.msra.mxu0 0.0
    %2010 = vmatprep.subr.mxu0 0.0
    %2011 = vmatpush2.msra.mxu0 0.0
    %2012 = vmatprep.subr.mxu0 0.0
    %2013 = vmatpush2.msra.mxu0 0.0
    %2014 = vmatprep.subr.mxu0 0.0
    %2015 = vmatpush2.msra.mxu0 0.0
    %2016 = vmatprep.subr.mxu0 0.0
    %2017 = vmatpush2.msra.mxu0 0.0
    %2018 = vmatprep.subr.mxu0 0.0
    %2019 = vmatpush2.msra.mxu0 0.0
    %2020 = vmatprep.subr.mxu0 0.0
    %2021 = vmatpush2.msra.mxu0 0.0
    %2022 = vmatprep.mubr.f32.mxu0 0.0
    %2023 = vmatmul.mubr.f32.gmra.mxu0 %v1956
    %v2024 = vpop.f32.mrf.mxu0
    %v2025 = vadd.f32 %v1853, %v2024
    %v2026 = vpop.f32.mrf.mxu0
    %v2027 = vadd.f32 %v1855, %v2026
    %2028 = vdwg.mxu0
    %v2029 = vtanh.pop %v2025
    %v2030 = vtanh.pop %v2027
    %v2031 = vmul.f32 %v93, %v2029
    %v2032 = vmul.f32 %v94, %v2030
    %v2033 = vadd.f32 %v2031, %v95
    %v2034 = vadd.f32 %v2032, %v96
    %v2035 = vmul.f32 %v2033, %v1769
    %v2036 = vmul.f32 %v2033, %v2034
    %2038 = vrot.lane.b32.xlu0 %v2036, 64
    %v2039 = vpop.permute.xlu0 %2038
    %v2041 = vadd.f32 %v2035, %v2039
    %v2042 = vtanh.pop %v2041
    %v2043 = vmul.f32 %v2034, %v2042
    %v2044 = vmul.f32 %v2043, %v410
    %2046 = vrot.lane.b32.xlu0 %v2044, 64
    %v2047 = vpop.permute.xlu0 %2046
    %v2049 = vsel %vm114, %v2047, 0.0
    %2050 = vadd.xlane.f32.xlu0 %v2049
    %v2051 = vpop.xlane.xlu0 %2050
    %v2052 = vadd.f32 %v2051, %v82
    %2054 = vrot.lane.b32.xlu0 %v2043, 64
    %v2055 = vpop.permute.xlu0 %2054
    %v2056 = vsel %vm114, %v2055, 0
    %2058 = vmatprep.subr.mxu0 0.0
    %2059 = vmatpush1.msra.mxu0 0.0
    %2060 = vmatprep.subr.mxu0 0.0
    %2061 = vmatpush1.msra.mxu0 0.0
    %2062 = vmatprep.subr.mxu0 0.0
    %2063 = vmatpush1.msra.mxu0 0.0
    %2064 = vmatprep.subr.mxu0 0.0
    %2065 = vmatpush1.msra.mxu0 0.0
    %2066 = vmatprep.subr.mxu0 0.0
    %2067 = vmatpush1.msra.mxu0 0.0
    %2068 = vmatprep.subr.mxu0 0.0
    %2069 = vmatpush1.msra.mxu0 0.0
    %2070 = vmatprep.subr.mxu0 0.0
    %2071 = vmatpush1.msra.mxu0 0.0
    %2072 = vmatprep.subr.mxu0 0.0
    %2073 = vmatpush1.msra.mxu0 0.0
    %2074 = vmatprep.subr.mxu0 %v113
    %2075 = vmatpush1.msra.mxu0 %v112
    %2076 = vmatprep.subr.mxu0 %v111
    %2077 = vmatpush1.msra.mxu0 %v110
    %2078 = vmatprep.subr.mxu0 %v109
    %2079 = vmatpush1.msra.mxu0 %v108
    %2080 = vmatprep.subr.mxu0 %v107
    %2081 = vmatpush1.msra.mxu0 %v106
    %2082 = vmatprep.subr.mxu0 %v105
    %2083 = vmatpush1.msra.mxu0 %v104
    %2084 = vmatprep.subr.mxu0 %v103
    %2085 = vmatpush1.msra.mxu0 %v102
    %2086 = vmatprep.subr.mxu0 %v101
    %2087 = vmatpush1.msra.mxu0 %v100
    %2088 = vmatprep.subr.mxu0 %v99
    %2089 = vmatpush1.msra.mxu0 %v98
    %2090 = vmatprep.subr.mxu0 0.0
    %2091 = vmatpush2.msra.mxu0 0.0
    %2092 = vmatprep.subr.mxu0 0.0
    %2093 = vmatpush2.msra.mxu0 0.0
    %2094 = vmatprep.subr.mxu0 0.0
    %2095 = vmatpush2.msra.mxu0 0.0
    %2096 = vmatprep.subr.mxu0 0.0
    %2097 = vmatpush2.msra.mxu0 0.0
    %2098 = vmatprep.subr.mxu0 0.0
    %2099 = vmatpush2.msra.mxu0 0.0
    %2100 = vmatprep.subr.mxu0 0.0
    %2101 = vmatpush2.msra.mxu0 0.0
    %2102 = vmatprep.subr.mxu0 0.0
    %2103 = vmatpush2.msra.mxu0 0.0
    %2104 = vmatprep.subr.mxu0 0.0
    %2105 = vmatpush2.msra.mxu0 0.0
    %2106 = vmatprep.subr.mxu0 0.0
    %2107 = vmatpush2.msra.mxu0 0.0
    %2108 = vmatprep.subr.mxu0 0.0
    %2109 = vmatpush2.msra.mxu0 0.0
    %2110 = vmatprep.subr.mxu0 0.0
    %2111 = vmatpush2.msra.mxu0 0.0
    %2112 = vmatprep.subr.mxu0 0.0
    %2113 = vmatpush2.msra.mxu0 0.0
    %2114 = vmatprep.subr.mxu0 0.0
    %2115 = vmatpush2.msra.mxu0 0.0
    %2116 = vmatprep.subr.mxu0 0.0
    %2117 = vmatpush2.msra.mxu0 0.0
    %2118 = vmatprep.subr.mxu0 0.0
    %2119 = vmatpush2.msra.mxu0 0.0
    %2120 = vmatprep.subr.mxu0 0.0
    %2121 = vmatpush2.msra.mxu0 0.0
    %2122 = vmatprep.mubr.f32.mxu0 0.0
    %2123 = vmatmul.mubr.f32.gmra.mxu0 %v2056
    %v2124 = vpop.f32.mrf.mxu0
    %v2125 = vadd.f32 %v52, %v2124
    %v2126 = vpop.f32.mrf.mxu0
    %v2127 = vadd.f32 %v56, %v2126
    %2128 = vdwg.mxu0
    %2129 = vset.pattern.permute.xlu0 7
    %2130 = vperm.xlu0 %2129, %v97
    %v2131 = vpop.permute.xlu0 %2130
    %v2133 = vmul.f32 %v2131, %v64
    %v2134 = vmul.f32 %v2131, %v68
    %2135 = vmatprep.subr.mxu0 0.0
    %2136 = vmatpush1.msra.mxu0 0.0
    %2137 = vmatprep.subr.mxu0 0.0
    %2138 = vmatpush1.msra.mxu0 0.0
    %2139 = vmatprep.subr.mxu0 0.0
    %2140 = vmatpush1.msra.mxu0 0.0
    %2141 = vmatprep.subr.mxu0 0.0
    %2142 = vmatpush1.msra.mxu0 0.0
    %2143 = vmatprep.subr.mxu0 0.0
    %2144 = vmatpush1.msra.mxu0 0.0
    %2145 = vmatprep.subr.mxu0 0.0
    %2146 = vmatpush1.msra.mxu0 0.0
    %2147 = vmatprep.subr.mxu0 0.0
    %2148 = vmatpush1.msra.mxu0 0.0
    %2149 = vmatprep.subr.mxu0 0.0
    %2150 = vmatpush1.msra.mxu0 0.0
    %2151 = vmatprep.subr.mxu0 %v211
    %2152 = vmatpush1.msra.mxu0 %v210
    %2153 = vmatprep.subr.mxu0 %v209
    %2154 = vmatpush1.msra.mxu0 %v208
    %2155 = vmatprep.subr.mxu0 %v207
    %2156 = vmatpush1.msra.mxu0 %v206
    %2157 = vmatprep.subr.mxu0 %v205
    %2158 = vmatpush1.msra.mxu0 %v204
    %2159 = vmatprep.subr.mxu0 %v203
    %2160 = vmatpush1.msra.mxu0 %v202
    %2161 = vmatprep.subr.mxu0 %v201
    %2162 = vmatpush1.msra.mxu0 %v200
    %2163 = vmatprep.subr.mxu0 %v199
    %2164 = vmatpush1.msra.mxu0 %v198
    %2165 = vmatprep.subr.mxu0 %v197
    %2166 = vmatpush1.msra.mxu0 %v196
    %2167 = vmatprep.subr.mxu0 0.0
    %2168 = vmatpush2.msra.mxu0 0.0
    %2169 = vmatprep.subr.mxu0 0.0
    %2170 = vmatpush2.msra.mxu0 0.0
    %2171 = vmatprep.subr.mxu0 0.0
    %2172 = vmatpush2.msra.mxu0 0.0
    %2173 = vmatprep.subr.mxu0 0.0
    %2174 = vmatpush2.msra.mxu0 0.0
    %2175 = vmatprep.subr.mxu0 0.0
    %2176 = vmatpush2.msra.mxu0 0.0
    %2177 = vmatprep.subr.mxu0 0.0
    %2178 = vmatpush2.msra.mxu0 0.0
    %2179 = vmatprep.subr.mxu0 0.0
    %2180 = vmatpush2.msra.mxu0 0.0
    %2181 = vmatprep.subr.mxu0 0.0
    %2182 = vmatpush2.msra.mxu0 0.0
    %2183 = vmatprep.subr.mxu0 0.0
    %2184 = vmatpush2.msra.mxu0 0.0
    %2185 = vmatprep.subr.mxu0 0.0
    %2186 = vmatpush2.msra.mxu0 0.0
    %2187 = vmatprep.subr.mxu0 0.0
    %2188 = vmatpush2.msra.mxu0 0.0
    %2189 = vmatprep.subr.mxu0 0.0
    %2190 = vmatpush2.msra.mxu0 0.0
    %2191 = vmatprep.subr.mxu0 0.0
    %2192 = vmatpush2.msra.mxu0 0.0
    %2193 = vmatprep.subr.mxu0 0.0
    %2194 = vmatpush2.msra.mxu0 0.0
    %2195 = vmatprep.subr.mxu0 0.0
    %2196 = vmatpush2.msra.mxu0 0.0
    %2197 = vmatprep.subr.mxu0 0.0
    %2198 = vmatpush2.msra.mxu0 0.0
    %2199 = vmatprep.mubr.f32.mxu0 0.0
    %2200 = vmatmul.mubr.f32.gmra.mxu0 %v1956
    %v2201 = vpop.f32.mrf.mxu0
    %v2202 = vadd.f32 0.0, %v2201
    %v2203 = vpop.f32.mrf.mxu0
    %v2204 = vadd.f32 0.0, %v2203
    %2205 = vdwg.mxu0
    %v2206 = vadd.f32 %v2133, %v2202
    %v2207 = vadd.f32 %v2134, %v2204
    %v2208 = vadd.f32 %v2206, %v40
    %v2209 = vadd.f32 %v2207, %v44
    %v2210 = vtanh.pop %v2208
    %v2211 = vtanh.pop %v2209
    %v2212 = vmul.f32 %v93, %v2210
    %v2213 = vmul.f32 %v94, %v2211
    %v2214 = vadd.f32 %v2212, %v95
    %v2215 = vadd.f32 %v2213, %v96
    %v2216 = vmul.f32 %v2214, %v1950
    %v2217 = vmul.f32 %v2214, %v2215
    %2219 = vrot.lane.b32.xlu0 %v2217, 64
    %v2220 = vpop.permute.xlu0 %2219
    %v2222 = vadd.f32 %v2216, %v2220
    %v2223 = vtanh.pop %v2222
    %v2224 = vmul.f32 %v2215, %v2223
    %2226 = vrot.lane.b32.xlu0 %v2224, 64
    %v2227 = vpop.permute.xlu0 %2226
    %v2228 = vsel %vm114, %v2227, 0
    %2230 = vmatprep.subr.mxu0 0.0
    %2231 = vmatpush1.msra.mxu0 0.0
    %2232 = vmatprep.subr.mxu0 0.0
    %2233 = vmatpush1.msra.mxu0 0.0
    %2234 = vmatprep.subr.mxu0 0.0
    %2235 = vmatpush1.msra.mxu0 0.0
    %2236 = vmatprep.subr.mxu0 0.0
    %2237 = vmatpush1.msra.mxu0 0.0
    %2238 = vmatprep.subr.mxu0 0.0
    %2239 = vmatpush1.msra.mxu0 0.0
    %2240 = vmatprep.subr.mxu0 0.0
    %2241 = vmatpush1.msra.mxu0 0.0
    %2242 = vmatprep.subr.mxu0 0.0
    %2243 = vmatpush1.msra.mxu0 0.0
    %2244 = vmatprep.subr.mxu0 0.0
    %2245 = vmatpush1.msra.mxu0 0.0
    %2246 = vmatprep.subr.mxu0 %v317
    %2247 = vmatpush1.msra.mxu0 %v316
    %2248 = vmatprep.subr.mxu0 %v315
    %2249 = vmatpush1.msra.mxu0 %v314
    %2250 = vmatprep.subr.mxu0 %v313
    %2251 = vmatpush1.msra.mxu0 %v312
    %2252 = vmatprep.subr.mxu0 %v311
    %2253 = vmatpush1.msra.mxu0 %v310
    %2254 = vmatprep.subr.mxu0 %v309
    %2255 = vmatpush1.msra.mxu0 %v308
    %2256 = vmatprep.subr.mxu0 %v307
    %2257 = vmatpush1.msra.mxu0 %v306
    %2258 = vmatprep.subr.mxu0 %v305
    %2259 = vmatpush1.msra.mxu0 %v304
    %2260 = vmatprep.subr.mxu0 %v303
    %2261 = vmatpush1.msra.mxu0 %v302
    %2262 = vmatprep.subr.mxu0 0.0
    %2263 = vmatpush2.msra.mxu0 0.0
    %2264 = vmatprep.subr.mxu0 0.0
    %2265 = vmatpush2.msra.mxu0 0.0
    %2266 = vmatprep.subr.mxu0 0.0
    %2267 = vmatpush2.msra.mxu0 0.0
    %2268 = vmatprep.subr.mxu0 0.0
    %2269 = vmatpush2.msra.mxu0 0.0
    %2270 = vmatprep.subr.mxu0 0.0
    %2271 = vmatpush2.msra.mxu0 0.0
    %2272 = vmatprep.subr.mxu0 0.0
    %2273 = vmatpush2.msra.mxu0 0.0
    %2274 = vmatprep.subr.mxu0 0.0
    %2275 = vmatpush2.msra.mxu0 0.0
    %2276 = vmatprep.subr.mxu0 0.0
    %2277 = vmatpush2.msra.mxu0 0.0
    %2278 = vmatprep.subr.mxu0 0.0
    %2279 = vmatpush2.msra.mxu0 0.0
    %2280 = vmatprep.subr.mxu0 0.0
    %2281 = vmatpush2.msra.mxu0 0.0
    %2282 = vmatprep.subr.mxu0 0.0
    %2283 = vmatpush2.msra.mxu0 0.0
    %2284 = vmatprep.subr.mxu0 0.0
    %2285 = vmatpush2.msra.mxu0 0.0
    %2286 = vmatprep.subr.mxu0 0.0
    %2287 = vmatpush2.msra.mxu0 0.0
    %2288 = vmatprep.subr.mxu0 0.0
    %2289 = vmatpush2.msra.mxu0 0.0
    %2290 = vmatprep.subr.mxu0 0.0
    %2291 = vmatpush2.msra.mxu0 0.0
    %2292 = vmatprep.subr.mxu0 0.0
    %2293 = vmatpush2.msra.mxu0 0.0
    %2294 = vmatprep.mubr.f32.mxu0 0.0
    %2295 = vmatmul.mubr.f32.gmra.mxu0 %v2228
    %v2296 = vpop.f32.mrf.mxu0
    %v2297 = vadd.f32 %v2125, %v2296
    %v2298 = vpop.f32.mrf.mxu0
    %v2299 = vadd.f32 %v2127, %v2298
    %2300 = vdwg.mxu0
    %v2301 = vtanh.pop %v2297
    %v2302 = vtanh.pop %v2299
    %v2303 = vmul.f32 %v93, %v2301
    %v2304 = vmul.f32 %v94, %v2302
    %v2305 = vadd.f32 %v2303, %v95
    %v2306 = vadd.f32 %v2304, %v96
    %v2307 = vmul.f32 %v2305, %v2041
    %v2308 = vmul.f32 %v2305, %v2306
    %2310 = vrot.lane.b32.xlu0 %v2308, 64
    %v2311 = vpop.permute.xlu0 %2310
    %v2313 = vadd.f32 %v2307, %v2311
    %v2314 = vtanh.pop %v2313
    %v2315 = vmul.f32 %v2306, %v2314
    %v2316 = vmul.f32 %v2315, %v410
    %2318 = vrot.lane.b32.xlu0 %v2316, 64
    %v2319 = vpop.permute.xlu0 %2318
    %v2321 = vsel %vm114, %v2319, 0.0
    %2322 = vadd.xlane.f32.xlu0 %v2321
    %v2323 = vpop.xlane.xlu0 %2322
    %v2324 = vadd.f32 %v2323, %v82
    %2326 = vrot.lane.b32.xlu0 %v2315, 64
    %v2327 = vpop.permute.xlu0 %2326
    %v2328 = vsel %vm114, %v2327, 0
    %2330 = vmatprep.subr.mxu0 0.0
    %2331 = vmatpush1.msra.mxu0 0.0
    %2332 = vmatprep.subr.mxu0 0.0
    %2333 = vmatpush1.msra.mxu0 0.0
    %2334 = vmatprep.subr.mxu0 0.0
    %2335 = vmatpush1.msra.mxu0 0.0
    %2336 = vmatprep.subr.mxu0 0.0
    %2337 = vmatpush1.msra.mxu0 0.0
    %2338 = vmatprep.subr.mxu0 0.0
    %2339 = vmatpush1.msra.mxu0 0.0
    %2340 = vmatprep.subr.mxu0 0.0
    %2341 = vmatpush1.msra.mxu0 0.0
    %2342 = vmatprep.subr.mxu0 0.0
    %2343 = vmatpush1.msra.mxu0 0.0
    %2344 = vmatprep.subr.mxu0 0.0
    %2345 = vmatpush1.msra.mxu0 0.0
    %2346 = vmatprep.subr.mxu0 %v113
    %2347 = vmatpush1.msra.mxu0 %v112
    %2348 = vmatprep.subr.mxu0 %v111
    %2349 = vmatpush1.msra.mxu0 %v110
    %2350 = vmatprep.subr.mxu0 %v109
    %2351 = vmatpush1.msra.mxu0 %v108
    %2352 = vmatprep.subr.mxu0 %v107
    %2353 = vmatpush1.msra.mxu0 %v106
    %2354 = vmatprep.subr.mxu0 %v105
    %2355 = vmatpush1.msra.mxu0 %v104
    %2356 = vmatprep.subr.mxu0 %v103
    %2357 = vmatpush1.msra.mxu0 %v102
    %2358 = vmatprep.subr.mxu0 %v101
    %2359 = vmatpush1.msra.mxu0 %v100
    %2360 = vmatprep.subr.mxu0 %v99
    %2361 = vmatpush1.msra.mxu0 %v98
    %2362 = vmatprep.subr.mxu0 0.0
    %2363 = vmatpush2.msra.mxu0 0.0
    %2364 = vmatprep.subr.mxu0 0.0
    %2365 = vmatpush2.msra.mxu0 0.0
    %2366 = vmatprep.subr.mxu0 0.0
    %2367 = vmatpush2.msra.mxu0 0.0
    %2368 = vmatprep.subr.mxu0 0.0
    %2369 = vmatpush2.msra.mxu0 0.0
    %2370 = vmatprep.subr.mxu0 0.0
    %2371 = vmatpush2.msra.mxu0 0.0
    %2372 = vmatprep.subr.mxu0 0.0
    %2373 = vmatpush2.msra.mxu0 0.0
    %2374 = vmatprep.subr.mxu0 0.0
    %2375 = vmatpush2.msra.mxu0 0.0
    %2376 = vmatprep.subr.mxu0 0.0
    %2377 = vmatpush2.msra.mxu0 0.0
    %2378 = vmatprep.subr.mxu0 0.0
    %2379 = vmatpush2.msra.mxu0 0.0
    %2380 = vmatprep.subr.mxu0 0.0
    %2381 = vmatpush2.msra.mxu0 0.0
    %2382 = vmatprep.subr.mxu0 0.0
    %2383 = vmatpush2.msra.mxu0 0.0
    %2384 = vmatprep.subr.mxu0 0.0
    %2385 = vmatpush2.msra.mxu0 0.0
    %2386 = vmatprep.subr.mxu0 0.0
    %2387 = vmatpush2.msra.mxu0 0.0
    %2388 = vmatprep.subr.mxu0 0.0
    %2389 = vmatpush2.msra.mxu0 0.0
    %2390 = vmatprep.subr.mxu0 0.0
    %2391 = vmatpush2.msra.mxu0 0.0
    %2392 = vmatprep.subr.mxu0 0.0
    %2393 = vmatpush2.msra.mxu0 0.0
    %2394 = vmatprep.mubr.f32.mxu0 0.0
    %2395 = vmatmul.mubr.f32.gmra.mxu0 %v2328
    %v2396 = vpop.f32.mrf.mxu0
    %v2397 = vadd.f32 %v52, %v2396
    %v2398 = vpop.f32.mrf.mxu0
    %v2399 = vadd.f32 %v56, %v2398
    %2400 = vdwg.mxu0
    %2401 = vset.pattern.permute.xlu0 8
    %2402 = vperm.xlu0 %2401, %v97
    %v2403 = vpop.permute.xlu0 %2402
    %v2405 = vmul.f32 %v2403, %v64
    %v2406 = vmul.f32 %v2403, %v68
    %2407 = vmatprep.subr.mxu0 0.0
    %2408 = vmatpush1.msra.mxu0 0.0
    %2409 = vmatprep.subr.mxu0 0.0
    %2410 = vmatpush1.msra.mxu0 0.0
    %2411 = vmatprep.subr.mxu0 0.0
    %2412 = vmatpush1.msra.mxu0 0.0
    %2413 = vmatprep.subr.mxu0 0.0
    %2414 = vmatpush1.msra.mxu0 0.0
    %2415 = vmatprep.subr.mxu0 0.0
    %2416 = vmatpush1.msra.mxu0 0.0
    %2417 = vmatprep.subr.mxu0 0.0
    %2418 = vmatpush1.msra.mxu0 0.0
    %2419 = vmatprep.subr.mxu0 0.0
    %2420 = vmatpush1.msra.mxu0 0.0
    %2421 = vmatprep.subr.mxu0 0.0
    %2422 = vmatpush1.msra.mxu0 0.0
    %2423 = vmatprep.subr.mxu0 %v211
    %2424 = vmatpush1.msra.mxu0 %v210
    %2425 = vmatprep.subr.mxu0 %v209
    %2426 = vmatpush1.msra.mxu0 %v208
    %2427 = vmatprep.subr.mxu0 %v207
    %2428 = vmatpush1.msra.mxu0 %v206
    %2429 = vmatprep.subr.mxu0 %v205
    %2430 = vmatpush1.msra.mxu0 %v204
    %2431 = vmatprep.subr.mxu0 %v203
    %2432 = vmatpush1.msra.mxu0 %v202
    %2433 = vmatprep.subr.mxu0 %v201
    %2434 = vmatpush1.msra.mxu0 %v200
    %2435 = vmatprep.subr.mxu0 %v199
    %2436 = vmatpush1.msra.mxu0 %v198
    %2437 = vmatprep.subr.mxu0 %v197
    %2438 = vmatpush1.msra.mxu0 %v196
    %2439 = vmatprep.subr.mxu0 0.0
    %2440 = vmatpush2.msra.mxu0 0.0
    %2441 = vmatprep.subr.mxu0 0.0
    %2442 = vmatpush2.msra.mxu0 0.0
    %2443 = vmatprep.subr.mxu0 0.0
    %2444 = vmatpush2.msra.mxu0 0.0
    %2445 = vmatprep.subr.mxu0 0.0
    %2446 = vmatpush2.msra.mxu0 0.0
    %2447 = vmatprep.subr.mxu0 0.0
    %2448 = vmatpush2.msra.mxu0 0.0
    %2449 = vmatprep.subr.mxu0 0.0
    %2450 = vmatpush2.msra.mxu0 0.0
    %2451 = vmatprep.subr.mxu0 0.0
    %2452 = vmatpush2.msra.mxu0 0.0
    %2453 = vmatprep.subr.mxu0 0.0
    %2454 = vmatpush2.msra.mxu0 0.0
    %2455 = vmatprep.subr.mxu0 0.0
    %2456 = vmatpush2.msra.mxu0 0.0
    %2457 = vmatprep.subr.mxu0 0.0
    %2458 = vmatpush2.msra.mxu0 0.0
    %2459 = vmatprep.subr.mxu0 0.0
    %2460 = vmatpush2.msra.mxu0 0.0
    %2461 = vmatprep.subr.mxu0 0.0
    %2462 = vmatpush2.msra.mxu0 0.0
    %2463 = vmatprep.subr.mxu0 0.0
    %2464 = vmatpush2.msra.mxu0 0.0
    %2465 = vmatprep.subr.mxu0 0.0
    %2466 = vmatpush2.msra.mxu0 0.0
    %2467 = vmatprep.subr.mxu0 0.0
    %2468 = vmatpush2.msra.mxu0 0.0
    %2469 = vmatprep.subr.mxu0 0.0
    %2470 = vmatpush2.msra.mxu0 0.0
    %2471 = vmatprep.mubr.f32.mxu0 0.0
    %2472 = vmatmul.mubr.f32.gmra.mxu0 %v2228
    %v2473 = vpop.f32.mrf.mxu0
    %v2474 = vadd.f32 0.0, %v2473
    %v2475 = vpop.f32.mrf.mxu0
    %v2476 = vadd.f32 0.0, %v2475
    %2477 = vdwg.mxu0
    %v2478 = vadd.f32 %v2405, %v2474
    %v2479 = vadd.f32 %v2406, %v2476
    %v2480 = vadd.f32 %v2478, %v40
    %v2481 = vadd.f32 %v2479, %v44
    %v2482 = vtanh.pop %v2480
    %v2483 = vtanh.pop %v2481
    %v2484 = vmul.f32 %v93, %v2482
    %v2485 = vmul.f32 %v94, %v2483
    %v2486 = vadd.f32 %v2484, %v95
    %v2487 = vadd.f32 %v2485, %v96
    %v2488 = vmul.f32 %v2486, %v2222
    %v2489 = vmul.f32 %v2486, %v2487
    %2491 = vrot.lane.b32.xlu0 %v2489, 64
    %v2492 = vpop.permute.xlu0 %2491
    %v2494 = vadd.f32 %v2488, %v2492
    %v2495 = vtanh.pop %v2494
    %v2496 = vmul.f32 %v2487, %v2495
    %2498 = vrot.lane.b32.xlu0 %v2496, 64
    %v2499 = vpop.permute.xlu0 %2498
    %v2500 = vsel %vm114, %v2499, 0
    %2502 = vmatprep.subr.mxu0 0.0
    %2503 = vmatpush1.msra.mxu0 0.0
    %2504 = vmatprep.subr.mxu0 0.0
    %2505 = vmatpush1.msra.mxu0 0.0
    %2506 = vmatprep.subr.mxu0 0.0
    %2507 = vmatpush1.msra.mxu0 0.0
    %2508 = vmatprep.subr.mxu0 0.0
    %2509 = vmatpush1.msra.mxu0 0.0
    %2510 = vmatprep.subr.mxu0 0.0
    %2511 = vmatpush1.msra.mxu0 0.0
    %2512 = vmatprep.subr.mxu0 0.0
    %2513 = vmatpush1.msra.mxu0 0.0
    %2514 = vmatprep.subr.mxu0 0.0
    %2515 = vmatpush1.msra.mxu0 0.0
    %2516 = vmatprep.subr.mxu0 0.0
    %2517 = vmatpush1.msra.mxu0 0.0
    %2518 = vmatprep.subr.mxu0 %v317
    %2519 = vmatpush1.msra.mxu0 %v316
    %2520 = vmatprep.subr.mxu0 %v315
    %2521 = vmatpush1.msra.mxu0 %v314
    %2522 = vmatprep.subr.mxu0 %v313
    %2523 = vmatpush1.msra.mxu0 %v312
    %2524 = vmatprep.subr.mxu0 %v311
    %2525 = vmatpush1.msra.mxu0 %v310
    %2526 = vmatprep.subr.mxu0 %v309
    %2527 = vmatpush1.msra.mxu0 %v308
    %2528 = vmatprep.subr.mxu0 %v307
    %2529 = vmatpush1.msra.mxu0 %v306
    %2530 = vmatprep.subr.mxu0 %v305
    %2531 = vmatpush1.msra.mxu0 %v304
    %2532 = vmatprep.subr.mxu0 %v303
    %2533 = vmatpush1.msra.mxu0 %v302
    %2534 = vmatprep.subr.mxu0 0.0
    %2535 = vmatpush2.msra.mxu0 0.0
    %2536 = vmatprep.subr.mxu0 0.0
    %2537 = vmatpush2.msra.mxu0 0.0
    %2538 = vmatprep.subr.mxu0 0.0
    %2539 = vmatpush2.msra.mxu0 0.0
    %2540 = vmatprep.subr.mxu0 0.0
    %2541 = vmatpush2.msra.mxu0 0.0
    %2542 = vmatprep.subr.mxu0 0.0
    %2543 = vmatpush2.msra.mxu0 0.0
    %2544 = vmatprep.subr.mxu0 0.0
    %2545 = vmatpush2.msra.mxu0 0.0
    %2546 = vmatprep.subr.mxu0 0.0
    %2547 = vmatpush2.msra.mxu0 0.0
    %2548 = vmatprep.subr.mxu0 0.0
    %2549 = vmatpush2.msra.mxu0 0.0
    %2550 = vmatprep.subr.mxu0 0.0
    %2551 = vmatpush2.msra.mxu0 0.0
    %2552 = vmatprep.subr.mxu0 0.0
    %2553 = vmatpush2.msra.mxu0 0.0
    %2554 = vmatprep.subr.mxu0 0.0
    %2555 = vmatpush2.msra.mxu0 0.0
    %2556 = vmatprep.subr.mxu0 0.0
    %2557 = vmatpush2.msra.mxu0 0.0
    %2558 = vmatprep.subr.mxu0 0.0
    %2559 = vmatpush2.msra.mxu0 0.0
    %2560 = vmatprep.subr.mxu0 0.0
    %2561 = vmatpush2.msra.mxu0 0.0
    %2562 = vmatprep.subr.mxu0 0.0
    %2563 = vmatpush2.msra.mxu0 0.0
    %2564 = vmatprep.subr.mxu0 0.0
    %2565 = vmatpush2.msra.mxu0 0.0
    %2566 = vmatprep.mubr.f32.mxu0 0.0
    %2567 = vmatmul.mubr.f32.gmra.mxu0 %v2500
    %v2568 = vpop.f32.mrf.mxu0
    %v2569 = vadd.f32 %v2397, %v2568
    %v2570 = vpop.f32.mrf.mxu0
    %v2571 = vadd.f32 %v2399, %v2570
    %2572 = vdwg.mxu0
    %v2573 = vtanh.pop %v2569
    %v2574 = vtanh.pop %v2571
    %v2575 = vmul.f32 %v93, %v2573
    %v2576 = vmul.f32 %v94, %v2574
    %v2577 = vadd.f32 %v2575, %v95
    %v2578 = vadd.f32 %v2576, %v96
    %v2579 = vmul.f32 %v2577, %v2313
    %v2580 = vmul.f32 %v2577, %v2578
    %2582 = vrot.lane.b32.xlu0 %v2580, 64
    %v2583 = vpop.permute.xlu0 %2582
    %v2585 = vadd.f32 %v2579, %v2583
    %v2586 = vtanh.pop %v2585
    %v2587 = vmul.f32 %v2578, %v2586
    %v2588 = vmul.f32 %v2587, %v410
    %2590 = vrot.lane.b32.xlu0 %v2588, 64
    %v2591 = vpop.permute.xlu0 %2590
    %v2593 = vsel %vm114, %v2591, 0.0
    %2594 = vadd.xlane.f32.xlu0 %v2593
    %v2595 = vpop.xlane.xlu0 %2594
    %v2596 = vadd.f32 %v2595, %v82
    %2598 = vrot.lane.b32.xlu0 %v2587, 64
    %v2599 = vpop.permute.xlu0 %2598
    %v2600 = vsel %vm114, %v2599, 0
    %2602 = vmatprep.subr.mxu0 0.0
    %2603 = vmatpush1.msra.mxu0 0.0
    %2604 = vmatprep.subr.mxu0 0.0
    %2605 = vmatpush1.msra.mxu0 0.0
    %2606 = vmatprep.subr.mxu0 0.0
    %2607 = vmatpush1.msra.mxu0 0.0
    %2608 = vmatprep.subr.mxu0 0.0
    %2609 = vmatpush1.msra.mxu0 0.0
    %2610 = vmatprep.subr.mxu0 0.0
    %2611 = vmatpush1.msra.mxu0 0.0
    %2612 = vmatprep.subr.mxu0 0.0
    %2613 = vmatpush1.msra.mxu0 0.0
    %2614 = vmatprep.subr.mxu0 0.0
    %2615 = vmatpush1.msra.mxu0 0.0
    %2616 = vmatprep.subr.mxu0 0.0
    %2617 = vmatpush1.msra.mxu0 0.0
    %2618 = vmatprep.subr.mxu0 %v113
    %2619 = vmatpush1.msra.mxu0 %v112
    %2620 = vmatprep.subr.mxu0 %v111
    %2621 = vmatpush1.msra.mxu0 %v110
    %2622 = vmatprep.subr.mxu0 %v109
    %2623 = vmatpush1.msra.mxu0 %v108
    %2624 = vmatprep.subr.mxu0 %v107
    %2625 = vmatpush1.msra.mxu0 %v106
    %2626 = vmatprep.subr.mxu0 %v105
    %2627 = vmatpush1.msra.mxu0 %v104
    %2628 = vmatprep.subr.mxu0 %v103
    %2629 = vmatpush1.msra.mxu0 %v102
    %2630 = vmatprep.subr.mxu0 %v101
    %2631 = vmatpush1.msra.mxu0 %v100
    %2632 = vmatprep.subr.mxu0 %v99
    %2633 = vmatpush1.msra.mxu0 %v98
    %2634 = vmatprep.subr.mxu0 0.0
    %2635 = vmatpush2.msra.mxu0 0.0
    %2636 = vmatprep.subr.mxu0 0.0
    %2637 = vmatpush2.msra.mxu0 0.0
    %2638 = vmatprep.subr.mxu0 0.0
    %2639 = vmatpush2.msra.mxu0 0.0
    %2640 = vmatprep.subr.mxu0 0.0
    %2641 = vmatpush2.msra.mxu0 0.0
    %2642 = vmatprep.subr.mxu0 0.0
    %2643 = vmatpush2.msra.mxu0 0.0
    %2644 = vmatprep.subr.mxu0 0.0
    %2645 = vmatpush2.msra.mxu0 0.0
    %2646 = vmatprep.subr.mxu0 0.0
    %2647 = vmatpush2.msra.mxu0 0.0
    %2648 = vmatprep.subr.mxu0 0.0
    %2649 = vmatpush2.msra.mxu0 0.0
    %2650 = vmatprep.subr.mxu0 0.0
    %2651 = vmatpush2.msra.mxu0 0.0
    %2652 = vmatprep.subr.mxu0 0.0
    %2653 = vmatpush2.msra.mxu0 0.0
    %2654 = vmatprep.subr.mxu0 0.0
    %2655 = vmatpush2.msra.mxu0 0.0
    %2656 = vmatprep.subr.mxu0 0.0
    %2657 = vmatpush2.msra.mxu0 0.0
    %2658 = vmatprep.subr.mxu0 0.0
    %2659 = vmatpush2.msra.mxu0 0.0
    %2660 = vmatprep.subr.mxu0 0.0
    %2661 = vmatpush2.msra.mxu0 0.0
    %2662 = vmatprep.subr.mxu0 0.0
    %2663 = vmatpush2.msra.mxu0 0.0
    %2664 = vmatprep.subr.mxu0 0.0
    %2665 = vmatpush2.msra.mxu0 0.0
    %2666 = vmatprep.mubr.f32.mxu0 0.0
    %2667 = vmatmul.mubr.f32.gmra.mxu0 %v2600
    %v2668 = vpop.f32.mrf.mxu0
    %v2669 = vadd.f32 %v52, %v2668
    %v2670 = vpop.f32.mrf.mxu0
    %v2671 = vadd.f32 %v56, %v2670
    %2672 = vdwg.mxu0
    %2673 = vset.pattern.permute.xlu0 9
    %2674 = vperm.xlu0 %2673, %v97
    %v2675 = vpop.permute.xlu0 %2674
    %v2677 = vmul.f32 %v2675, %v64
    %v2678 = vmul.f32 %v2675, %v68
    %2679 = vmatprep.subr.mxu0 0.0
    %2680 = vmatpush1.msra.mxu0 0.0
    %2681 = vmatprep.subr.mxu0 0.0
    %2682 = vmatpush1.msra.mxu0 0.0
    %2683 = vmatprep.subr.mxu0 0.0
    %2684 = vmatpush1.msra.mxu0 0.0
    %2685 = vmatprep.subr.mxu0 0.0
    %2686 = vmatpush1.msra.mxu0 0.0
    %2687 = vmatprep.subr.mxu0 0.0
    %2688 = vmatpush1.msra.mxu0 0.0
    %2689 = vmatprep.subr.mxu0 0.0
    %2690 = vmatpush1.msra.mxu0 0.0
    %2691 = vmatprep.subr.mxu0 0.0
    %2692 = vmatpush1.msra.mxu0 0.0
    %2693 = vmatprep.subr.mxu0 0.0
    %2694 = vmatpush1.msra.mxu0 0.0
    %2695 = vmatprep.subr.mxu0 %v211
    %2696 = vmatpush1.msra.mxu0 %v210
    %2697 = vmatprep.subr.mxu0 %v209
    %2698 = vmatpush1.msra.mxu0 %v208
    %2699 = vmatprep.subr.mxu0 %v207
    %2700 = vmatpush1.msra.mxu0 %v206
    %2701 = vmatprep.subr.mxu0 %v205
    %2702 = vmatpush1.msra.mxu0 %v204
    %2703 = vmatprep.subr.mxu0 %v203
    %2704 = vmatpush1.msra.mxu0 %v202
    %2705 = vmatprep.subr.mxu0 %v201
    %2706 = vmatpush1.msra.mxu0 %v200
    %2707 = vmatprep.subr.mxu0 %v199
    %2708 = vmatpush1.msra.mxu0 %v198
    %2709 = vmatprep.subr.mxu0 %v197
    %2710 = vmatpush1.msra.mxu0 %v196
    %2711 = vmatprep.subr.mxu0 0.0
    %2712 = vmatpush2.msra.mxu0 0.0
    %2713 = vmatprep.subr.mxu0 0.0
    %2714 = vmatpush2.msra.mxu0 0.0
    %2715 = vmatprep.subr.mxu0 0.0
    %2716 = vmatpush2.msra.mxu0 0.0
    %2717 = vmatprep.subr.mxu0 0.0
    %2718 = vmatpush2.msra.mxu0 0.0
    %2719 = vmatprep.subr.mxu0 0.0
    %2720 = vmatpush2.msra.mxu0 0.0
    %2721 = vmatprep.subr.mxu0 0.0
    %2722 = vmatpush2.msra.mxu0 0.0
    %2723 = vmatprep.subr.mxu0 0.0
    %2724 = vmatpush2.msra.mxu0 0.0
    %2725 = vmatprep.subr.mxu0 0.0
    %2726 = vmatpush2.msra.mxu0 0.0
    %2727 = vmatprep.subr.mxu0 0.0
    %2728 = vmatpush2.msra.mxu0 0.0
    %2729 = vmatprep.subr.mxu0 0.0
    %2730 = vmatpush2.msra.mxu0 0.0
    %2731 = vmatprep.subr.mxu0 0.0
    %2732 = vmatpush2.msra.mxu0 0.0
    %2733 = vmatprep.subr.mxu0 0.0
    %2734 = vmatpush2.msra.mxu0 0.0
    %2735 = vmatprep.subr.mxu0 0.0
    %2736 = vmatpush2.msra.mxu0 0.0
    %2737 = vmatprep.subr.mxu0 0.0
    %2738 = vmatpush2.msra.mxu0 0.0
    %2739 = vmatprep.subr.mxu0 0.0
    %2740 = vmatpush2.msra.mxu0 0.0
    %2741 = vmatprep.subr.mxu0 0.0
    %2742 = vmatpush2.msra.mxu0 0.0
    %2743 = vmatprep.mubr.f32.mxu0 0.0
    %2744 = vmatmul.mubr.f32.gmra.mxu0 %v2500
    %v2745 = vpop.f32.mrf.mxu0
    %v2746 = vadd.f32 0.0, %v2745
    %v2747 = vpop.f32.mrf.mxu0
    %v2748 = vadd.f32 0.0, %v2747
    %2749 = vdwg.mxu0
    %v2750 = vadd.f32 %v2677, %v2746
    %v2751 = vadd.f32 %v2678, %v2748
    %v2752 = vadd.f32 %v2750, %v40
    %v2753 = vadd.f32 %v2751, %v44
    %v2754 = vtanh.pop %v2752
    %v2755 = vtanh.pop %v2753
    %v2756 = vmul.f32 %v93, %v2754
    %v2757 = vmul.f32 %v94, %v2755
    %v2758 = vadd.f32 %v2756, %v95
    %v2759 = vadd.f32 %v2757, %v96
    %v2760 = vmul.f32 %v2758, %v2494
    %v2761 = vmul.f32 %v2758, %v2759
    %2763 = vrot.lane.b32.xlu0 %v2761, 64
    %v2764 = vpop.permute.xlu0 %2763
    %v2766 = vadd.f32 %v2760, %v2764
    %v2767 = vtanh.pop %v2766
    %v2768 = vmul.f32 %v2759, %v2767
    %2770 = vrot.lane.b32.xlu0 %v2768, 64
    %v2771 = vpop.permute.xlu0 %2770
    %v2772 = vsel %vm114, %v2771, 0
    %2774 = vmatprep.subr.mxu0 0.0
    %2775 = vmatpush1.msra.mxu0 0.0
    %2776 = vmatprep.subr.mxu0 0.0
    %2777 = vmatpush1.msra.mxu0 0.0
    %2778 = vmatprep.subr.mxu0 0.0
    %2779 = vmatpush1.msra.mxu0 0.0
    %2780 = vmatprep.subr.mxu0 0.0
    %2781 = vmatpush1.msra.mxu0 0.0
    %2782 = vmatprep.subr.mxu0 0.0
    %2783 = vmatpush1.msra.mxu0 0.0
    %2784 = vmatprep.subr.mxu0 0.0
    %2785 = vmatpush1.msra.mxu0 0.0
    %2786 = vmatprep.subr.mxu0 0.0
    %2787 = vmatpush1.msra.mxu0 0.0
    %2788 = vmatprep.subr.mxu0 0.0
    %2789 = vmatpush1.msra.mxu0 0.0
    %2790 = vmatprep.subr.mxu0 %v317
    %2791 = vmatpush1.msra.mxu0 %v316
    %2792 = vmatprep.subr.mxu0 %v315
    %2793 = vmatpush1.msra.mxu0 %v314
    %2794 = vmatprep.subr.mxu0 %v313
    %2795 = vmatpush1.msra.mxu0 %v312
    %2796 = vmatprep.subr.mxu0 %v311
    %2797 = vmatpush1.msra.mxu0 %v310
    %2798 = vmatprep.subr.mxu0 %v309
    %2799 = vmatpush1.msra.mxu0 %v308
    %2800 = vmatprep.subr.mxu0 %v307
    %2801 = vmatpush1.msra.mxu0 %v306
    %2802 = vmatprep.subr.mxu0 %v305
    %2803 = vmatpush1.msra.mxu0 %v304
    %2804 = vmatprep.subr.mxu0 %v303
    %2805 = vmatpush1.msra.mxu0 %v302
    %2806 = vmatprep.subr.mxu0 0.0
    %2807 = vmatpush2.msra.mxu0 0.0
    %2808 = vmatprep.subr.mxu0 0.0
    %2809 = vmatpush2.msra.mxu0 0.0
    %2810 = vmatprep.subr.mxu0 0.0
    %2811 = vmatpush2.msra.mxu0 0.0
    %2812 = vmatprep.subr.mxu0 0.0
    %2813 = vmatpush2.msra.mxu0 0.0
    %2814 = vmatprep.subr.mxu0 0.0
    %2815 = vmatpush2.msra.mxu0 0.0
    %2816 = vmatprep.subr.mxu0 0.0
    %2817 = vmatpush2.msra.mxu0 0.0
    %2818 = vmatprep.subr.mxu0 0.0
    %2819 = vmatpush2.msra.mxu0 0.0
    %2820 = vmatprep.subr.mxu0 0.0
    %2821 = vmatpush2.msra.mxu0 0.0
    %2822 = vmatprep.subr.mxu0 0.0
    %2823 = vmatpush2.msra.mxu0 0.0
    %2824 = vmatprep.subr.mxu0 0.0
    %2825 = vmatpush2.msra.mxu0 0.0
    %2826 = vmatprep.subr.mxu0 0.0
    %2827 = vmatpush2.msra.mxu0 0.0
    %2828 = vmatprep.subr.mxu0 0.0
    %2829 = vmatpush2.msra.mxu0 0.0
    %2830 = vmatprep.subr.mxu0 0.0
    %2831 = vmatpush2.msra.mxu0 0.0
    %2832 = vmatprep.subr.mxu0 0.0
    %2833 = vmatpush2.msra.mxu0 0.0
    %2834 = vmatprep.subr.mxu0 0.0
    %2835 = vmatpush2.msra.mxu0 0.0
    %2836 = vmatprep.subr.mxu0 0.0
    %2837 = vmatpush2.msra.mxu0 0.0
    %2838 = vmatprep.mubr.f32.mxu0 0.0
    %2839 = vmatmul.mubr.f32.gmra.mxu0 %v2772
    %v2840 = vpop.f32.mrf.mxu0
    %v2841 = vadd.f32 %v2669, %v2840
    %v2842 = vpop.f32.mrf.mxu0
    %v2843 = vadd.f32 %v2671, %v2842
    %2844 = vdwg.mxu0
    %v2845 = vtanh.pop %v2841
    %v2846 = vtanh.pop %v2843
    %v2847 = vmul.f32 %v93, %v2845
    %v2848 = vmul.f32 %v94, %v2846
    %v2849 = vadd.f32 %v2847, %v95
    %v2850 = vadd.f32 %v2848, %v96
    %v2851 = vmul.f32 %v2849, %v2585
    %v2852 = vmul.f32 %v2849, %v2850
    %2854 = vrot.lane.b32.xlu0 %v2852, 64
    %v2855 = vpop.permute.xlu0 %2854
    %v2857 = vadd.f32 %v2851, %v2855
    %v2858 = vtanh.pop %v2857
    %v2859 = vmul.f32 %v2850, %v2858
    %v2860 = vmul.f32 %v2859, %v410
    %2862 = vrot.lane.b32.xlu0 %v2860, 64
    %v2863 = vpop.permute.xlu0 %2862
    %v2865 = vsel %vm114, %v2863, 0.0
    %2866 = vadd.xlane.f32.xlu0 %v2865
    %v2867 = vpop.xlane.xlu0 %2866
    %v2868 = vadd.f32 %v2867, %v82
    %2870 = vrot.lane.b32.xlu0 %v2859, 64
    %v2871 = vpop.permute.xlu0 %2870
    %v2872 = vsel %vm114, %v2871, 0
    %2874 = vmatprep.subr.mxu0 0.0
    %2875 = vmatpush1.msra.mxu0 0.0
    %2876 = vmatprep.subr.mxu0 0.0
    %2877 = vmatpush1.msra.mxu0 0.0
    %2878 = vmatprep.subr.mxu0 0.0
    %2879 = vmatpush1.msra.mxu0 0.0
    %2880 = vmatprep.subr.mxu0 0.0
    %2881 = vmatpush1.msra.mxu0 0.0
    %2882 = vmatprep.subr.mxu0 0.0
    %2883 = vmatpush1.msra.mxu0 0.0
    %2884 = vmatprep.subr.mxu0 0.0
    %2885 = vmatpush1.msra.mxu0 0.0
    %2886 = vmatprep.subr.mxu0 0.0
    %2887 = vmatpush1.msra.mxu0 0.0
    %2888 = vmatprep.subr.mxu0 0.0
    %2889 = vmatpush1.msra.mxu0 0.0
    %2890 = vmatprep.subr.mxu0 %v113
    %2891 = vmatpush1.msra.mxu0 %v112
    %2892 = vmatprep.subr.mxu0 %v111
    %2893 = vmatpush1.msra.mxu0 %v110
    %2894 = vmatprep.subr.mxu0 %v109
    %2895 = vmatpush1.msra.mxu0 %v108
    %2896 = vmatprep.subr.mxu0 %v107
    %2897 = vmatpush1.msra.mxu0 %v106
    %2898 = vmatprep.subr.mxu0 %v105
    %2899 = vmatpush1.msra.mxu0 %v104
    %2900 = vmatprep.subr.mxu0 %v103
    %2901 = vmatpush1.msra.mxu0 %v102
    %2902 = vmatprep.subr.mxu0 %v101
    %2903 = vmatpush1.msra.mxu0 %v100
    %2904 = vmatprep.subr.mxu0 %v99
    %2905 = vmatpush1.msra.mxu0 %v98
    %2906 = vmatprep.subr.mxu0 0.0
    %2907 = vmatpush2.msra.mxu0 0.0
    %2908 = vmatprep.subr.mxu0 0.0
    %2909 = vmatpush2.msra.mxu0 0.0
    %2910 = vmatprep.subr.mxu0 0.0
    %2911 = vmatpush2.msra.mxu0 0.0
    %2912 = vmatprep.subr.mxu0 0.0
    %2913 = vmatpush2.msra.mxu0 0.0
    %2914 = vmatprep.subr.mxu0 0.0
    %2915 = vmatpush2.msra.mxu0 0.0
    %2916 = vmatprep.subr.mxu0 0.0
    %2917 = vmatpush2.msra.mxu0 0.0
    %2918 = vmatprep.subr.mxu0 0.0
    %2919 = vmatpush2.msra.mxu0 0.0
    %2920 = vmatprep.subr.mxu0 0.0
    %2921 = vmatpush2.msra.mxu0 0.0
    %2922 = vmatprep.subr.mxu0 0.0
    %2923 = vmatpush2.msra.mxu0 0.0
    %2924 = vmatprep.subr.mxu0 0.0
    %2925 = vmatpush2.msra.mxu0 0.0
    %2926 = vmatprep.subr.mxu0 0.0
    %2927 = vmatpush2.msra.mxu0 0.0
    %2928 = vmatprep.subr.mxu0 0.0
    %2929 = vmatpush2.msra.mxu0 0.0
    %2930 = vmatprep.subr.mxu0 0.0
    %2931 = vmatpush2.msra.mxu0 0.0
    %2932 = vmatprep.subr.mxu0 0.0
    %2933 = vmatpush2.msra.mxu0 0.0
    %2934 = vmatprep.subr.mxu0 0.0
    %2935 = vmatpush2.msra.mxu0 0.0
    %2936 = vmatprep.subr.mxu0 0.0
    %2937 = vmatpush2.msra.mxu0 0.0
    %2938 = vmatprep.mubr.f32.mxu0 0.0
    %2939 = vmatmul.mubr.f32.gmra.mxu0 %v2872
    %v2940 = vpop.f32.mrf.mxu0
    %v2941 = vadd.f32 %v52, %v2940
    %v2942 = vpop.f32.mrf.mxu0
    %v2943 = vadd.f32 %v56, %v2942
    %2944 = vdwg.mxu0
    %2945 = vset.pattern.permute.xlu0 10
    %2946 = vperm.xlu0 %2945, %v97
    %v2947 = vpop.permute.xlu0 %2946
    %v2949 = vmul.f32 %v2947, %v64
    %v2950 = vmul.f32 %v2947, %v68
    %2951 = vmatprep.subr.mxu0 0.0
    %2952 = vmatpush1.msra.mxu0 0.0
    %2953 = vmatprep.subr.mxu0 0.0
    %2954 = vmatpush1.msra.mxu0 0.0
    %2955 = vmatprep.subr.mxu0 0.0
    %2956 = vmatpush1.msra.mxu0 0.0
    %2957 = vmatprep.subr.mxu0 0.0
    %2958 = vmatpush1.msra.mxu0 0.0
    %2959 = vmatprep.subr.mxu0 0.0
    %2960 = vmatpush1.msra.mxu0 0.0
    %2961 = vmatprep.subr.mxu0 0.0
    %2962 = vmatpush1.msra.mxu0 0.0
    %2963 = vmatprep.subr.mxu0 0.0
    %2964 = vmatpush1.msra.mxu0 0.0
    %2965 = vmatprep.subr.mxu0 0.0
    %2966 = vmatpush1.msra.mxu0 0.0
    %2967 = vmatprep.subr.mxu0 %v211
    %2968 = vmatpush1.msra.mxu0 %v210
    %2969 = vmatprep.subr.mxu0 %v209
    %2970 = vmatpush1.msra.mxu0 %v208
    %2971 = vmatprep.subr.mxu0 %v207
    %2972 = vmatpush1.msra.mxu0 %v206
    %2973 = vmatprep.subr.mxu0 %v205
    %2974 = vmatpush1.msra.mxu0 %v204
    %2975 = vmatprep.subr.mxu0 %v203
    %2976 = vmatpush1.msra.mxu0 %v202
    %2977 = vmatprep.subr.mxu0 %v201
    %2978 = vmatpush1.msra.mxu0 %v200
    %2979 = vmatprep.subr.mxu0 %v199
    %2980 = vmatpush1.msra.mxu0 %v198
    %2981 = vmatprep.subr.mxu0 %v197
    %2982 = vmatpush1.msra.mxu0 %v196
    %2983 = vmatprep.subr.mxu0 0.0
    %2984 = vmatpush2.msra.mxu0 0.0
    %2985 = vmatprep.subr.mxu0 0.0
    %2986 = vmatpush2.msra.mxu0 0.0
    %2987 = vmatprep.subr.mxu0 0.0
    %2988 = vmatpush2.msra.mxu0 0.0
    %2989 = vmatprep.subr.mxu0 0.0
    %2990 = vmatpush2.msra.mxu0 0.0
    %2991 = vmatprep.subr.mxu0 0.0
    %2992 = vmatpush2.msra.mxu0 0.0
    %2993 = vmatprep.subr.mxu0 0.0
    %2994 = vmatpush2.msra.mxu0 0.0
    %2995 = vmatprep.subr.mxu0 0.0
    %2996 = vmatpush2.msra.mxu0 0.0
    %2997 = vmatprep.subr.mxu0 0.0
    %2998 = vmatpush2.msra.mxu0 0.0
    %2999 = vmatprep.subr.mxu0 0.0
    %3000 = vmatpush2.msra.mxu0 0.0
    %3001 = vmatprep.subr.mxu0 0.0
    %3002 = vmatpush2.msra.mxu0 0.0
    %3003 = vmatprep.subr.mxu0 0.0
    %3004 = vmatpush2.msra.mxu0 0.0
    %3005 = vmatprep.subr.mxu0 0.0
    %3006 = vmatpush2.msra.mxu0 0.0
    %3007 = vmatprep.subr.mxu0 0.0
    %3008 = vmatpush2.msra.mxu0 0.0
    %3009 = vmatprep.subr.mxu0 0.0
    %3010 = vmatpush2.msra.mxu0 0.0
    %3011 = vmatprep.subr.mxu0 0.0
    %3012 = vmatpush2.msra.mxu0 0.0
    %3013 = vmatprep.subr.mxu0 0.0
    %3014 = vmatpush2.msra.mxu0 0.0
    %3015 = vmatprep.mubr.f32.mxu0 0.0
    %3016 = vmatmul.mubr.f32.gmra.mxu0 %v2772
    %v3017 = vpop.f32.mrf.mxu0
    %v3018 = vadd.f32 0.0, %v3017
    %v3019 = vpop.f32.mrf.mxu0
    %v3020 = vadd.f32 0.0, %v3019
    %3021 = vdwg.mxu0
    %v3022 = vadd.f32 %v2949, %v3018
    %v3023 = vadd.f32 %v2950, %v3020
    %v3024 = vadd.f32 %v3022, %v40
    %v3025 = vadd.f32 %v3023, %v44
    %v3026 = vtanh.pop %v3024
    %v3027 = vtanh.pop %v3025
    %v3028 = vmul.f32 %v93, %v3026
    %v3029 = vmul.f32 %v94, %v3027
    %v3030 = vadd.f32 %v3028, %v95
    %v3031 = vadd.f32 %v3029, %v96
    %v3032 = vmul.f32 %v3030, %v2766
    %v3033 = vmul.f32 %v3030, %v3031
    %3035 = vrot.lane.b32.xlu0 %v3033, 64
    %v3036 = vpop.permute.xlu0 %3035
    %v3038 = vadd.f32 %v3032, %v3036
    %v3039 = vtanh.pop %v3038
    %v3040 = vmul.f32 %v3031, %v3039
    %3042 = vrot.lane.b32.xlu0 %v3040, 64
    %v3043 = vpop.permute.xlu0 %3042
    %v3044 = vsel %vm114, %v3043, 0
    %3046 = vmatprep.subr.mxu0 0.0
    %3047 = vmatpush1.msra.mxu0 0.0
    %3048 = vmatprep.subr.mxu0 0.0
    %3049 = vmatpush1.msra.mxu0 0.0
    %3050 = vmatprep.subr.mxu0 0.0
    %3051 = vmatpush1.msra.mxu0 0.0
    %3052 = vmatprep.subr.mxu0 0.0
    %3053 = vmatpush1.msra.mxu0 0.0
    %3054 = vmatprep.subr.mxu0 0.0
    %3055 = vmatpush1.msra.mxu0 0.0
    %3056 = vmatprep.subr.mxu0 0.0
    %3057 = vmatpush1.msra.mxu0 0.0
    %3058 = vmatprep.subr.mxu0 0.0
    %3059 = vmatpush1.msra.mxu0 0.0
    %3060 = vmatprep.subr.mxu0 0.0
    %3061 = vmatpush1.msra.mxu0 0.0
    %3062 = vmatprep.subr.mxu0 %v317
    %3063 = vmatpush1.msra.mxu0 %v316
    %3064 = vmatprep.subr.mxu0 %v315
    %3065 = vmatpush1.msra.mxu0 %v314
    %3066 = vmatprep.subr.mxu0 %v313
    %3067 = vmatpush1.msra.mxu0 %v312
    %3068 = vmatprep.subr.mxu0 %v311
    %3069 = vmatpush1.msra.mxu0 %v310
    %3070 = vmatprep.subr.mxu0 %v309
    %3071 = vmatpush1.msra.mxu0 %v308
    %3072 = vmatprep.subr.mxu0 %v307
    %3073 = vmatpush1.msra.mxu0 %v306
    %3074 = vmatprep.subr.mxu0 %v305
    %3075 = vmatpush1.msra.mxu0 %v304
    %3076 = vmatprep.subr.mxu0 %v303
    %3077 = vmatpush1.msra.mxu0 %v302
    %3078 = vmatprep.subr.mxu0 0.0
    %3079 = vmatpush2.msra.mxu0 0.0
    %3080 = vmatprep.subr.mxu0 0.0
    %3081 = vmatpush2.msra.mxu0 0.0
    %3082 = vmatprep.subr.mxu0 0.0
    %3083 = vmatpush2.msra.mxu0 0.0
    %3084 = vmatprep.subr.mxu0 0.0
    %3085 = vmatpush2.msra.mxu0 0.0
    %3086 = vmatprep.subr.mxu0 0.0
    %3087 = vmatpush2.msra.mxu0 0.0
    %3088 = vmatprep.subr.mxu0 0.0
    %3089 = vmatpush2.msra.mxu0 0.0
    %3090 = vmatprep.subr.mxu0 0.0
    %3091 = vmatpush2.msra.mxu0 0.0
    %3092 = vmatprep.subr.mxu0 0.0
    %3093 = vmatpush2.msra.mxu0 0.0
    %3094 = vmatprep.subr.mxu0 0.0
    %3095 = vmatpush2.msra.mxu0 0.0
    %3096 = vmatprep.subr.mxu0 0.0
    %3097 = vmatpush2.msra.mxu0 0.0
    %3098 = vmatprep.subr.mxu0 0.0
    %3099 = vmatpush2.msra.mxu0 0.0
    %3100 = vmatprep.subr.mxu0 0.0
    %3101 = vmatpush2.msra.mxu0 0.0
    %3102 = vmatprep.subr.mxu0 0.0
    %3103 = vmatpush2.msra.mxu0 0.0
    %3104 = vmatprep.subr.mxu0 0.0
    %3105 = vmatpush2.msra.mxu0 0.0
    %3106 = vmatprep.subr.mxu0 0.0
    %3107 = vmatpush2.msra.mxu0 0.0
    %3108 = vmatprep.subr.mxu0 0.0
    %3109 = vmatpush2.msra.mxu0 0.0
    %3110 = vmatprep.mubr.f32.mxu0 0.0
    %3111 = vmatmul.mubr.f32.gmra.mxu0 %v3044
    %v3112 = vpop.f32.mrf.mxu0
    %v3113 = vadd.f32 %v2941, %v3112
    %v3114 = vpop.f32.mrf.mxu0
    %v3115 = vadd.f32 %v2943, %v3114
    %3116 = vdwg.mxu0
    %v3117 = vtanh.pop %v3113
    %v3118 = vtanh.pop %v3115
    %v3119 = vmul.f32 %v93, %v3117
    %v3120 = vmul.f32 %v94, %v3118
    %v3121 = vadd.f32 %v3119, %v95
    %v3122 = vadd.f32 %v3120, %v96
    %v3123 = vmul.f32 %v3121, %v2857
    %v3124 = vmul.f32 %v3121, %v3122
    %3126 = vrot.lane.b32.xlu0 %v3124, 64
    %v3127 = vpop.permute.xlu0 %3126
    %v3129 = vadd.f32 %v3123, %v3127
    %v3130 = vtanh.pop %v3129
    %v3131 = vmul.f32 %v3122, %v3130
    %v3132 = vmul.f32 %v3131, %v410
    %3134 = vrot.lane.b32.xlu0 %v3132, 64
    %v3135 = vpop.permute.xlu0 %3134
    %v3137 = vsel %vm114, %v3135, 0.0
    %3138 = vadd.xlane.f32.xlu0 %v3137
    %v3139 = vpop.xlane.xlu0 %3138
    %v3140 = vadd.f32 %v3139, %v82
    %3142 = vrot.lane.b32.xlu0 %v3131, 64
    %v3143 = vpop.permute.xlu0 %3142
    %v3144 = vsel %vm114, %v3143, 0
    %3146 = vmatprep.subr.mxu0 0.0
    %3147 = vmatpush1.msra.mxu0 0.0
    %3148 = vmatprep.subr.mxu0 0.0
    %3149 = vmatpush1.msra.mxu0 0.0
    %3150 = vmatprep.subr.mxu0 0.0
    %3151 = vmatpush1.msra.mxu0 0.0
    %3152 = vmatprep.subr.mxu0 0.0
    %3153 = vmatpush1.msra.mxu0 0.0
    %3154 = vmatprep.subr.mxu0 0.0
    %3155 = vmatpush1.msra.mxu0 0.0
    %3156 = vmatprep.subr.mxu0 0.0
    %3157 = vmatpush1.msra.mxu0 0.0
    %3158 = vmatprep.subr.mxu0 0.0
    %3159 = vmatpush1.msra.mxu0 0.0
    %3160 = vmatprep.subr.mxu0 0.0
    %3161 = vmatpush1.msra.mxu0 0.0
    %3162 = vmatprep.subr.mxu0 %v113
    %3163 = vmatpush1.msra.mxu0 %v112
    %3164 = vmatprep.subr.mxu0 %v111
    %3165 = vmatpush1.msra.mxu0 %v110
    %3166 = vmatprep.subr.mxu0 %v109
    %3167 = vmatpush1.msra.mxu0 %v108
    %3168 = vmatprep.subr.mxu0 %v107
    %3169 = vmatpush1.msra.mxu0 %v106
    %3170 = vmatprep.subr.mxu0 %v105
    %3171 = vmatpush1.msra.mxu0 %v104
    %3172 = vmatprep.subr.mxu0 %v103
    %3173 = vmatpush1.msra.mxu0 %v102
    %3174 = vmatprep.subr.mxu0 %v101
    %3175 = vmatpush1.msra.mxu0 %v100
    %3176 = vmatprep.subr.mxu0 %v99
    %3177 = vmatpush1.msra.mxu0 %v98
    %3178 = vmatprep.subr.mxu0 0.0
    %3179 = vmatpush2.msra.mxu0 0.0
    %3180 = vmatprep.subr.mxu0 0.0
    %3181 = vmatpush2.msra.mxu0 0.0
    %3182 = vmatprep.subr.mxu0 0.0
    %3183 = vmatpush2.msra.mxu0 0.0
    %3184 = vmatprep.subr.mxu0 0.0
    %3185 = vmatpush2.msra.mxu0 0.0
    %3186 = vmatprep.subr.mxu0 0.0
    %3187 = vmatpush2.msra.mxu0 0.0
    %3188 = vmatprep.subr.mxu0 0.0
    %3189 = vmatpush2.msra.mxu0 0.0
    %3190 = vmatprep.subr.mxu0 0.0
    %3191 = vmatpush2.msra.mxu0 0.0
    %3192 = vmatprep.subr.mxu0 0.0
    %3193 = vmatpush2.msra.mxu0 0.0
    %3194 = vmatprep.subr.mxu0 0.0
    %3195 = vmatpush2.msra.mxu0 0.0
    %3196 = vmatprep.subr.mxu0 0.0
    %3197 = vmatpush2.msra.mxu0 0.0
    %3198 = vmatprep.subr.mxu0 0.0
    %3199 = vmatpush2.msra.mxu0 0.0
    %3200 = vmatprep.subr.mxu0 0.0
    %3201 = vmatpush2.msra.mxu0 0.0
    %3202 = vmatprep.subr.mxu0 0.0
    %3203 = vmatpush2.msra.mxu0 0.0
    %3204 = vmatprep.subr.mxu0 0.0
    %3205 = vmatpush2.msra.mxu0 0.0
    %3206 = vmatprep.subr.mxu0 0.0
    %3207 = vmatpush2.msra.mxu0 0.0
    %3208 = vmatprep.subr.mxu0 0.0
    %3209 = vmatpush2.msra.mxu0 0.0
    %3210 = vmatprep.mubr.f32.mxu0 0.0
    %3211 = vmatmul.mubr.f32.gmra.mxu0 %v3144
    %v3212 = vpop.f32.mrf.mxu0
    %v3213 = vadd.f32 %v52, %v3212
    %v3214 = vpop.f32.mrf.mxu0
    %v3215 = vadd.f32 %v56, %v3214
    %3216 = vdwg.mxu0
    %3217 = vset.pattern.permute.xlu0 11
    %3218 = vperm.xlu0 %3217, %v97
    %v3219 = vpop.permute.xlu0 %3218
    %v3221 = vmul.f32 %v3219, %v64
    %v3222 = vmul.f32 %v3219, %v68
    %3223 = vmatprep.subr.mxu0 0.0
    %3224 = vmatpush1.msra.mxu0 0.0
    %3225 = vmatprep.subr.mxu0 0.0
    %3226 = vmatpush1.msra.mxu0 0.0
    %3227 = vmatprep.subr.mxu0 0.0
    %3228 = vmatpush1.msra.mxu0 0.0
    %3229 = vmatprep.subr.mxu0 0.0
    %3230 = vmatpush1.msra.mxu0 0.0
    %3231 = vmatprep.subr.mxu0 0.0
    %3232 = vmatpush1.msra.mxu0 0.0
    %3233 = vmatprep.subr.mxu0 0.0
    %3234 = vmatpush1.msra.mxu0 0.0
    %3235 = vmatprep.subr.mxu0 0.0
    %3236 = vmatpush1.msra.mxu0 0.0
    %3237 = vmatprep.subr.mxu0 0.0
    %3238 = vmatpush1.msra.mxu0 0.0
    %3239 = vmatprep.subr.mxu0 %v211
    %3240 = vmatpush1.msra.mxu0 %v210
    %3241 = vmatprep.subr.mxu0 %v209
    %3242 = vmatpush1.msra.mxu0 %v208
    %3243 = vmatprep.subr.mxu0 %v207
    %3244 = vmatpush1.msra.mxu0 %v206
    %3245 = vmatprep.subr.mxu0 %v205
    %3246 = vmatpush1.msra.mxu0 %v204
    %3247 = vmatprep.subr.mxu0 %v203
    %3248 = vmatpush1.msra.mxu0 %v202
    %3249 = vmatprep.subr.mxu0 %v201
    %3250 = vmatpush1.msra.mxu0 %v200
    %3251 = vmatprep.subr.mxu0 %v199
    %3252 = vmatpush1.msra.mxu0 %v198
    %3253 = vmatprep.subr.mxu0 %v197
    %3254 = vmatpush1.msra.mxu0 %v196
    %3255 = vmatprep.subr.mxu0 0.0
    %3256 = vmatpush2.msra.mxu0 0.0
    %3257 = vmatprep.subr.mxu0 0.0
    %3258 = vmatpush2.msra.mxu0 0.0
    %3259 = vmatprep.subr.mxu0 0.0
    %3260 = vmatpush2.msra.mxu0 0.0
    %3261 = vmatprep.subr.mxu0 0.0
    %3262 = vmatpush2.msra.mxu0 0.0
    %3263 = vmatprep.subr.mxu0 0.0
    %3264 = vmatpush2.msra.mxu0 0.0
    %3265 = vmatprep.subr.mxu0 0.0
    %3266 = vmatpush2.msra.mxu0 0.0
    %3267 = vmatprep.subr.mxu0 0.0
    %3268 = vmatpush2.msra.mxu0 0.0
    %3269 = vmatprep.subr.mxu0 0.0
    %3270 = vmatpush2.msra.mxu0 0.0
    %3271 = vmatprep.subr.mxu0 0.0
    %3272 = vmatpush2.msra.mxu0 0.0
    %3273 = vmatprep.subr.mxu0 0.0
    %3274 = vmatpush2.msra.mxu0 0.0
    %3275 = vmatprep.subr.mxu0 0.0
    %3276 = vmatpush2.msra.mxu0 0.0
    %3277 = vmatprep.subr.mxu0 0.0
    %3278 = vmatpush2.msra.mxu0 0.0
    %3279 = vmatprep.subr.mxu0 0.0
    %3280 = vmatpush2.msra.mxu0 0.0
    %3281 = vmatprep.subr.mxu0 0.0
    %3282 = vmatpush2.msra.mxu0 0.0
    %3283 = vmatprep.subr.mxu0 0.0
    %3284 = vmatpush2.msra.mxu0 0.0
    %3285 = vmatprep.subr.mxu0 0.0
    %3286 = vmatpush2.msra.mxu0 0.0
    %3287 = vmatprep.mubr.f32.mxu0 0.0
    %3288 = vmatmul.mubr.f32.gmra.mxu0 %v3044
    %v3289 = vpop.f32.mrf.mxu0
    %v3290 = vadd.f32 0.0, %v3289
    %v3291 = vpop.f32.mrf.mxu0
    %v3292 = vadd.f32 0.0, %v3291
    %3293 = vdwg.mxu0
    %v3294 = vadd.f32 %v3221, %v3290
    %v3295 = vadd.f32 %v3222, %v3292
    %v3296 = vadd.f32 %v3294, %v40
    %v3297 = vadd.f32 %v3295, %v44
    %v3298 = vtanh.pop %v3296
    %v3299 = vtanh.pop %v3297
    %v3300 = vmul.f32 %v93, %v3298
    %v3301 = vmul.f32 %v94, %v3299
    %v3302 = vadd.f32 %v3300, %v95
    %v3303 = vadd.f32 %v3301, %v96
    %v3304 = vmul.f32 %v3302, %v3038
    %v3305 = vmul.f32 %v3302, %v3303
    %3307 = vrot.lane.b32.xlu0 %v3305, 64
    %v3308 = vpop.permute.xlu0 %3307
    %v3310 = vadd.f32 %v3304, %v3308
    %v3311 = vtanh.pop %v3310
    %v3312 = vmul.f32 %v3303, %v3311
    %3314 = vrot.lane.b32.xlu0 %v3312, 64
    %v3315 = vpop.permute.xlu0 %3314
    %v3316 = vsel %vm114, %v3315, 0
    %3318 = vmatprep.subr.mxu0 0.0
    %3319 = vmatpush1.msra.mxu0 0.0
    %3320 = vmatprep.subr.mxu0 0.0
    %3321 = vmatpush1.msra.mxu0 0.0
    %3322 = vmatprep.subr.mxu0 0.0
    %3323 = vmatpush1.msra.mxu0 0.0
    %3324 = vmatprep.subr.mxu0 0.0
    %3325 = vmatpush1.msra.mxu0 0.0
    %3326 = vmatprep.subr.mxu0 0.0
    %3327 = vmatpush1.msra.mxu0 0.0
    %3328 = vmatprep.subr.mxu0 0.0
    %3329 = vmatpush1.msra.mxu0 0.0
    %3330 = vmatprep.subr.mxu0 0.0
    %3331 = vmatpush1.msra.mxu0 0.0
    %3332 = vmatprep.subr.mxu0 0.0
    %3333 = vmatpush1.msra.mxu0 0.0
    %3334 = vmatprep.subr.mxu0 %v317
    %3335 = vmatpush1.msra.mxu0 %v316
    %3336 = vmatprep.subr.mxu0 %v315
    %3337 = vmatpush1.msra.mxu0 %v314
    %3338 = vmatprep.subr.mxu0 %v313
    %3339 = vmatpush1.msra.mxu0 %v312
    %3340 = vmatprep.subr.mxu0 %v311
    %3341 = vmatpush1.msra.mxu0 %v310
    %3342 = vmatprep.subr.mxu0 %v309
    %3343 = vmatpush1.msra.mxu0 %v308
    %3344 = vmatprep.subr.mxu0 %v307
    %3345 = vmatpush1.msra.mxu0 %v306
    %3346 = vmatprep.subr.mxu0 %v305
    %3347 = vmatpush1.msra.mxu0 %v304
    %3348 = vmatprep.subr.mxu0 %v303
    %3349 = vmatpush1.msra.mxu0 %v302
    %3350 = vmatprep.subr.mxu0 0.0
    %3351 = vmatpush2.msra.mxu0 0.0
    %3352 = vmatprep.subr.mxu0 0.0
    %3353 = vmatpush2.msra.mxu0 0.0
    %3354 = vmatprep.subr.mxu0 0.0
    %3355 = vmatpush2.msra.mxu0 0.0
    %3356 = vmatprep.subr.mxu0 0.0
    %3357 = vmatpush2.msra.mxu0 0.0
    %3358 = vmatprep.subr.mxu0 0.0
    %3359 = vmatpush2.msra.mxu0 0.0
    %3360 = vmatprep.subr.mxu0 0.0
    %3361 = vmatpush2.msra.mxu0 0.0
    %3362 = vmatprep.subr.mxu0 0.0
    %3363 = vmatpush2.msra.mxu0 0.0
    %3364 = vmatprep.subr.mxu0 0.0
    %3365 = vmatpush2.msra.mxu0 0.0
    %3366 = vmatprep.subr.mxu0 0.0
    %3367 = vmatpush2.msra.mxu0 0.0
    %3368 = vmatprep.subr.mxu0 0.0
    %3369 = vmatpush2.msra.mxu0 0.0
    %3370 = vmatprep.subr.mxu0 0.0
    %3371 = vmatpush2.msra.mxu0 0.0
    %3372 = vmatprep.subr.mxu0 0.0
    %3373 = vmatpush2.msra.mxu0 0.0
    %3374 = vmatprep.subr.mxu0 0.0
    %3375 = vmatpush2.msra.mxu0 0.0
    %3376 = vmatprep.subr.mxu0 0.0
    %3377 = vmatpush2.msra.mxu0 0.0
    %3378 = vmatprep.subr.mxu0 0.0
    %3379 = vmatpush2.msra.mxu0 0.0
    %3380 = vmatprep.subr.mxu0 0.0
    %3381 = vmatpush2.msra.mxu0 0.0
    %3382 = vmatprep.mubr.f32.mxu0 0.0
    %3383 = vmatmul.mubr.f32.gmra.mxu0 %v3316
    %v3384 = vpop.f32.mrf.mxu0
    %v3385 = vadd.f32 %v3213, %v3384
    %v3386 = vpop.f32.mrf.mxu0
    %v3387 = vadd.f32 %v3215, %v3386
    %3388 = vdwg.mxu0
    %v3389 = vtanh.pop %v3385
    %v3390 = vtanh.pop %v3387
    %v3391 = vmul.f32 %v93, %v3389
    %v3392 = vmul.f32 %v94, %v3390
    %v3393 = vadd.f32 %v3391, %v95
    %v3394 = vadd.f32 %v3392, %v96
    %v3395 = vmul.f32 %v3393, %v3129
    %v3396 = vmul.f32 %v3393, %v3394
    %3398 = vrot.lane.b32.xlu0 %v3396, 64
    %v3399 = vpop.permute.xlu0 %3398
    %v3401 = vadd.f32 %v3395, %v3399
    %v3402 = vtanh.pop %v3401
    %v3403 = vmul.f32 %v3394, %v3402
    %v3404 = vmul.f32 %v3403, %v410
    %3406 = vrot.lane.b32.xlu0 %v3404, 64
    %v3407 = vpop.permute.xlu0 %3406
    %v3409 = vsel %vm114, %v3407, 0.0
    %3410 = vadd.xlane.f32.xlu0 %v3409
    %v3411 = vpop.xlane.xlu0 %3410
    %v3412 = vadd.f32 %v3411, %v82
    %3414 = vrot.lane.b32.xlu0 %v3403, 64
    %v3415 = vpop.permute.xlu0 %3414
    %v3416 = vsel %vm114, %v3415, 0
    %3418 = vmatprep.subr.mxu0 0.0
    %3419 = vmatpush1.msra.mxu0 0.0
    %3420 = vmatprep.subr.mxu0 0.0
    %3421 = vmatpush1.msra.mxu0 0.0
    %3422 = vmatprep.subr.mxu0 0.0
    %3423 = vmatpush1.msra.mxu0 0.0
    %3424 = vmatprep.subr.mxu0 0.0
    %3425 = vmatpush1.msra.mxu0 0.0
    %3426 = vmatprep.subr.mxu0 0.0
    %3427 = vmatpush1.msra.mxu0 0.0
    %3428 = vmatprep.subr.mxu0 0.0
    %3429 = vmatpush1.msra.mxu0 0.0
    %3430 = vmatprep.subr.mxu0 0.0
    %3431 = vmatpush1.msra.mxu0 0.0
    %3432 = vmatprep.subr.mxu0 0.0
    %3433 = vmatpush1.msra.mxu0 0.0
    %3434 = vmatprep.subr.mxu0 %v113
    %3435 = vmatpush1.msra.mxu0 %v112
    %3436 = vmatprep.subr.mxu0 %v111
    %3437 = vmatpush1.msra.mxu0 %v110
    %3438 = vmatprep.subr.mxu0 %v109
    %3439 = vmatpush1.msra.mxu0 %v108
    %3440 = vmatprep.subr.mxu0 %v107
    %3441 = vmatpush1.msra.mxu0 %v106
    %3442 = vmatprep.subr.mxu0 %v105
    %3443 = vmatpush1.msra.mxu0 %v104
    %3444 = vmatprep.subr.mxu0 %v103
    %3445 = vmatpush1.msra.mxu0 %v102
    %3446 = vmatprep.subr.mxu0 %v101
    %3447 = vmatpush1.msra.mxu0 %v100
    %3448 = vmatprep.subr.mxu0 %v99
    %3449 = vmatpush1.msra.mxu0 %v98
    %3450 = vmatprep.subr.mxu0 0.0
    %3451 = vmatpush2.msra.mxu0 0.0
    %3452 = vmatprep.subr.mxu0 0.0
    %3453 = vmatpush2.msra.mxu0 0.0
    %3454 = vmatprep.subr.mxu0 0.0
    %3455 = vmatpush2.msra.mxu0 0.0
    %3456 = vmatprep.subr.mxu0 0.0
    %3457 = vmatpush2.msra.mxu0 0.0
    %3458 = vmatprep.subr.mxu0 0.0
    %3459 = vmatpush2.msra.mxu0 0.0
    %3460 = vmatprep.subr.mxu0 0.0
    %3461 = vmatpush2.msra.mxu0 0.0
    %3462 = vmatprep.subr.mxu0 0.0
    %3463 = vmatpush2.msra.mxu0 0.0
    %3464 = vmatprep.subr.mxu0 0.0
    %3465 = vmatpush2.msra.mxu0 0.0
    %3466 = vmatprep.subr.mxu0 0.0
    %3467 = vmatpush2.msra.mxu0 0.0
    %3468 = vmatprep.subr.mxu0 0.0
    %3469 = vmatpush2.msra.mxu0 0.0
    %3470 = vmatprep.subr.mxu0 0.0
    %3471 = vmatpush2.msra.mxu0 0.0
    %3472 = vmatprep.subr.mxu0 0.0
    %3473 = vmatpush2.msra.mxu0 0.0
    %3474 = vmatprep.subr.mxu0 0.0
    %3475 = vmatpush2.msra.mxu0 0.0
    %3476 = vmatprep.subr.mxu0 0.0
    %3477 = vmatpush2.msra.mxu0 0.0
    %3478 = vmatprep.subr.mxu0 0.0
    %3479 = vmatpush2.msra.mxu0 0.0
    %3480 = vmatprep.subr.mxu0 0.0
    %3481 = vmatpush2.msra.mxu0 0.0
    %3482 = vmatprep.mubr.f32.mxu0 0.0
    %3483 = vmatmul.mubr.f32.gmra.mxu0 %v3416
    %v3484 = vpop.f32.mrf.mxu0
    %v3485 = vadd.f32 %v52, %v3484
    %v3486 = vpop.f32.mrf.mxu0
    %v3487 = vadd.f32 %v56, %v3486
    %3488 = vdwg.mxu0
    %3489 = vset.pattern.permute.xlu0 12
    %3490 = vperm.xlu0 %3489, %v97
    %v3491 = vpop.permute.xlu0 %3490
    %v3493 = vmul.f32 %v3491, %v64
    %v3494 = vmul.f32 %v3491, %v68
    %3495 = vmatprep.subr.mxu0 0.0
    %3496 = vmatpush1.msra.mxu0 0.0
    %3497 = vmatprep.subr.mxu0 0.0
    %3498 = vmatpush1.msra.mxu0 0.0
    %3499 = vmatprep.subr.mxu0 0.0
    %3500 = vmatpush1.msra.mxu0 0.0
    %3501 = vmatprep.subr.mxu0 0.0
    %3502 = vmatpush1.msra.mxu0 0.0
    %3503 = vmatprep.subr.mxu0 0.0
    %3504 = vmatpush1.msra.mxu0 0.0
    %3505 = vmatprep.subr.mxu0 0.0
    %3506 = vmatpush1.msra.mxu0 0.0
    %3507 = vmatprep.subr.mxu0 0.0
    %3508 = vmatpush1.msra.mxu0 0.0
    %3509 = vmatprep.subr.mxu0 0.0
    %3510 = vmatpush1.msra.mxu0 0.0
    %3511 = vmatprep.subr.mxu0 %v211
    %3512 = vmatpush1.msra.mxu0 %v210
    %3513 = vmatprep.subr.mxu0 %v209
    %3514 = vmatpush1.msra.mxu0 %v208
    %3515 = vmatprep.subr.mxu0 %v207
    %3516 = vmatpush1.msra.mxu0 %v206
    %3517 = vmatprep.subr.mxu0 %v205
    %3518 = vmatpush1.msra.mxu0 %v204
    %3519 = vmatprep.subr.mxu0 %v203
    %3520 = vmatpush1.msra.mxu0 %v202
    %3521 = vmatprep.subr.mxu0 %v201
    %3522 = vmatpush1.msra.mxu0 %v200
    %3523 = vmatprep.subr.mxu0 %v199
    %3524 = vmatpush1.msra.mxu0 %v198
    %3525 = vmatprep.subr.mxu0 %v197
    %3526 = vmatpush1.msra.mxu0 %v196
    %3527 = vmatprep.subr.mxu0 0.0
    %3528 = vmatpush2.msra.mxu0 0.0
    %3529 = vmatprep.subr.mxu0 0.0
    %3530 = vmatpush2.msra.mxu0 0.0
    %3531 = vmatprep.subr.mxu0 0.0
    %3532 = vmatpush2.msra.mxu0 0.0
    %3533 = vmatprep.subr.mxu0 0.0
    %3534 = vmatpush2.msra.mxu0 0.0
    %3535 = vmatprep.subr.mxu0 0.0
    %3536 = vmatpush2.msra.mxu0 0.0
    %3537 = vmatprep.subr.mxu0 0.0
    %3538 = vmatpush2.msra.mxu0 0.0
    %3539 = vmatprep.subr.mxu0 0.0
    %3540 = vmatpush2.msra.mxu0 0.0
    %3541 = vmatprep.subr.mxu0 0.0
    %3542 = vmatpush2.msra.mxu0 0.0
    %3543 = vmatprep.subr.mxu0 0.0
    %3544 = vmatpush2.msra.mxu0 0.0
    %3545 = vmatprep.subr.mxu0 0.0
    %3546 = vmatpush2.msra.mxu0 0.0
    %3547 = vmatprep.subr.mxu0 0.0
    %3548 = vmatpush2.msra.mxu0 0.0
    %3549 = vmatprep.subr.mxu0 0.0
    %3550 = vmatpush2.msra.mxu0 0.0
    %3551 = vmatprep.subr.mxu0 0.0
    %3552 = vmatpush2.msra.mxu0 0.0
    %3553 = vmatprep.subr.mxu0 0.0
    %3554 = vmatpush2.msra.mxu0 0.0
    %3555 = vmatprep.subr.mxu0 0.0
    %3556 = vmatpush2.msra.mxu0 0.0
    %3557 = vmatprep.subr.mxu0 0.0
    %3558 = vmatpush2.msra.mxu0 0.0
    %3559 = vmatprep.mubr.f32.mxu0 0.0
    %3560 = vmatmul.mubr.f32.gmra.mxu0 %v3316
    %v3561 = vpop.f32.mrf.mxu0
    %v3562 = vadd.f32 0.0, %v3561
    %v3563 = vpop.f32.mrf.mxu0
    %v3564 = vadd.f32 0.0, %v3563
    %3565 = vdwg.mxu0
    %v3566 = vadd.f32 %v3493, %v3562
    %v3567 = vadd.f32 %v3494, %v3564
    %v3568 = vadd.f32 %v3566, %v40
    %v3569 = vadd.f32 %v3567, %v44
    %v3570 = vtanh.pop %v3568
    %v3571 = vtanh.pop %v3569
    %v3572 = vmul.f32 %v93, %v3570
    %v3573 = vmul.f32 %v94, %v3571
    %v3574 = vadd.f32 %v3572, %v95
    %v3575 = vadd.f32 %v3573, %v96
    %v3576 = vmul.f32 %v3574, %v3310
    %v3577 = vmul.f32 %v3574, %v3575
    %3579 = vrot.lane.b32.xlu0 %v3577, 64
    %v3580 = vpop.permute.xlu0 %3579
    %v3582 = vadd.f32 %v3576, %v3580
    %v3583 = vtanh.pop %v3582
    %v3584 = vmul.f32 %v3575, %v3583
    %3586 = vrot.lane.b32.xlu0 %v3584, 64
    %v3587 = vpop.permute.xlu0 %3586
    %v3588 = vsel %vm114, %v3587, 0
    %3590 = vmatprep.subr.mxu0 0.0
    %3591 = vmatpush1.msra.mxu0 0.0
    %3592 = vmatprep.subr.mxu0 0.0
    %3593 = vmatpush1.msra.mxu0 0.0
    %3594 = vmatprep.subr.mxu0 0.0
    %3595 = vmatpush1.msra.mxu0 0.0
    %3596 = vmatprep.subr.mxu0 0.0
    %3597 = vmatpush1.msra.mxu0 0.0
    %3598 = vmatprep.subr.mxu0 0.0
    %3599 = vmatpush1.msra.mxu0 0.0
    %3600 = vmatprep.subr.mxu0 0.0
    %3601 = vmatpush1.msra.mxu0 0.0
    %3602 = vmatprep.subr.mxu0 0.0
    %3603 = vmatpush1.msra.mxu0 0.0
    %3604 = vmatprep.subr.mxu0 0.0
    %3605 = vmatpush1.msra.mxu0 0.0
    %3606 = vmatprep.subr.mxu0 %v317
    %3607 = vmatpush1.msra.mxu0 %v316
    %3608 = vmatprep.subr.mxu0 %v315
    %3609 = vmatpush1.msra.mxu0 %v314
    %3610 = vmatprep.subr.mxu0 %v313
    %3611 = vmatpush1.msra.mxu0 %v312
    %3612 = vmatprep.subr.mxu0 %v311
    %3613 = vmatpush1.msra.mxu0 %v310
    %3614 = vmatprep.subr.mxu0 %v309
    %3615 = vmatpush1.msra.mxu0 %v308
    %3616 = vmatprep.subr.mxu0 %v307
    %3617 = vmatpush1.msra.mxu0 %v306
    %3618 = vmatprep.subr.mxu0 %v305
    %3619 = vmatpush1.msra.mxu0 %v304
    %3620 = vmatprep.subr.mxu0 %v303
    %3621 = vmatpush1.msra.mxu0 %v302
    %3622 = vmatprep.subr.mxu0 0.0
    %3623 = vmatpush2.msra.mxu0 0.0
    %3624 = vmatprep.subr.mxu0 0.0
    %3625 = vmatpush2.msra.mxu0 0.0
    %3626 = vmatprep.subr.mxu0 0.0
    %3627 = vmatpush2.msra.mxu0 0.0
    %3628 = vmatprep.subr.mxu0 0.0
    %3629 = vmatpush2.msra.mxu0 0.0
    %3630 = vmatprep.subr.mxu0 0.0
    %3631 = vmatpush2.msra.mxu0 0.0
    %3632 = vmatprep.subr.mxu0 0.0
    %3633 = vmatpush2.msra.mxu0 0.0
    %3634 = vmatprep.subr.mxu0 0.0
    %3635 = vmatpush2.msra.mxu0 0.0
    %3636 = vmatprep.subr.mxu0 0.0
    %3637 = vmatpush2.msra.mxu0 0.0
    %3638 = vmatprep.subr.mxu0 0.0
    %3639 = vmatpush2.msra.mxu0 0.0
    %3640 = vmatprep.subr.mxu0 0.0
    %3641 = vmatpush2.msra.mxu0 0.0
    %3642 = vmatprep.subr.mxu0 0.0
    %3643 = vmatpush2.msra.mxu0 0.0
    %3644 = vmatprep.subr.mxu0 0.0
    %3645 = vmatpush2.msra.mxu0 0.0
    %3646 = vmatprep.subr.mxu0 0.0
    %3647 = vmatpush2.msra.mxu0 0.0
    %3648 = vmatprep.subr.mxu0 0.0
    %3649 = vmatpush2.msra.mxu0 0.0
    %3650 = vmatprep.subr.mxu0 0.0
    %3651 = vmatpush2.msra.mxu0 0.0
    %3652 = vmatprep.subr.mxu0 0.0
    %3653 = vmatpush2.msra.mxu0 0.0
    %3654 = vmatprep.mubr.f32.mxu0 0.0
    %3655 = vmatmul.mubr.f32.gmra.mxu0 %v3588
    %v3656 = vpop.f32.mrf.mxu0
    %v3657 = vadd.f32 %v3485, %v3656
    %v3658 = vpop.f32.mrf.mxu0
    %v3659 = vadd.f32 %v3487, %v3658
    %3660 = vdwg.mxu0
    %v3661 = vtanh.pop %v3657
    %v3662 = vtanh.pop %v3659
    %v3663 = vmul.f32 %v93, %v3661
    %v3664 = vmul.f32 %v94, %v3662
    %v3665 = vadd.f32 %v3663, %v95
    %v3666 = vadd.f32 %v3664, %v96
    %v3667 = vmul.f32 %v3665, %v3401
    %v3668 = vmul.f32 %v3665, %v3666
    %3670 = vrot.lane.b32.xlu0 %v3668, 64
    %v3671 = vpop.permute.xlu0 %3670
    %v3673 = vadd.f32 %v3667, %v3671
    %v3674 = vtanh.pop %v3673
    %v3675 = vmul.f32 %v3666, %v3674
    %v3676 = vmul.f32 %v3675, %v410
    %3678 = vrot.lane.b32.xlu0 %v3676, 64
    %v3679 = vpop.permute.xlu0 %3678
    %v3681 = vsel %vm114, %v3679, 0.0
    %3682 = vadd.xlane.f32.xlu0 %v3681
    %v3683 = vpop.xlane.xlu0 %3682
    %v3684 = vadd.f32 %v3683, %v82
    %3686 = vrot.lane.b32.xlu0 %v3675, 64
    %v3687 = vpop.permute.xlu0 %3686
    %v3688 = vsel %vm114, %v3687, 0
    %3690 = vmatprep.subr.mxu0 0.0
    %3691 = vmatpush1.msra.mxu0 0.0
    %3692 = vmatprep.subr.mxu0 0.0
    %3693 = vmatpush1.msra.mxu0 0.0
    %3694 = vmatprep.subr.mxu0 0.0
    %3695 = vmatpush1.msra.mxu0 0.0
    %3696 = vmatprep.subr.mxu0 0.0
    %3697 = vmatpush1.msra.mxu0 0.0
    %3698 = vmatprep.subr.mxu0 0.0
    %3699 = vmatpush1.msra.mxu0 0.0
    %3700 = vmatprep.subr.mxu0 0.0
    %3701 = vmatpush1.msra.mxu0 0.0
    %3702 = vmatprep.subr.mxu0 0.0
    %3703 = vmatpush1.msra.mxu0 0.0
    %3704 = vmatprep.subr.mxu0 0.0
    %3705 = vmatpush1.msra.mxu0 0.0
    %3706 = vmatprep.subr.mxu0 %v113
    %3707 = vmatpush1.msra.mxu0 %v112
    %3708 = vmatprep.subr.mxu0 %v111
    %3709 = vmatpush1.msra.mxu0 %v110
    %3710 = vmatprep.subr.mxu0 %v109
    %3711 = vmatpush1.msra.mxu0 %v108
    %3712 = vmatprep.subr.mxu0 %v107
    %3713 = vmatpush1.msra.mxu0 %v106
    %3714 = vmatprep.subr.mxu0 %v105
    %3715 = vmatpush1.msra.mxu0 %v104
    %3716 = vmatprep.subr.mxu0 %v103
    %3717 = vmatpush1.msra.mxu0 %v102
    %3718 = vmatprep.subr.mxu0 %v101
    %3719 = vmatpush1.msra.mxu0 %v100
    %3720 = vmatprep.subr.mxu0 %v99
    %3721 = vmatpush1.msra.mxu0 %v98
    %3722 = vmatprep.subr.mxu0 0.0
    %3723 = vmatpush2.msra.mxu0 0.0
    %3724 = vmatprep.subr.mxu0 0.0
    %3725 = vmatpush2.msra.mxu0 0.0
    %3726 = vmatprep.subr.mxu0 0.0
    %3727 = vmatpush2.msra.mxu0 0.0
    %3728 = vmatprep.subr.mxu0 0.0
    %3729 = vmatpush2.msra.mxu0 0.0
    %3730 = vmatprep.subr.mxu0 0.0
    %3731 = vmatpush2.msra.mxu0 0.0
    %3732 = vmatprep.subr.mxu0 0.0
    %3733 = vmatpush2.msra.mxu0 0.0
    %3734 = vmatprep.subr.mxu0 0.0
    %3735 = vmatpush2.msra.mxu0 0.0
    %3736 = vmatprep.subr.mxu0 0.0
    %3737 = vmatpush2.msra.mxu0 0.0
    %3738 = vmatprep.subr.mxu0 0.0
    %3739 = vmatpush2.msra.mxu0 0.0
    %3740 = vmatprep.subr.mxu0 0.0
    %3741 = vmatpush2.msra.mxu0 0.0
    %3742 = vmatprep.subr.mxu0 0.0
    %3743 = vmatpush2.msra.mxu0 0.0
    %3744 = vmatprep.subr.mxu0 0.0
    %3745 = vmatpush2.msra.mxu0 0.0
    %3746 = vmatprep.subr.mxu0 0.0
    %3747 = vmatpush2.msra.mxu0 0.0
    %3748 = vmatprep.subr.mxu0 0.0
    %3749 = vmatpush2.msra.mxu0 0.0
    %3750 = vmatprep.subr.mxu0 0.0
    %3751 = vmatpush2.msra.mxu0 0.0
    %3752 = vmatprep.subr.mxu0 0.0
    %3753 = vmatpush2.msra.mxu0 0.0
    %3754 = vmatprep.mubr.f32.mxu0 0.0
    %3755 = vmatmul.mubr.f32.gmra.mxu0 %v3688
    %v3756 = vpop.f32.mrf.mxu0
    %v3757 = vadd.f32 %v52, %v3756
    %v3758 = vpop.f32.mrf.mxu0
    %v3759 = vadd.f32 %v56, %v3758
    %3760 = vdwg.mxu0
    %3761 = vset.pattern.permute.xlu0 13
    %3762 = vperm.xlu0 %3761, %v97
    %v3763 = vpop.permute.xlu0 %3762
    %v3765 = vmul.f32 %v3763, %v64
    %v3766 = vmul.f32 %v3763, %v68
    %3767 = vmatprep.subr.mxu0 0.0
    %3768 = vmatpush1.msra.mxu0 0.0
    %3769 = vmatprep.subr.mxu0 0.0
    %3770 = vmatpush1.msra.mxu0 0.0
    %3771 = vmatprep.subr.mxu0 0.0
    %3772 = vmatpush1.msra.mxu0 0.0
    %3773 = vmatprep.subr.mxu0 0.0
    %3774 = vmatpush1.msra.mxu0 0.0
    %3775 = vmatprep.subr.mxu0 0.0
    %3776 = vmatpush1.msra.mxu0 0.0
    %3777 = vmatprep.subr.mxu0 0.0
    %3778 = vmatpush1.msra.mxu0 0.0
    %3779 = vmatprep.subr.mxu0 0.0
    %3780 = vmatpush1.msra.mxu0 0.0
    %3781 = vmatprep.subr.mxu0 0.0
    %3782 = vmatpush1.msra.mxu0 0.0
    %3783 = vmatprep.subr.mxu0 %v211
    %3784 = vmatpush1.msra.mxu0 %v210
    %3785 = vmatprep.subr.mxu0 %v209
    %3786 = vmatpush1.msra.mxu0 %v208
    %3787 = vmatprep.subr.mxu0 %v207
    %3788 = vmatpush1.msra.mxu0 %v206
    %3789 = vmatprep.subr.mxu0 %v205
    %3790 = vmatpush1.msra.mxu0 %v204
    %3791 = vmatprep.subr.mxu0 %v203
    %3792 = vmatpush1.msra.mxu0 %v202
    %3793 = vmatprep.subr.mxu0 %v201
    %3794 = vmatpush1.msra.mxu0 %v200
    %3795 = vmatprep.subr.mxu0 %v199
    %3796 = vmatpush1.msra.mxu0 %v198
    %3797 = vmatprep.subr.mxu0 %v197
    %3798 = vmatpush1.msra.mxu0 %v196
    %3799 = vmatprep.subr.mxu0 0.0
    %3800 = vmatpush2.msra.mxu0 0.0
    %3801 = vmatprep.subr.mxu0 0.0
    %3802 = vmatpush2.msra.mxu0 0.0
    %3803 = vmatprep.subr.mxu0 0.0
    %3804 = vmatpush2.msra.mxu0 0.0
    %3805 = vmatprep.subr.mxu0 0.0
    %3806 = vmatpush2.msra.mxu0 0.0
    %3807 = vmatprep.subr.mxu0 0.0
    %3808 = vmatpush2.msra.mxu0 0.0
    %3809 = vmatprep.subr.mxu0 0.0
    %3810 = vmatpush2.msra.mxu0 0.0
    %3811 = vmatprep.subr.mxu0 0.0
    %3812 = vmatpush2.msra.mxu0 0.0
    %3813 = vmatprep.subr.mxu0 0.0
    %3814 = vmatpush2.msra.mxu0 0.0
    %3815 = vmatprep.subr.mxu0 0.0
    %3816 = vmatpush2.msra.mxu0 0.0
    %3817 = vmatprep.subr.mxu0 0.0
    %3818 = vmatpush2.msra.mxu0 0.0
    %3819 = vmatprep.subr.mxu0 0.0
    %3820 = vmatpush2.msra.mxu0 0.0
    %3821 = vmatprep.subr.mxu0 0.0
    %3822 = vmatpush2.msra.mxu0 0.0
    %3823 = vmatprep.subr.mxu0 0.0
    %3824 = vmatpush2.msra.mxu0 0.0
    %3825 = vmatprep.subr.mxu0 0.0
    %3826 = vmatpush2.msra.mxu0 0.0
    %3827 = vmatprep.subr.mxu0 0.0
    %3828 = vmatpush2.msra.mxu0 0.0
    %3829 = vmatprep.subr.mxu0 0.0
    %3830 = vmatpush2.msra.mxu0 0.0
    %3831 = vmatprep.mubr.f32.mxu0 0.0
    %3832 = vmatmul.mubr.f32.gmra.mxu0 %v3588
    %v3833 = vpop.f32.mrf.mxu0
    %v3834 = vadd.f32 0.0, %v3833
    %v3835 = vpop.f32.mrf.mxu0
    %v3836 = vadd.f32 0.0, %v3835
    %3837 = vdwg.mxu0
    %v3838 = vadd.f32 %v3765, %v3834
    %v3839 = vadd.f32 %v3766, %v3836
    %v3840 = vadd.f32 %v3838, %v40
    %v3841 = vadd.f32 %v3839, %v44
    %v3842 = vtanh.pop %v3840
    %v3843 = vtanh.pop %v3841
    %v3844 = vmul.f32 %v93, %v3842
    %v3845 = vmul.f32 %v94, %v3843
    %v3846 = vadd.f32 %v3844, %v95
    %v3847 = vadd.f32 %v3845, %v96
    %v3848 = vmul.f32 %v3846, %v3582
    %v3849 = vmul.f32 %v3846, %v3847
    %3851 = vrot.lane.b32.xlu0 %v3849, 64
    %v3852 = vpop.permute.xlu0 %3851
    %v3854 = vadd.f32 %v3848, %v3852
    %v3855 = vtanh.pop %v3854
    %v3856 = vmul.f32 %v3847, %v3855
    %3858 = vrot.lane.b32.xlu0 %v3856, 64
    %v3859 = vpop.permute.xlu0 %3858
    %v3860 = vsel %vm114, %v3859, 0
    %3862 = vmatprep.subr.mxu0 0.0
    %3863 = vmatpush1.msra.mxu0 0.0
    %3864 = vmatprep.subr.mxu0 0.0
    %3865 = vmatpush1.msra.mxu0 0.0
    %3866 = vmatprep.subr.mxu0 0.0
    %3867 = vmatpush1.msra.mxu0 0.0
    %3868 = vmatprep.subr.mxu0 0.0
    %3869 = vmatpush1.msra.mxu0 0.0
    %3870 = vmatprep.subr.mxu0 0.0
    %3871 = vmatpush1.msra.mxu0 0.0
    %3872 = vmatprep.subr.mxu0 0.0
    %3873 = vmatpush1.msra.mxu0 0.0
    %3874 = vmatprep.subr.mxu0 0.0
    %3875 = vmatpush1.msra.mxu0 0.0
    %3876 = vmatprep.subr.mxu0 0.0
    %3877 = vmatpush1.msra.mxu0 0.0
    %3878 = vmatprep.subr.mxu0 %v317
    %3879 = vmatpush1.msra.mxu0 %v316
    %3880 = vmatprep.subr.mxu0 %v315
    %3881 = vmatpush1.msra.mxu0 %v314
    %3882 = vmatprep.subr.mxu0 %v313
    %3883 = vmatpush1.msra.mxu0 %v312
    %3884 = vmatprep.subr.mxu0 %v311
    %3885 = vmatpush1.msra.mxu0 %v310
    %3886 = vmatprep.subr.mxu0 %v309
    %3887 = vmatpush1.msra.mxu0 %v308
    %3888 = vmatprep.subr.mxu0 %v307
    %3889 = vmatpush1.msra.mxu0 %v306
    %3890 = vmatprep.subr.mxu0 %v305
    %3891 = vmatpush1.msra.mxu0 %v304
    %3892 = vmatprep.subr.mxu0 %v303
    %3893 = vmatpush1.msra.mxu0 %v302
    %3894 = vmatprep.subr.mxu0 0.0
    %3895 = vmatpush2.msra.mxu0 0.0
    %3896 = vmatprep.subr.mxu0 0.0
    %3897 = vmatpush2.msra.mxu0 0.0
    %3898 = vmatprep.subr.mxu0 0.0
    %3899 = vmatpush2.msra.mxu0 0.0
    %3900 = vmatprep.subr.mxu0 0.0
    %3901 = vmatpush2.msra.mxu0 0.0
    %3902 = vmatprep.subr.mxu0 0.0
    %3903 = vmatpush2.msra.mxu0 0.0
    %3904 = vmatprep.subr.mxu0 0.0
    %3905 = vmatpush2.msra.mxu0 0.0
    %3906 = vmatprep.subr.mxu0 0.0
    %3907 = vmatpush2.msra.mxu0 0.0
    %3908 = vmatprep.subr.mxu0 0.0
    %3909 = vmatpush2.msra.mxu0 0.0
    %3910 = vmatprep.subr.mxu0 0.0
    %3911 = vmatpush2.msra.mxu0 0.0
    %3912 = vmatprep.subr.mxu0 0.0
    %3913 = vmatpush2.msra.mxu0 0.0
    %3914 = vmatprep.subr.mxu0 0.0
    %3915 = vmatpush2.msra.mxu0 0.0
    %3916 = vmatprep.subr.mxu0 0.0
    %3917 = vmatpush2.msra.mxu0 0.0
    %3918 = vmatprep.subr.mxu0 0.0
    %3919 = vmatpush2.msra.mxu0 0.0
    %3920 = vmatprep.subr.mxu0 0.0
    %3921 = vmatpush2.msra.mxu0 0.0
    %3922 = vmatprep.subr.mxu0 0.0
    %3923 = vmatpush2.msra.mxu0 0.0
    %3924 = vmatprep.subr.mxu0 0.0
    %3925 = vmatpush2.msra.mxu0 0.0
    %3926 = vmatprep.mubr.f32.mxu0 0.0
    %3927 = vmatmul.mubr.f32.gmra.mxu0 %v3860
    %v3928 = vpop.f32.mrf.mxu0
    %v3929 = vadd.f32 %v3757, %v3928
    %v3930 = vpop.f32.mrf.mxu0
    %v3931 = vadd.f32 %v3759, %v3930
    %3932 = vdwg.mxu0
    %v3933 = vtanh.pop %v3929
    %v3934 = vtanh.pop %v3931
    %v3935 = vmul.f32 %v93, %v3933
    %v3936 = vmul.f32 %v94, %v3934
    %v3937 = vadd.f32 %v3935, %v95
    %v3938 = vadd.f32 %v3936, %v96
    %v3939 = vmul.f32 %v3937, %v3673
    %v3940 = vmul.f32 %v3937, %v3938
    %3942 = vrot.lane.b32.xlu0 %v3940, 64
    %v3943 = vpop.permute.xlu0 %3942
    %v3945 = vadd.f32 %v3939, %v3943
    %v3946 = vtanh.pop %v3945
    %v3947 = vmul.f32 %v3938, %v3946
    %v3948 = vmul.f32 %v3947, %v410
    %3950 = vrot.lane.b32.xlu0 %v3948, 64
    %v3951 = vpop.permute.xlu0 %3950
    %v3953 = vsel %vm114, %v3951, 0.0
    %3954 = vadd.xlane.f32.xlu0 %v3953
    %v3955 = vpop.xlane.xlu0 %3954
    %v3956 = vadd.f32 %v3955, %v82
    %3958 = vrot.lane.b32.xlu0 %v3947, 64
    %v3959 = vpop.permute.xlu0 %3958
    %v3960 = vsel %vm114, %v3959, 0
    %3962 = vmatprep.subr.mxu0 0.0
    %3963 = vmatpush1.msra.mxu0 0.0
    %3964 = vmatprep.subr.mxu0 0.0
    %3965 = vmatpush1.msra.mxu0 0.0
    %3966 = vmatprep.subr.mxu0 0.0
    %3967 = vmatpush1.msra.mxu0 0.0
    %3968 = vmatprep.subr.mxu0 0.0
    %3969 = vmatpush1.msra.mxu0 0.0
    %3970 = vmatprep.subr.mxu0 0.0
    %3971 = vmatpush1.msra.mxu0 0.0
    %3972 = vmatprep.subr.mxu0 0.0
    %3973 = vmatpush1.msra.mxu0 0.0
    %3974 = vmatprep.subr.mxu0 0.0
    %3975 = vmatpush1.msra.mxu0 0.0
    %3976 = vmatprep.subr.mxu0 0.0
    %3977 = vmatpush1.msra.mxu0 0.0
    %3978 = vmatprep.subr.mxu0 %v113
    %3979 = vmatpush1.msra.mxu0 %v112
    %3980 = vmatprep.subr.mxu0 %v111
    %3981 = vmatpush1.msra.mxu0 %v110
    %3982 = vmatprep.subr.mxu0 %v109
    %3983 = vmatpush1.msra.mxu0 %v108
    %3984 = vmatprep.subr.mxu0 %v107
    %3985 = vmatpush1.msra.mxu0 %v106
    %3986 = vmatprep.subr.mxu0 %v105
    %3987 = vmatpush1.msra.mxu0 %v104
    %3988 = vmatprep.subr.mxu0 %v103
    %3989 = vmatpush1.msra.mxu0 %v102
    %3990 = vmatprep.subr.mxu0 %v101
    %3991 = vmatpush1.msra.mxu0 %v100
    %3992 = vmatprep.subr.mxu0 %v99
    %3993 = vmatpush1.msra.mxu0 %v98
    %3994 = vmatprep.subr.mxu0 0.0
    %3995 = vmatpush2.msra.mxu0 0.0
    %3996 = vmatprep.subr.mxu0 0.0
    %3997 = vmatpush2.msra.mxu0 0.0
    %3998 = vmatprep.subr.mxu0 0.0
    %3999 = vmatpush2.msra.mxu0 0.0
    %4000 = vmatprep.subr.mxu0 0.0
    %4001 = vmatpush2.msra.mxu0 0.0
    %4002 = vmatprep.subr.mxu0 0.0
    %4003 = vmatpush2.msra.mxu0 0.0
    %4004 = vmatprep.subr.mxu0 0.0
    %4005 = vmatpush2.msra.mxu0 0.0
    %4006 = vmatprep.subr.mxu0 0.0
    %4007 = vmatpush2.msra.mxu0 0.0
    %4008 = vmatprep.subr.mxu0 0.0
    %4009 = vmatpush2.msra.mxu0 0.0
    %4010 = vmatprep.subr.mxu0 0.0
    %4011 = vmatpush2.msra.mxu0 0.0
    %4012 = vmatprep.subr.mxu0 0.0
    %4013 = vmatpush2.msra.mxu0 0.0
    %4014 = vmatprep.subr.mxu0 0.0
    %4015 = vmatpush2.msra.mxu0 0.0
    %4016 = vmatprep.subr.mxu0 0.0
    %4017 = vmatpush2.msra.mxu0 0.0
    %4018 = vmatprep.subr.mxu0 0.0
    %4019 = vmatpush2.msra.mxu0 0.0
    %4020 = vmatprep.subr.mxu0 0.0
    %4021 = vmatpush2.msra.mxu0 0.0
    %4022 = vmatprep.subr.mxu0 0.0
    %4023 = vmatpush2.msra.mxu0 0.0
    %4024 = vmatprep.subr.mxu0 0.0
    %4025 = vmatpush2.msra.mxu0 0.0
    %4026 = vmatprep.mubr.f32.mxu0 0.0
    %4027 = vmatmul.mubr.f32.gmra.mxu0 %v3960
    %v4028 = vpop.f32.mrf.mxu0
    %v4029 = vadd.f32 %v52, %v4028
    %v4030 = vpop.f32.mrf.mxu0
    %v4031 = vadd.f32 %v56, %v4030
    %4032 = vdwg.mxu0
    %4033 = vset.pattern.permute.xlu0 14
    %4034 = vperm.xlu0 %4033, %v97
    %v4035 = vpop.permute.xlu0 %4034
    %v4037 = vmul.f32 %v4035, %v64
    %v4038 = vmul.f32 %v4035, %v68
    %4039 = vmatprep.subr.mxu0 0.0
    %4040 = vmatpush1.msra.mxu0 0.0
    %4041 = vmatprep.subr.mxu0 0.0
    %4042 = vmatpush1.msra.mxu0 0.0
    %4043 = vmatprep.subr.mxu0 0.0
    %4044 = vmatpush1.msra.mxu0 0.0
    %4045 = vmatprep.subr.mxu0 0.0
    %4046 = vmatpush1.msra.mxu0 0.0
    %4047 = vmatprep.subr.mxu0 0.0
    %4048 = vmatpush1.msra.mxu0 0.0
    %4049 = vmatprep.subr.mxu0 0.0
    %4050 = vmatpush1.msra.mxu0 0.0
    %4051 = vmatprep.subr.mxu0 0.0
    %4052 = vmatpush1.msra.mxu0 0.0
    %4053 = vmatprep.subr.mxu0 0.0
    %4054 = vmatpush1.msra.mxu0 0.0
    %4055 = vmatprep.subr.mxu0 %v211
    %4056 = vmatpush1.msra.mxu0 %v210
    %4057 = vmatprep.subr.mxu0 %v209
    %4058 = vmatpush1.msra.mxu0 %v208
    %4059 = vmatprep.subr.mxu0 %v207
    %4060 = vmatpush1.msra.mxu0 %v206
    %4061 = vmatprep.subr.mxu0 %v205
    %4062 = vmatpush1.msra.mxu0 %v204
    %4063 = vmatprep.subr.mxu0 %v203
    %4064 = vmatpush1.msra.mxu0 %v202
    %4065 = vmatprep.subr.mxu0 %v201
    %4066 = vmatpush1.msra.mxu0 %v200
    %4067 = vmatprep.subr.mxu0 %v199
    %4068 = vmatpush1.msra.mxu0 %v198
    %4069 = vmatprep.subr.mxu0 %v197
    %4070 = vmatpush1.msra.mxu0 %v196
    %4071 = vmatprep.subr.mxu0 0.0
    %4072 = vmatpush2.msra.mxu0 0.0
    %4073 = vmatprep.subr.mxu0 0.0
    %4074 = vmatpush2.msra.mxu0 0.0
    %4075 = vmatprep.subr.mxu0 0.0
    %4076 = vmatpush2.msra.mxu0 0.0
    %4077 = vmatprep.subr.mxu0 0.0
    %4078 = vmatpush2.msra.mxu0 0.0
    %4079 = vmatprep.subr.mxu0 0.0
    %4080 = vmatpush2.msra.mxu0 0.0
    %4081 = vmatprep.subr.mxu0 0.0
    %4082 = vmatpush2.msra.mxu0 0.0
    %4083 = vmatprep.subr.mxu0 0.0
    %4084 = vmatpush2.msra.mxu0 0.0
    %4085 = vmatprep.subr.mxu0 0.0
    %4086 = vmatpush2.msra.mxu0 0.0
    %4087 = vmatprep.subr.mxu0 0.0
    %4088 = vmatpush2.msra.mxu0 0.0
    %4089 = vmatprep.subr.mxu0 0.0
    %4090 = vmatpush2.msra.mxu0 0.0
    %4091 = vmatprep.subr.mxu0 0.0
    %4092 = vmatpush2.msra.mxu0 0.0
    %4093 = vmatprep.subr.mxu0 0.0
    %4094 = vmatpush2.msra.mxu0 0.0
    %4095 = vmatprep.subr.mxu0 0.0
    %4096 = vmatpush2.msra.mxu0 0.0
    %4097 = vmatprep.subr.mxu0 0.0
    %4098 = vmatpush2.msra.mxu0 0.0
    %4099 = vmatprep.subr.mxu0 0.0
    %4100 = vmatpush2.msra.mxu0 0.0
    %4101 = vmatprep.subr.mxu0 0.0
    %4102 = vmatpush2.msra.mxu0 0.0
    %4103 = vmatprep.mubr.f32.mxu0 0.0
    %4104 = vmatmul.mubr.f32.gmra.mxu0 %v3860
    %v4105 = vpop.f32.mrf.mxu0
    %v4106 = vadd.f32 0.0, %v4105
    %v4107 = vpop.f32.mrf.mxu0
    %v4108 = vadd.f32 0.0, %v4107
    %4109 = vdwg.mxu0
    %v4110 = vadd.f32 %v4037, %v4106
    %v4111 = vadd.f32 %v4038, %v4108
    %v4112 = vadd.f32 %v4110, %v40
    %v4113 = vadd.f32 %v4111, %v44
    %v4114 = vtanh.pop %v4112
    %v4115 = vtanh.pop %v4113
    %v4116 = vmul.f32 %v93, %v4114
    %v4117 = vmul.f32 %v94, %v4115
    %v4118 = vadd.f32 %v4116, %v95
    %v4119 = vadd.f32 %v4117, %v96
    %v4120 = vmul.f32 %v4118, %v3854
    %v4121 = vmul.f32 %v4118, %v4119
    %4123 = vrot.lane.b32.xlu0 %v4121, 64
    %v4124 = vpop.permute.xlu0 %4123
    %v4126 = vadd.f32 %v4120, %v4124
    %v4127 = vtanh.pop %v4126
    %v4128 = vmul.f32 %v4119, %v4127
    %4130 = vrot.lane.b32.xlu0 %v4128, 64
    %v4131 = vpop.permute.xlu0 %4130
    %v4132 = vsel %vm114, %v4131, 0
    %4134 = vmatprep.subr.mxu0 0.0
    %4135 = vmatpush1.msra.mxu0 0.0
    %4136 = vmatprep.subr.mxu0 0.0
    %4137 = vmatpush1.msra.mxu0 0.0
    %4138 = vmatprep.subr.mxu0 0.0
    %4139 = vmatpush1.msra.mxu0 0.0
    %4140 = vmatprep.subr.mxu0 0.0
    %4141 = vmatpush1.msra.mxu0 0.0
    %4142 = vmatprep.subr.mxu0 0.0
    %4143 = vmatpush1.msra.mxu0 0.0
    %4144 = vmatprep.subr.mxu0 0.0
    %4145 = vmatpush1.msra.mxu0 0.0
    %4146 = vmatprep.subr.mxu0 0.0
    %4147 = vmatpush1.msra.mxu0 0.0
    %4148 = vmatprep.subr.mxu0 0.0
    %4149 = vmatpush1.msra.mxu0 0.0
    %4150 = vmatprep.subr.mxu0 %v317
    %4151 = vmatpush1.msra.mxu0 %v316
    %4152 = vmatprep.subr.mxu0 %v315
    %4153 = vmatpush1.msra.mxu0 %v314
    %4154 = vmatprep.subr.mxu0 %v313
    %4155 = vmatpush1.msra.mxu0 %v312
    %4156 = vmatprep.subr.mxu0 %v311
    %4157 = vmatpush1.msra.mxu0 %v310
    %4158 = vmatprep.subr.mxu0 %v309
    %4159 = vmatpush1.msra.mxu0 %v308
    %4160 = vmatprep.subr.mxu0 %v307
    %4161 = vmatpush1.msra.mxu0 %v306
    %4162 = vmatprep.subr.mxu0 %v305
    %4163 = vmatpush1.msra.mxu0 %v304
    %4164 = vmatprep.subr.mxu0 %v303
    %4165 = vmatpush1.msra.mxu0 %v302
    %4166 = vmatprep.subr.mxu0 0.0
    %4167 = vmatpush2.msra.mxu0 0.0
    %4168 = vmatprep.subr.mxu0 0.0
    %4169 = vmatpush2.msra.mxu0 0.0
    %4170 = vmatprep.subr.mxu0 0.0
    %4171 = vmatpush2.msra.mxu0 0.0
    %4172 = vmatprep.subr.mxu0 0.0
    %4173 = vmatpush2.msra.mxu0 0.0
    %4174 = vmatprep.subr.mxu0 0.0
    %4175 = vmatpush2.msra.mxu0 0.0
    %4176 = vmatprep.subr.mxu0 0.0
    %4177 = vmatpush2.msra.mxu0 0.0
    %4178 = vmatprep.subr.mxu0 0.0
    %4179 = vmatpush2.msra.mxu0 0.0
    %4180 = vmatprep.subr.mxu0 0.0
    %4181 = vmatpush2.msra.mxu0 0.0
    %4182 = vmatprep.subr.mxu0 0.0
    %4183 = vmatpush2.msra.mxu0 0.0
    %4184 = vmatprep.subr.mxu0 0.0
    %4185 = vmatpush2.msra.mxu0 0.0
    %4186 = vmatprep.subr.mxu0 0.0
    %4187 = vmatpush2.msra.mxu0 0.0
    %4188 = vmatprep.subr.mxu0 0.0
    %4189 = vmatpush2.msra.mxu0 0.0
    %4190 = vmatprep.subr.mxu0 0.0
    %4191 = vmatpush2.msra.mxu0 0.0
    %4192 = vmatprep.subr.mxu0 0.0
    %4193 = vmatpush2.msra.mxu0 0.0
    %4194 = vmatprep.subr.mxu0 0.0
    %4195 = vmatpush2.msra.mxu0 0.0
    %4196 = vmatprep.subr.mxu0 0.0
    %4197 = vmatpush2.msra.mxu0 0.0
    %4198 = vmatprep.mubr.f32.mxu0 0.0
    %4199 = vmatmul.mubr.f32.gmra.mxu0 %v4132
    %v4200 = vpop.f32.mrf.mxu0
    %v4201 = vadd.f32 %v4029, %v4200
    %v4202 = vpop.f32.mrf.mxu0
    %v4203 = vadd.f32 %v4031, %v4202
    %4204 = vdwg.mxu0
    %v4205 = vtanh.pop %v4201
    %v4206 = vtanh.pop %v4203
    %v4207 = vmul.f32 %v93, %v4205
    %v4208 = vmul.f32 %v94, %v4206
    %v4209 = vadd.f32 %v4207, %v95
    %v4210 = vadd.f32 %v4208, %v96
    %v4211 = vmul.f32 %v4209, %v3945
    %v4212 = vmul.f32 %v4209, %v4210
    %4214 = vrot.lane.b32.xlu0 %v4212, 64
    %v4215 = vpop.permute.xlu0 %4214
    %v4217 = vadd.f32 %v4211, %v4215
    %v4218 = vtanh.pop %v4217
    %v4219 = vmul.f32 %v4210, %v4218
    %v4220 = vmul.f32 %v4219, %v410
    %4222 = vrot.lane.b32.xlu0 %v4220, 64
    %v4223 = vpop.permute.xlu0 %4222
    %v4225 = vsel %vm114, %v4223, 0.0
    %4226 = vadd.xlane.f32.xlu0 %v4225
    %v4227 = vpop.xlane.xlu0 %4226
    %v4228 = vadd.f32 %v4227, %v82
    %4230 = vrot.lane.b32.xlu0 %v4219, 64
    %v4231 = vpop.permute.xlu0 %4230
    %v4232 = vsel %vm114, %v4231, 0
    %4234 = vmatprep.subr.mxu0 0.0
    %4235 = vmatpush1.msra.mxu0 0.0
    %4236 = vmatprep.subr.mxu0 0.0
    %4237 = vmatpush1.msra.mxu0 0.0
    %4238 = vmatprep.subr.mxu0 0.0
    %4239 = vmatpush1.msra.mxu0 0.0
    %4240 = vmatprep.subr.mxu0 0.0
    %4241 = vmatpush1.msra.mxu0 0.0
    %4242 = vmatprep.subr.mxu0 0.0
    %4243 = vmatpush1.msra.mxu0 0.0
    %4244 = vmatprep.subr.mxu0 0.0
    %4245 = vmatpush1.msra.mxu0 0.0
    %4246 = vmatprep.subr.mxu0 0.0
    %4247 = vmatpush1.msra.mxu0 0.0
    %4248 = vmatprep.subr.mxu0 0.0
    %4249 = vmatpush1.msra.mxu0 0.0
    %4250 = vmatprep.subr.mxu0 %v113
    %4251 = vmatpush1.msra.mxu0 %v112
    %4252 = vmatprep.subr.mxu0 %v111
    %4253 = vmatpush1.msra.mxu0 %v110
    %4254 = vmatprep.subr.mxu0 %v109
    %4255 = vmatpush1.msra.mxu0 %v108
    %4256 = vmatprep.subr.mxu0 %v107
    %4257 = vmatpush1.msra.mxu0 %v106
    %4258 = vmatprep.subr.mxu0 %v105
    %4259 = vmatpush1.msra.mxu0 %v104
    %4260 = vmatprep.subr.mxu0 %v103
    %4261 = vmatpush1.msra.mxu0 %v102
    %4262 = vmatprep.subr.mxu0 %v101
    %4263 = vmatpush1.msra.mxu0 %v100
    %4264 = vmatprep.subr.mxu0 %v99
    %4265 = vmatpush1.msra.mxu0 %v98
    %4266 = vmatprep.subr.mxu0 0.0
    %4267 = vmatpush2.msra.mxu0 0.0
    %4268 = vmatprep.subr.mxu0 0.0
    %4269 = vmatpush2.msra.mxu0 0.0
    %4270 = vmatprep.subr.mxu0 0.0
    %4271 = vmatpush2.msra.mxu0 0.0
    %4272 = vmatprep.subr.mxu0 0.0
    %4273 = vmatpush2.msra.mxu0 0.0
    %4274 = vmatprep.subr.mxu0 0.0
    %4275 = vmatpush2.msra.mxu0 0.0
    %4276 = vmatprep.subr.mxu0 0.0
    %4277 = vmatpush2.msra.mxu0 0.0
    %4278 = vmatprep.subr.mxu0 0.0
    %4279 = vmatpush2.msra.mxu0 0.0
    %4280 = vmatprep.subr.mxu0 0.0
    %4281 = vmatpush2.msra.mxu0 0.0
    %4282 = vmatprep.subr.mxu0 0.0
    %4283 = vmatpush2.msra.mxu0 0.0
    %4284 = vmatprep.subr.mxu0 0.0
    %4285 = vmatpush2.msra.mxu0 0.0
    %4286 = vmatprep.subr.mxu0 0.0
    %4287 = vmatpush2.msra.mxu0 0.0
    %4288 = vmatprep.subr.mxu0 0.0
    %4289 = vmatpush2.msra.mxu0 0.0
    %4290 = vmatprep.subr.mxu0 0.0
    %4291 = vmatpush2.msra.mxu0 0.0
    %4292 = vmatprep.subr.mxu0 0.0
    %4293 = vmatpush2.msra.mxu0 0.0
    %4294 = vmatprep.subr.mxu0 0.0
    %4295 = vmatpush2.msra.mxu0 0.0
    %4296 = vmatprep.subr.mxu0 0.0
    %4297 = vmatpush2.msra.mxu0 0.0
    %4298 = vmatprep.mubr.f32.mxu0 0.0
    %4299 = vmatmul.mubr.f32.gmra.mxu0 %v4232
    %v4300 = vpop.f32.mrf.mxu0
    %v4301 = vadd.f32 %v52, %v4300
    %v4302 = vpop.f32.mrf.mxu0
    %v4303 = vadd.f32 %v56, %v4302
    %4304 = vdwg.mxu0
    %4305 = vset.pattern.permute.xlu0 15
    %4306 = vperm.xlu0 %4305, %v97
    %v4307 = vpop.permute.xlu0 %4306
    %v4309 = vmul.f32 %v4307, %v64
    %v4310 = vmul.f32 %v4307, %v68
    %4311 = vmatprep.subr.mxu0 0.0
    %4312 = vmatpush1.msra.mxu0 0.0
    %4313 = vmatprep.subr.mxu0 0.0
    %4314 = vmatpush1.msra.mxu0 0.0
    %4315 = vmatprep.subr.mxu0 0.0
    %4316 = vmatpush1.msra.mxu0 0.0
    %4317 = vmatprep.subr.mxu0 0.0
    %4318 = vmatpush1.msra.mxu0 0.0
    %4319 = vmatprep.subr.mxu0 0.0
    %4320 = vmatpush1.msra.mxu0 0.0
    %4321 = vmatprep.subr.mxu0 0.0
    %4322 = vmatpush1.msra.mxu0 0.0
    %4323 = vmatprep.subr.mxu0 0.0
    %4324 = vmatpush1.msra.mxu0 0.0
    %4325 = vmatprep.subr.mxu0 0.0
    %4326 = vmatpush1.msra.mxu0 0.0
    %4327 = vmatprep.subr.mxu0 %v211
    %4328 = vmatpush1.msra.mxu0 %v210
    %4329 = vmatprep.subr.mxu0 %v209
    %4330 = vmatpush1.msra.mxu0 %v208
    %4331 = vmatprep.subr.mxu0 %v207
    %4332 = vmatpush1.msra.mxu0 %v206
    %4333 = vmatprep.subr.mxu0 %v205
    %4334 = vmatpush1.msra.mxu0 %v204
    %4335 = vmatprep.subr.mxu0 %v203
    %4336 = vmatpush1.msra.mxu0 %v202
    %4337 = vmatprep.subr.mxu0 %v201
    %4338 = vmatpush1.msra.mxu0 %v200
    %4339 = vmatprep.subr.mxu0 %v199
    %4340 = vmatpush1.msra.mxu0 %v198
    %4341 = vmatprep.subr.mxu0 %v197
    %4342 = vmatpush1.msra.mxu0 %v196
    %4343 = vmatprep.subr.mxu0 0.0
    %4344 = vmatpush2.msra.mxu0 0.0
    %4345 = vmatprep.subr.mxu0 0.0
    %4346 = vmatpush2.msra.mxu0 0.0
    %4347 = vmatprep.subr.mxu0 0.0
    %4348 = vmatpush2.msra.mxu0 0.0
    %4349 = vmatprep.subr.mxu0 0.0
    %4350 = vmatpush2.msra.mxu0 0.0
    %4351 = vmatprep.subr.mxu0 0.0
    %4352 = vmatpush2.msra.mxu0 0.0
    %4353 = vmatprep.subr.mxu0 0.0
    %4354 = vmatpush2.msra.mxu0 0.0
    %4355 = vmatprep.subr.mxu0 0.0
    %4356 = vmatpush2.msra.mxu0 0.0
    %4357 = vmatprep.subr.mxu0 0.0
    %4358 = vmatpush2.msra.mxu0 0.0
    %4359 = vmatprep.subr.mxu0 0.0
    %4360 = vmatpush2.msra.mxu0 0.0
    %4361 = vmatprep.subr.mxu0 0.0
    %4362 = vmatpush2.msra.mxu0 0.0
    %4363 = vmatprep.subr.mxu0 0.0
    %4364 = vmatpush2.msra.mxu0 0.0
    %4365 = vmatprep.subr.mxu0 0.0
    %4366 = vmatpush2.msra.mxu0 0.0
    %4367 = vmatprep.subr.mxu0 0.0
    %4368 = vmatpush2.msra.mxu0 0.0
    %4369 = vmatprep.subr.mxu0 0.0
    %4370 = vmatpush2.msra.mxu0 0.0
    %4371 = vmatprep.subr.mxu0 0.0
    %4372 = vmatpush2.msra.mxu0 0.0
    %4373 = vmatprep.subr.mxu0 0.0
    %4374 = vmatpush2.msra.mxu0 0.0
    %4375 = vmatprep.mubr.f32.mxu0 0.0
    %4376 = vmatmul.mubr.f32.gmra.mxu0 %v4132
    %v4377 = vpop.f32.mrf.mxu0
    %v4378 = vadd.f32 0.0, %v4377
    %v4379 = vpop.f32.mrf.mxu0
    %v4380 = vadd.f32 0.0, %v4379
    %4381 = vdwg.mxu0
    %v4382 = vadd.f32 %v4309, %v4378
    %v4383 = vadd.f32 %v4310, %v4380
    %v4384 = vadd.f32 %v4382, %v40
    %v4385 = vadd.f32 %v4383, %v44
    %v4386 = vtanh.pop %v4384
    %v4387 = vtanh.pop %v4385
    %v4388 = vmul.f32 %v93, %v4386
    %v4389 = vmul.f32 %v94, %v4387
    %v4390 = vadd.f32 %v4388, %v95
    %v4391 = vadd.f32 %v4389, %v96
    %v4392 = vmul.f32 %v4390, %v4126
    %v4393 = vmul.f32 %v4390, %v4391
    %4395 = vrot.lane.b32.xlu0 %v4393, 64
    %v4396 = vpop.permute.xlu0 %4395
    %v4398 = vadd.f32 %v4392, %v4396
    %v4399 = vtanh.pop %v4398
    %v4400 = vmul.f32 %v4391, %v4399
    %4402 = vrot.lane.b32.xlu0 %v4400, 64
    %v4403 = vpop.permute.xlu0 %4402
    %v4404 = vsel %vm114, %v4403, 0
    %4406 = vmatprep.subr.mxu0 0.0
    %4407 = vmatpush1.msra.mxu0 0.0
    %4408 = vmatprep.subr.mxu0 0.0
    %4409 = vmatpush1.msra.mxu0 0.0
    %4410 = vmatprep.subr.mxu0 0.0
    %4411 = vmatpush1.msra.mxu0 0.0
    %4412 = vmatprep.subr.mxu0 0.0
    %4413 = vmatpush1.msra.mxu0 0.0
    %4414 = vmatprep.subr.mxu0 0.0
    %4415 = vmatpush1.msra.mxu0 0.0
    %4416 = vmatprep.subr.mxu0 0.0
    %4417 = vmatpush1.msra.mxu0 0.0
    %4418 = vmatprep.subr.mxu0 0.0
    %4419 = vmatpush1.msra.mxu0 0.0
    %4420 = vmatprep.subr.mxu0 0.0
    %4421 = vmatpush1.msra.mxu0 0.0
    %4422 = vmatprep.subr.mxu0 %v317
    %4423 = vmatpush1.msra.mxu0 %v316
    %4424 = vmatprep.subr.mxu0 %v315
    %4425 = vmatpush1.msra.mxu0 %v314
    %4426 = vmatprep.subr.mxu0 %v313
    %4427 = vmatpush1.msra.mxu0 %v312
    %4428 = vmatprep.subr.mxu0 %v311
    %4429 = vmatpush1.msra.mxu0 %v310
    %4430 = vmatprep.subr.mxu0 %v309
    %4431 = vmatpush1.msra.mxu0 %v308
    %4432 = vmatprep.subr.mxu0 %v307
    %4433 = vmatpush1.msra.mxu0 %v306
    %4434 = vmatprep.subr.mxu0 %v305
    %4435 = vmatpush1.msra.mxu0 %v304
    %4436 = vmatprep.subr.mxu0 %v303
    %4437 = vmatpush1.msra.mxu0 %v302
    %4438 = vmatprep.subr.mxu0 0.0
    %4439 = vmatpush2.msra.mxu0 0.0
    %4440 = vmatprep.subr.mxu0 0.0
    %4441 = vmatpush2.msra.mxu0 0.0
    %4442 = vmatprep.subr.mxu0 0.0
    %4443 = vmatpush2.msra.mxu0 0.0
    %4444 = vmatprep.subr.mxu0 0.0
    %4445 = vmatpush2.msra.mxu0 0.0
    %4446 = vmatprep.subr.mxu0 0.0
    %4447 = vmatpush2.msra.mxu0 0.0
    %4448 = vmatprep.subr.mxu0 0.0
    %4449 = vmatpush2.msra.mxu0 0.0
    %4450 = vmatprep.subr.mxu0 0.0
    %4451 = vmatpush2.msra.mxu0 0.0
    %4452 = vmatprep.subr.mxu0 0.0
    %4453 = vmatpush2.msra.mxu0 0.0
    %4454 = vmatprep.subr.mxu0 0.0
    %4455 = vmatpush2.msra.mxu0 0.0
    %4456 = vmatprep.subr.mxu0 0.0
    %4457 = vmatpush2.msra.mxu0 0.0
    %4458 = vmatprep.subr.mxu0 0.0
    %4459 = vmatpush2.msra.mxu0 0.0
    %4460 = vmatprep.subr.mxu0 0.0
    %4461 = vmatpush2.msra.mxu0 0.0
    %4462 = vmatprep.subr.mxu0 0.0
    %4463 = vmatpush2.msra.mxu0 0.0
    %4464 = vmatprep.subr.mxu0 0.0
    %4465 = vmatpush2.msra.mxu0 0.0
    %4466 = vmatprep.subr.mxu0 0.0
    %4467 = vmatpush2.msra.mxu0 0.0
    %4468 = vmatprep.subr.mxu0 0.0
    %4469 = vmatpush2.msra.mxu0 0.0
    %4470 = vmatprep.mubr.f32.mxu0 0.0
    %4471 = vmatmul.mubr.f32.gmra.mxu0 %v4404
    %v4472 = vpop.f32.mrf.mxu0
    %v4473 = vadd.f32 %v4301, %v4472
    %v4474 = vpop.f32.mrf.mxu0
    %v4475 = vadd.f32 %v4303, %v4474
    %4476 = vdwg.mxu0
    %v4477 = vtanh.pop %v4473
    %v4478 = vtanh.pop %v4475
    %v4479 = vmul.f32 %v93, %v4477
    %v4480 = vmul.f32 %v94, %v4478
    %v4481 = vadd.f32 %v4479, %v95
    %v4482 = vadd.f32 %v4480, %v96
    %v4483 = vmul.f32 %v4481, %v4217
    %v4484 = vmul.f32 %v4481, %v4482
    %4486 = vrot.lane.b32.xlu0 %v4484, 64
    %v4487 = vpop.permute.xlu0 %4486
    %v4489 = vadd.f32 %v4483, %v4487
    %v4490 = vtanh.pop %v4489
    %v4491 = vmul.f32 %v4482, %v4490
    %v4492 = vmul.f32 %v4491, %v410
    %4494 = vrot.lane.b32.xlu0 %v4492, 64
    %v4495 = vpop.permute.xlu0 %4494
    %v4497 = vsel %vm114, %v4495, 0.0
    %4498 = vadd.xlane.f32.xlu0 %v4497
    %v4499 = vpop.xlane.xlu0 %4498
    %v4500 = vadd.f32 %v4499, %v82
    %4502 = vrot.lane.b32.xlu0 %v692, 1
    %v4503 = vpop.permute.xlu0 %4502
    %4506 = vrot.lane.b32.xlu0 %v964, 2
    %v4507 = vpop.permute.xlu0 %4506
    %4510 = vrot.lane.b32.xlu0 %v1236, 3
    %v4511 = vpop.permute.xlu0 %4510
    %4514 = vrot.lane.b32.xlu0 %v1508, 4
    %v4515 = vpop.permute.xlu0 %4514
    %4518 = vrot.lane.b32.xlu0 %v1780, 5
    %v4519 = vpop.permute.xlu0 %4518
    %4522 = vrot.lane.b32.xlu0 %v2052, 6
    %v4523 = vpop.permute.xlu0 %4522
    %4526 = vrot.lane.b32.xlu0 %v2324, 7
    %v4527 = vpop.permute.xlu0 %4526
    %4530 = vrot.lane.b32.xlu0 %v2596, 8
    %v4531 = vpop.permute.xlu0 %4530
    %4534 = vrot.lane.b32.xlu0 %v2868, 9
    %v4535 = vpop.permute.xlu0 %4534
    %4538 = vrot.lane.b32.xlu0 %v3140, 10
    %v4539 = vpop.permute.xlu0 %4538
    %4542 = vrot.lane.b32.xlu0 %v3412, 11
    %v4543 = vpop.permute.xlu0 %4542
    %4546 = vrot.lane.b32.xlu0 %v3684, 12
    %v4547 = vpop.permute.xlu0 %4546
    %4550 = vrot.lane.b32.xlu0 %v3956, 13
    %v4551 = vpop.permute.xlu0 %4550
    %4554 = vrot.lane.b32.xlu0 %v4228, 14
    %v4555 = vpop.permute.xlu0 %4554
    %4558 = vrot.lane.b32.xlu0 %v4500, 15
    %v4559 = vpop.permute.xlu0 %4558
    %vm4561 = vcmask 7168
    %v4562 = vsel %vm4561, %v420, %v4503
    %vm4563 = vcmask 15360
    %v4564 = vsel %vm4563, %v4562, %v4507
    %vm4565 = vcmask 23552
    %v4566 = vsel %vm4565, %v4564, %v4511
    %vm4567 = vcmask 31744
    %v4568 = vsel %vm4567, %v4566, %v4515
    %vm4569 = vcmask 39936
    %v4570 = vsel %vm4569, %v4568, %v4519
    %vm4571 = vcmask 48128
    %v4572 = vsel %vm4571, %v4570, %v4523
    %vm4573 = vcmask 56320
    %v4574 = vsel %vm4573, %v4572, %v4527
    %vm4575 = vcmask 64512
    %v4576 = vsel %vm4575, %v4574, %v4531
    %vm4577 = vcmask 72704
    %v4578 = vsel %vm4577, %v4576, %v4535
    %vm4579 = vcmask 80896
    %v4580 = vsel %vm4579, %v4578, %v4539
    %vm4581 = vcmask 89088
    %v4582 = vsel %vm4581, %v4580, %v4543
    %vm4583 = vcmask 97280
    %v4584 = vsel %vm4583, %v4582, %v4547
    %vm4585 = vcmask 105472
    %v4586 = vsel %vm4585, %v4584, %v4551
    %vm4587 = vcmask 113664
    %v4588 = vsel %vm4587, %v4586, %v4555
    %vm4589 = vcmask 121856
    %v4590 = vsel %vm4589, %v4588, %v4559
    %vm4591 = vcmask 130048
    %4592 = vst.msk [vmem:[#allocation3] sm:$0xff] %vm4591, %v4590
    // Predicated region
    $region38: #{lstm_forward.1} parent=1 // pred_check
      _
    $region39: #{lstm_forward.1} parent=1 // pred_check_branch
      %4594 = sbr.rel (0) target = $region41
    $region40: #{lstm_forward.1} parent=1 // pred_region
      %s4596 = ssub.s32 128, 128
      %4597 = vsyncadd [#allocation4], %s4596
      %s4599 = sshll.u32 [#allocation3], 4
      %s4600 = int_to_ptr.vmem [resolvable:$true] %s4599
      %4602 = dma.vmem_to_hbm [thread:$0]  %s4600, 128, %s9, [#allocation4]
    $region41: #{lstm_forward.1} parent=1 // pred_fallthru
      _
    // Predicated region
    $region42: #{lstm_forward.1} parent=1 // pred_check
      _
    $region43: #{lstm_forward.1} parent=1 // pred_check_branch
      %4604 = sbr.rel (0) target = $region45
    $region44: #{lstm_forward.1} parent=1 // pred_region
      %4605 = dma.done [#allocation4], 128
    $region45: #{lstm_forward.1} parent=1 // pred_fallthru
      _
    %4606 = vsyncpa [#allocation4], 1

</llo_original>
